<compile_context>
chip_gen: v7x
topology: tpu7x:2x2x1
jax: 0.10.0
libtpu: 0.0.40
codegen_flags: <defaults>
</compile_context>

<pallas_src>
import math

import jax
import jax.numpy as jnp
import numpy as np
from jax.experimental import pallas as pl
from jax.experimental.pallas import tpu as pltpu

# Model hyperparameters (mirrors Models.py __init__ with hyperparams['input_size'])
INPUT_SIZE = 4
H1 = 8           # lstm1 hidden size (already 8-aligned)
H2 = 6           # lstm2 hidden size (logical)
H2P = 8          # lstm2 hidden size padded to the native sublane multiple


# ----------------------------------------------------------------------------
# Kernel
# ----------------------------------------------------------------------------
def lstm_kernel(x_ref,                # (B, T, Din)   raw input sequence
                wih1_ref,             # (Din, 4*H1)   packed input weight,  gates [i|f|o|g]
                b1_ref,               # (1, 4*H1)     packed bias (b_ih + b_hh)
                whh1_ref,             # (H1, 4*H1)    packed recurrent weight
                wih2_ref,             # (H1, 4*H2P)
                whh2_ref,             # (H2P, 4*H2P)
                b2_ref,               # (1, 4*H2P)
                wfc_ref,              # (H2P, 1)
                bfc_ref,              # (1, 1)
                out_ref):             # (B, 1)
    B, T, Din = x_ref.shape
    G1 = whh1_ref.shape[1]
    h1_dim = G1 // 4
    h2_dim = whh2_ref.shape[0]
    G2 = 4 * h2_dim

    whh1 = whh1_ref[...]
    wih2 = wih2_ref[...]
    whh2 = whh2_ref[...]
    # Hoist bias broadcasts out of the time loop (no per-step broadcast_in_dim).
    b2 = jnp.broadcast_to(b2_ref[...], (B, G2))

    # Layer-1 input projection for ALL timesteps in ONE MXU dot: this is the
    # only part of layer 1 that does not depend on the recurrence, so it is
    # pulled off the serial chain entirely.
    xt = x_ref[...].reshape(B * T, Din)                       # lane dim preserved
    px = jnp.dot(xt, wih1_ref[...], preferred_element_type=jnp.float32)
    px = (px + jnp.broadcast_to(b1_ref[...], (B * T, G1))).reshape(B, T, G1)

    def cell(pre, c, hdim):
        # pre: (B, 4h) packed pre-activations, gate order [i | f | o | g].
        sfo = jax.nn.sigmoid(pre[:, :3 * hdim])               # one wide sigmoid (i, f, o)
        g = jnp.tanh(pre[:, 3 * hdim:])                       # one tanh (g)
        i = sfo[:, :hdim]
        f = sfo[:, hdim:2 * hdim]
        o = sfo[:, 2 * hdim:3 * hdim]
        c_new = f * c + i * g
        h_new = o * jnp.tanh(c_new)
        return h_new, c_new

    h1 = jnp.zeros((B, h1_dim), jnp.float32)
    c1 = jnp.zeros((B, h1_dim), jnp.float32)
    h2 = jnp.zeros((B, h2_dim), jnp.float32)
    c2 = jnp.zeros((B, h2_dim), jnp.float32)

    # T is small and static: fully unroll (static slices, no loop bookkeeping
    # on the serial critical path).
    for t in range(T):
        # Layer 1: input projection was hoisted; only the recurrent dot remains.
        pre1 = px[:, t, :] + jnp.dot(h1, whh1, preferred_element_type=jnp.float32)
        h1, c1 = cell(pre1, c1, h1_dim)
        y1 = jnp.tanh(h1)                                     # tanh1 between the layers
        # Layer 2: two independent dots (input + recurrent), one packed bias add.
        pre2 = (jnp.dot(y1, wih2, preferred_element_type=jnp.float32)
                + jnp.dot(h2, whh2, preferred_element_type=jnp.float32)
                + b2)
        h2, c2 = cell(pre2, c2, h2_dim)

    y2 = jnp.tanh(h2)                                         # tanh2 (last timestep only)
    logits = jnp.dot(y2, wfc_ref[...],
                     preferred_element_type=jnp.float32) + bfc_ref[...]
    out_ref[...] = jax.nn.sigmoid(logits)                     # fc + sigmoid
    # TODO(synk): Method='Dropout03' (train-time dropout) intentionally omitted;
    # this kernel implements the Method='None' inference path.


def lstm_forward(x, packed):
    """x: (B, T, Din) float32 -> (B, 1) float32."""
    wih1, b1, whh1, wih2, whh2, b2, wfc, bfc = packed
    B, T, _ = x.shape

    vmem = pl.BlockSpec(memory_space=pltpu.MemorySpace.VMEM)
    # TODO(synk): if batch grows on v7x, split B across the two TensorCores with
    # a ("parallel",) grid; at B=2 a single grid point is the right choice.
    return pl.pallas_call(
        lstm_kernel,
        out_shape=jax.ShapeDtypeStruct((B, 1), jnp.float32),
        in_specs=[vmem] * 9,
        out_specs=vmem,
    )(x.astype(jnp.float32), wih1, b1, whh1, wih2, whh2, b2, wfc, bfc)


# ----------------------------------------------------------------------------
# Parameter init (PyTorch layout) and repacking for the kernel
# ----------------------------------------------------------------------------
def _init_torch_lstm(key, input_size, hidden):
    """nn.LSTM init: uniform(-1/sqrt(H), 1/sqrt(H)); PyTorch gate order i,f,g,o."""
    k = 1.0 / math.sqrt(hidden)
    ks = jax.random.split(key, 4)
    w_ih = jax.random.uniform(ks[0], (4 * hidden, input_size), jnp.float32, -k, k)
    w_hh = jax.random.uniform(ks[1], (4 * hidden, hidden), jnp.float32, -k, k)
    b_ih = jax.random.uniform(ks[2], (4 * hidden,), jnp.float32, -k, k)
    b_hh = jax.random.uniform(ks[3], (4 * hidden,), jnp.float32, -k, k)
    return w_ih, w_hh, b_ih, b_hh


def _init_torch_linear(key, in_f, out_f):
    """nn.Linear init: uniform(-1/sqrt(fan_in), 1/sqrt(fan_in))."""
    k = 1.0 / math.sqrt(in_f)
    kw, kb = jax.random.split(key)
    w = jax.random.uniform(kw, (out_f, in_f), jnp.float32, -k, k)
    b = jax.random.uniform(kb, (out_f,), jnp.float32, -k, k)
    return w, b


def _pack_gates(w_ih, w_hh, b_ih, b_hh, hidden, hidden_pad):
    """Repack PyTorch LSTM params (row blocks [i;f;g;o]) into MXU-friendly form:
       Wih: (in, 4*Hp), Whh: (Hp, 4*Hp), b: (1, 4*Hp) with column blocks ordered
       [i|f|o|g] and each gate zero-padded from `hidden` to `hidden_pad` lanes.
       Padded lanes stay exactly 0 through the recurrence (zero weights/bias)."""
    perm = jnp.array([0, 1, 3, 2])       # i, f, g, o  ->  i, f, o, g
    pad = hidden_pad - hidden

    def pack_w(w, pad_in_rows):
        w4 = w.reshape(4, hidden, w.shape[-1])[perm]              # (4, H, in)
        w4 = jnp.transpose(w4, (0, 2, 1))                         # (4, in, H)
        w4 = jnp.pad(w4, ((0, 0), (0, pad_in_rows), (0, pad)))    # pad in-rows / gate cols
        return jnp.concatenate(list(w4), axis=1)                  # (in(+pad), 4*Hp)

    wih = pack_w(w_ih, 0)
    whh = pack_w(w_hh, pad)
    b = (b_ih + b_hh).reshape(4, hidden)[perm]
    b = jnp.pad(b, ((0, 0), (0, pad))).reshape(1, 4 * hidden_pad)
    return wih, whh, b


# ----------------------------------------------------------------------------
# Pure-JAX reference (PyTorch semantics, unpacked/unpadded) for validation
# ----------------------------------------------------------------------------
def lstm_forward_ref(x, raw):
    (w_ih1, w_hh1, b_ih1, b_hh1), (w_ih2, w_hh2, b_ih2, b_hh2), (w_fc, b_fc) = raw
    B, T, _ = x.shape

    def cell(x_t, h, c, w_ih, w_hh, b_ih, b_hh):
        z = x_t @ w_ih.T + h @ w_hh.T + b_ih + b_hh      # (B, 4H), order i,f,g,o
        hsz = h.shape[1]
        i = jax.nn.sigmoid(z[:, :hsz])
        f = jax.nn.sigmoid(z[:, hsz:2 * hsz])
        g = jnp.tanh(z[:, 2 * hsz:3 * hsz])
        o = jax.nn.sigmoid(z[:, 3 * hsz:])
        c = f * c + i * g
        return o * jnp.tanh(c), c

    h1 = jnp.zeros((B, H1)); c1 = jnp.zeros((B, H1))
    h2 = jnp.zeros((B, H2)); c2 = jnp.zeros((B, H2))
    for t in range(T):
        h1, c1 = cell(x[:, t, :], h1, c1, w_ih1, w_hh1, b_ih1, b_hh1)
        y1 = jnp.tanh(h1)
        h2, c2 = cell(y1, h2, c2, w_ih2, w_hh2, b_ih2, b_hh2)
    y2 = jnp.tanh(h2)
    return jax.nn.sigmoid(y2 @ w_fc.T + b_fc)


if __name__ == "__main__":
    key = jax.random.PRNGKey(0)
    k_x, k_l1, k_l2, k_fc = jax.random.split(key, 4)

    B, T = 2, 8
    x = jax.random.normal(k_x, (B, T, INPUT_SIZE), jnp.float32)

    raw1 = _init_torch_lstm(k_l1, INPUT_SIZE, H1)
    raw2 = _init_torch_lstm(k_l2, H1, H2)
    raw_fc = _init_torch_linear(k_fc, H2, 1)

    wih1, whh1, b1 = _pack_gates(*raw1, H1, H1)          # H1 already aligned, no pad
    wih2, whh2, b2 = _pack_gates(*raw2, H2, H2P)         # pad 6 -> 8
    wfc = jnp.pad(jnp.transpose(raw_fc[0]), ((0, H2P - H2), (0, 0)))   # (H2P, 1), zero pad rows
    bfc = raw_fc[1].reshape(1, 1)
    packed = (wih1, b1, whh1, wih2, whh2, b2, wfc, bfc)

    out = lstm_forward(x, packed)
    jax.block_until_ready(out)

    ref = lstm_forward_ref(x, (raw1, raw2, raw_fc))
    assert out.shape == (B, 1), out.shape
    assert np.allclose(np.asarray(out), np.asarray(ref), atol=2e-3), (out, ref)

    print("KERNEL_OK")
</pallas_src>

<mosaic_0001>
module attributes {stable_mosaic.version = 11 : i64} {
  func.func @lstm_kernel(%arg0: memref<2x8x4xf32, #tpu.memory_space<vmem>>, %arg1: memref<4x32xf32, #tpu.memory_space<vmem>>, %arg2: memref<1x32xf32, #tpu.memory_space<vmem>>, %arg3: memref<8x32xf32, #tpu.memory_space<vmem>>, %arg4: memref<8x32xf32, #tpu.memory_space<vmem>>, %arg5: memref<8x32xf32, #tpu.memory_space<vmem>>, %arg6: memref<1x32xf32, #tpu.memory_space<vmem>>, %arg7: memref<8x1xf32, #tpu.memory_space<vmem>>, %arg8: memref<1x1xf32, #tpu.memory_space<vmem>>, %arg9: memref<2x1xf32, #tpu.memory_space<vmem>>) attributes {dimension_semantics = [], scalar_prefetch = 0 : i64, scratch_operands = 0 : i64, tpu.core_type = #tpu.core_type<tc>} {
    %c0 = arith.constant 0 : index
    %c0_0 = arith.constant 0 : index
    %0 = vector.load %arg3[%c0, %c0_0] : memref<8x32xf32, #tpu.memory_space<vmem>>, vector<8x32xf32>
    %c0_1 = arith.constant 0 : index
    %c0_2 = arith.constant 0 : index
    %1 = vector.load %arg4[%c0_1, %c0_2] : memref<8x32xf32, #tpu.memory_space<vmem>>, vector<8x32xf32>
    %c0_3 = arith.constant 0 : index
    %c0_4 = arith.constant 0 : index
    %2 = vector.load %arg5[%c0_3, %c0_4] : memref<8x32xf32, #tpu.memory_space<vmem>>, vector<8x32xf32>
    %c0_5 = arith.constant 0 : index
    %c0_6 = arith.constant 0 : index
    %3 = vector.load %arg6[%c0_5, %c0_6] : memref<1x32xf32, #tpu.memory_space<vmem>>, vector<1x32xf32>
    %4 = vector.shape_cast %3 : vector<1x32xf32> to vector<1x32xf32>
    %5 = vector.broadcast %4 : vector<1x32xf32> to vector<2x32xf32>
    %c0_7 = arith.constant 0 : index
    %c0_8 = arith.constant 0 : index
    %c0_9 = arith.constant 0 : index
    %6 = vector.load %arg0[%c0_7, %c0_8, %c0_9] : memref<2x8x4xf32, #tpu.memory_space<vmem>>, vector<2x8x4xf32>
    %7 = vector.shape_cast %6 : vector<2x8x4xf32> to vector<16x4xf32>
    %c0_10 = arith.constant 0 : index
    %c0_11 = arith.constant 0 : index
    %8 = vector.load %arg1[%c0_10, %c0_11] : memref<4x32xf32, #tpu.memory_space<vmem>>, vector<4x32xf32>
    %cst = arith.constant dense<0.000000e+00> : vector<16x32xf32>
    %9 = tpu.matmul %7, %8, %cst {dimension_numbers = #tpu.dot_dimension_numbers<[1], [0], [0], [1], [0, 0, 1, 1], [], []>} : vector<16x4xf32>, vector<4x32xf32>, vector<16x32xf32> -> vector<16x32xf32>
    %c0_12 = arith.constant 0 : index
    %c0_13 = arith.constant 0 : index
    %10 = vector.load %arg2[%c0_12, %c0_13] : memref<1x32xf32, #tpu.memory_space<vmem>>, vector<1x32xf32>
    %11 = vector.shape_cast %10 : vector<1x32xf32> to vector<1x32xf32>
    %12 = vector.broadcast %11 : vector<1x32xf32> to vector<16x32xf32>
    %13 = arith.addf %9, %12 : vector<16x32xf32>
    %14 = vector.shape_cast %13 : vector<16x32xf32> to vector<2x8x32xf32>
    %cst_14 = arith.constant 0.000000e+00 : f32
    %15 = vector.broadcast %cst_14 : f32 to vector<2x8xf32>
    %cst_15 = arith.constant 0.000000e+00 : f32
    %16 = vector.broadcast %cst_15 : f32 to vector<2x8xf32>
    %cst_16 = arith.constant 0.000000e+00 : f32
    %17 = vector.broadcast %cst_16 : f32 to vector<2x8xf32>
    %cst_17 = arith.constant 0.000000e+00 : f32
    %18 = vector.broadcast %cst_17 : f32 to vector<2x8xf32>
    %19 = vector.extract_strided_slice %14 {offsets = [0, 0, 0], sizes = [2, 1, 32], strides = [1, 1, 1]} : vector<2x8x32xf32> to vector<2x1x32xf32>
    %20 = vector.shape_cast %19 : vector<2x1x32xf32> to vector<2x32xf32>
    %cst_18 = arith.constant dense<0.000000e+00> : vector<2x32xf32>
    %21 = tpu.matmul %15, %0, %cst_18 {dimension_numbers = #tpu.dot_dimension_numbers<[1], [0], [0], [1], [0, 0, 1, 1], [], []>} : vector<2x8xf32>, vector<8x32xf32>, vector<2x32xf32> -> vector<2x32xf32>
    %22 = arith.addf %20, %21 : vector<2x32xf32>
    %23 = vector.extract_strided_slice %22 {offsets = [0, 0], sizes = [2, 24], strides = [1, 1]} : vector<2x32xf32> to vector<2x24xf32>
    %24 = arith.negf %23 : vector<2x24xf32>
    %25 = math.exp %24 : vector<2x24xf32>
    %cst_19 = arith.constant 1.000000e+00 : f32
    %26 = vector.broadcast %cst_19 : f32 to vector<2x24xf32>
    %27 = arith.addf %26, %25 : vector<2x24xf32>
    %28 = arith.divf %26, %27 : vector<2x24xf32>
    %29 = vector.extract_strided_slice %22 {offsets = [0, 24], sizes = [2, 8], strides = [1, 1]} : vector<2x32xf32> to vector<2x8xf32>
    %30 = math.tanh %29 : vector<2x8xf32>
    %31 = vector.extract_strided_slice %28 {offsets = [0, 0], sizes = [2, 8], strides = [1, 1]} : vector<2x24xf32> to vector<2x8xf32>
    %32 = vector.extract_strided_slice %28 {offsets = [0, 8], sizes = [2, 8], strides = [1, 1]} : vector<2x24xf32> to vector<2x8xf32>
    %33 = vector.extract_strided_slice %28 {offsets = [0, 16], sizes = [2, 8], strides = [1, 1]} : vector<2x24xf32> to vector<2x8xf32>
    %34 = arith.mulf %32, %16 : vector<2x8xf32>
    %35 = arith.mulf %31, %30 : vector<2x8xf32>
    %36 = arith.addf %34, %35 : vector<2x8xf32>
    %37 = math.tanh %36 : vector<2x8xf32>
    %38 = arith.mulf %33, %37 : vector<2x8xf32>
    %39 = math.tanh %38 : vector<2x8xf32>
    %cst_20 = arith.constant dense<0.000000e+00> : vector<2x32xf32>
    %40 = tpu.matmul %39, %1, %cst_20 {dimension_numbers = #tpu.dot_dimension_numbers<[1], [0], [0], [1], [0, 0, 1, 1], [], []>} : vector<2x8xf32>, vector<8x32xf32>, vector<2x32xf32> -> vector<2x32xf32>
    %cst_21 = arith.constant dense<0.000000e+00> : vector<2x32xf32>
    %41 = tpu.matmul %17, %2, %cst_21 {dimension_numbers = #tpu.dot_dimension_numbers<[1], [0], [0], [1], [0, 0, 1, 1], [], []>} : vector<2x8xf32>, vector<8x32xf32>, vector<2x32xf32> -> vector<2x32xf32>
    %42 = arith.addf %40, %41 : vector<2x32xf32>
    %43 = arith.addf %42, %5 : vector<2x32xf32>
    %44 = vector.extract_strided_slice %43 {offsets = [0, 0], sizes = [2, 24], strides = [1, 1]} : vector<2x32xf32> to vector<2x24xf32>
    %45 = arith.negf %44 : vector<2x24xf32>
    %46 = math.exp %45 : vector<2x24xf32>
    %cst_22 = arith.constant 1.000000e+00 : f32
    %47 = vector.broadcast %cst_22 : f32 to vector<2x24xf32>
    %48 = arith.addf %47, %46 : vector<2x24xf32>
    %49 = arith.divf %47, %48 : vector<2x24xf32>
    %50 = vector.extract_strided_slice %43 {offsets = [0, 24], sizes = [2, 8], strides = [1, 1]} : vector<2x32xf32> to vector<2x8xf32>
    %51 = math.tanh %50 : vector<2x8xf32>
    %52 = vector.extract_strided_slice %49 {offsets = [0, 0], sizes = [2, 8], strides = [1, 1]} : vector<2x24xf32> to vector<2x8xf32>
    %53 = vector.extract_strided_slice %49 {offsets = [0, 8], sizes = [2, 8], strides = [1, 1]} : vector<2x24xf32> to vector<2x8xf32>
    %54 = vector.extract_strided_slice %49 {offsets = [0, 16], sizes = [2, 8], strides = [1, 1]} : vector<2x24xf32> to vector<2x8xf32>
    %55 = arith.mulf %53, %18 : vector<2x8xf32>
    %56 = arith.mulf %52, %51 : vector<2x8xf32>
    %57 = arith.addf %55, %56 : vector<2x8xf32>
    %58 = math.tanh %57 : vector<2x8xf32>
    %59 = arith.mulf %54, %58 : vector<2x8xf32>
    %60 = vector.extract_strided_slice %14 {offsets = [0, 1, 0], sizes = [2, 1, 32], strides = [1, 1, 1]} : vector<2x8x32xf32> to vector<2x1x32xf32>
    %61 = vector.shape_cast %60 : vector<2x1x32xf32> to vector<2x32xf32>
    %cst_23 = arith.constant dense<0.000000e+00> : vector<2x32xf32>
    %62 = tpu.matmul %38, %0, %cst_23 {dimension_numbers = #tpu.dot_dimension_numbers<[1], [0], [0], [1], [0, 0, 1, 1], [], []>} : vector<2x8xf32>, vector<8x32xf32>, vector<2x32xf32> -> vector<2x32xf32>
    %63 = arith.addf %61, %62 : vector<2x32xf32>
    %64 = vector.extract_strided_slice %63 {offsets = [0, 0], sizes = [2, 24], strides = [1, 1]} : vector<2x32xf32> to vector<2x24xf32>
    %65 = arith.negf %64 : vector<2x24xf32>
    %66 = math.exp %65 : vector<2x24xf32>
    %cst_24 = arith.constant 1.000000e+00 : f32
    %67 = vector.broadcast %cst_24 : f32 to vector<2x24xf32>
    %68 = arith.addf %67, %66 : vector<2x24xf32>
    %69 = arith.divf %67, %68 : vector<2x24xf32>
    %70 = vector.extract_strided_slice %63 {offsets = [0, 24], sizes = [2, 8], strides = [1, 1]} : vector<2x32xf32> to vector<2x8xf32>
    %71 = math.tanh %70 : vector<2x8xf32>
    %72 = vector.extract_strided_slice %69 {offsets = [0, 0], sizes = [2, 8], strides = [1, 1]} : vector<2x24xf32> to vector<2x8xf32>
    %73 = vector.extract_strided_slice %69 {offsets = [0, 8], sizes = [2, 8], strides = [1, 1]} : vector<2x24xf32> to vector<2x8xf32>
    %74 = vector.extract_strided_slice %69 {offsets = [0, 16], sizes = [2, 8], strides = [1, 1]} : vector<2x24xf32> to vector<2x8xf32>
    %75 = arith.mulf %73, %36 : vector<2x8xf32>
    %76 = arith.mulf %72, %71 : vector<2x8xf32>
    %77 = arith.addf %75, %76 : vector<2x8xf32>
    %78 = math.tanh %77 : vector<2x8xf32>
    %79 = arith.mulf %74, %78 : vector<2x8xf32>
    %80 = math.tanh %79 : vector<2x8xf32>
    %cst_25 = arith.constant dense<0.000000e+00> : vector<2x32xf32>
    %81 = tpu.matmul %80, %1, %cst_25 {dimension_numbers = #tpu.dot_dimension_numbers<[1], [0], [0], [1], [0, 0, 1, 1], [], []>} : vector<2x8xf32>, vector<8x32xf32>, vector<2x32xf32> -> vector<2x32xf32>
    %cst_26 = arith.constant dense<0.000000e+00> : vector<2x32xf32>
    %82 = tpu.matmul %59, %2, %cst_26 {dimension_numbers = #tpu.dot_dimension_numbers<[1], [0], [0], [1], [0, 0, 1, 1], [], []>} : vector<2x8xf32>, vector<8x32xf32>, vector<2x32xf32> -> vector<2x32xf32>
    %83 = arith.addf %81, %82 : vector<2x32xf32>
    %84 = arith.addf %83, %5 : vector<2x32xf32>
    %85 = vector.extract_strided_slice %84 {offsets = [0, 0], sizes = [2, 24], strides = [1, 1]} : vector<2x32xf32> to vector<2x24xf32>
    %86 = arith.negf %85 : vector<2x24xf32>
    %87 = math.exp %86 : vector<2x24xf32>
    %cst_27 = arith.constant 1.000000e+00 : f32
    %88 = vector.broadcast %cst_27 : f32 to vector<2x24xf32>
    %89 = arith.addf %88, %87 : vector<2x24xf32>
    %90 = arith.divf %88, %89 : vector<2x24xf32>
    %91 = vector.extract_strided_slice %84 {offsets = [0, 24], sizes = [2, 8], strides = [1, 1]} : vector<2x32xf32> to vector<2x8xf32>
    %92 = math.tanh %91 : vector<2x8xf32>
    %93 = vector.extract_strided_slice %90 {offsets = [0, 0], sizes = [2, 8], strides = [1, 1]} : vector<2x24xf32> to vector<2x8xf32>
    %94 = vector.extract_strided_slice %90 {offsets = [0, 8], sizes = [2, 8], strides = [1, 1]} : vector<2x24xf32> to vector<2x8xf32>
    %95 = vector.extract_strided_slice %90 {offsets = [0, 16], sizes = [2, 8], strides = [1, 1]} : vector<2x24xf32> to vector<2x8xf32>
    %96 = arith.mulf %94, %57 : vector<2x8xf32>
    %97 = arith.mulf %93, %92 : vector<2x8xf32>
    %98 = arith.addf %96, %97 : vector<2x8xf32>
    %99 = math.tanh %98 : vector<2x8xf32>
    %100 = arith.mulf %95, %99 : vector<2x8xf32>
    %101 = vector.extract_strided_slice %14 {offsets = [0, 2, 0], sizes = [2, 1, 32], strides = [1, 1, 1]} : vector<2x8x32xf32> to vector<2x1x32xf32>
    %102 = vector.shape_cast %101 : vector<2x1x32xf32> to vector<2x32xf32>
    %cst_28 = arith.constant dense<0.000000e+00> : vector<2x32xf32>
    %103 = tpu.matmul %79, %0, %cst_28 {dimension_numbers = #tpu.dot_dimension_numbers<[1], [0], [0], [1], [0, 0, 1, 1], [], []>} : vector<2x8xf32>, vector<8x32xf32>, vector<2x32xf32> -> vector<2x32xf32>
    %104 = arith.addf %102, %103 : vector<2x32xf32>
    %105 = vector.extract_strided_slice %104 {offsets = [0, 0], sizes = [2, 24], strides = [1, 1]} : vector<2x32xf32> to vector<2x24xf32>
    %106 = arith.negf %105 : vector<2x24xf32>
    %107 = math.exp %106 : vector<2x24xf32>
    %cst_29 = arith.constant 1.000000e+00 : f32
    %108 = vector.broadcast %cst_29 : f32 to vector<2x24xf32>
    %109 = arith.addf %108, %107 : vector<2x24xf32>
    %110 = arith.divf %108, %109 : vector<2x24xf32>
    %111 = vector.extract_strided_slice %104 {offsets = [0, 24], sizes = [2, 8], strides = [1, 1]} : vector<2x32xf32> to vector<2x8xf32>
    %112 = math.tanh %111 : vector<2x8xf32>
    %113 = vector.extract_strided_slice %110 {offsets = [0, 0], sizes = [2, 8], strides = [1, 1]} : vector<2x24xf32> to vector<2x8xf32>
    %114 = vector.extract_strided_slice %110 {offsets = [0, 8], sizes = [2, 8], strides = [1, 1]} : vector<2x24xf32> to vector<2x8xf32>
    %115 = vector.extract_strided_slice %110 {offsets = [0, 16], sizes = [2, 8], strides = [1, 1]} : vector<2x24xf32> to vector<2x8xf32>
    %116 = arith.mulf %114, %77 : vector<2x8xf32>
    %117 = arith.mulf %113, %112 : vector<2x8xf32>
    %118 = arith.addf %116, %117 : vector<2x8xf32>
    %119 = math.tanh %118 : vector<2x8xf32>
    %120 = arith.mulf %115, %119 : vector<2x8xf32>
    %121 = math.tanh %120 : vector<2x8xf32>
    %cst_30 = arith.constant dense<0.000000e+00> : vector<2x32xf32>
    %122 = tpu.matmul %121, %1, %cst_30 {dimension_numbers = #tpu.dot_dimension_numbers<[1], [0], [0], [1], [0, 0, 1, 1], [], []>} : vector<2x8xf32>, vector<8x32xf32>, vector<2x32xf32> -> vector<2x32xf32>
    %cst_31 = arith.constant dense<0.000000e+00> : vector<2x32xf32>
    %123 = tpu.matmul %100, %2, %cst_31 {dimension_numbers = #tpu.dot_dimension_numbers<[1], [0], [0], [1], [0, 0, 1, 1], [], []>} : vector<2x8xf32>, vector<8x32xf32>, vector<2x32xf32> -> vector<2x32xf32>
    %124 = arith.addf %122, %123 : vector<2x32xf32>
    %125 = arith.addf %124, %5 : vector<2x32xf32>
    %126 = vector.extract_strided_slice %125 {offsets = [0, 0], sizes = [2, 24], strides = [1, 1]} : vector<2x32xf32> to vector<2x24xf32>
    %127 = arith.negf %126 : vector<2x24xf32>
    %128 = math.exp %127 : vector<2x24xf32>
    %cst_32 = arith.constant 1.000000e+00 : f32
    %129 = vector.broadcast %cst_32 : f32 to vector<2x24xf32>
    %130 = arith.addf %129, %128 : vector<2x24xf32>
    %131 = arith.divf %129, %130 : vector<2x24xf32>
    %132 = vector.extract_strided_slice %125 {offsets = [0, 24], sizes = [2, 8], strides = [1, 1]} : vector<2x32xf32> to vector<2x8xf32>
    %133 = math.tanh %132 : vector<2x8xf32>
    %134 = vector.extract_strided_slice %131 {offsets = [0, 0], sizes = [2, 8], strides = [1, 1]} : vector<2x24xf32> to vector<2x8xf32>
    %135 = vector.extract_strided_slice %131 {offsets = [0, 8], sizes = [2, 8], strides = [1, 1]} : vector<2x24xf32> to vector<2x8xf32>
    %136 = vector.extract_strided_slice %131 {offsets = [0, 16], sizes = [2, 8], strides = [1, 1]} : vector<2x24xf32> to vector<2x8xf32>
    %137 = arith.mulf %135, %98 : vector<2x8xf32>
    %138 = arith.mulf %134, %133 : vector<2x8xf32>
    %139 = arith.addf %137, %138 : vector<2x8xf32>
    %140 = math.tanh %139 : vector<2x8xf32>
    %141 = arith.mulf %136, %140 : vector<2x8xf32>
    %142 = vector.extract_strided_slice %14 {offsets = [0, 3, 0], sizes = [2, 1, 32], strides = [1, 1, 1]} : vector<2x8x32xf32> to vector<2x1x32xf32>
    %143 = vector.shape_cast %142 : vector<2x1x32xf32> to vector<2x32xf32>
    %cst_33 = arith.constant dense<0.000000e+00> : vector<2x32xf32>
    %144 = tpu.matmul %120, %0, %cst_33 {dimension_numbers = #tpu.dot_dimension_numbers<[1], [0], [0], [1], [0, 0, 1, 1], [], []>} : vector<2x8xf32>, vector<8x32xf32>, vector<2x32xf32> -> vector<2x32xf32>
    %145 = arith.addf %143, %144 : vector<2x32xf32>
    %146 = vector.extract_strided_slice %145 {offsets = [0, 0], sizes = [2, 24], strides = [1, 1]} : vector<2x32xf32> to vector<2x24xf32>
    %147 = arith.negf %146 : vector<2x24xf32>
    %148 = math.exp %147 : vector<2x24xf32>
    %cst_34 = arith.constant 1.000000e+00 : f32
    %149 = vector.broadcast %cst_34 : f32 to vector<2x24xf32>
    %150 = arith.addf %149, %148 : vector<2x24xf32>
    %151 = arith.divf %149, %150 : vector<2x24xf32>
    %152 = vector.extract_strided_slice %145 {offsets = [0, 24], sizes = [2, 8], strides = [1, 1]} : vector<2x32xf32> to vector<2x8xf32>
    %153 = math.tanh %152 : vector<2x8xf32>
    %154 = vector.extract_strided_slice %151 {offsets = [0, 0], sizes = [2, 8], strides = [1, 1]} : vector<2x24xf32> to vector<2x8xf32>
    %155 = vector.extract_strided_slice %151 {offsets = [0, 8], sizes = [2, 8], strides = [1, 1]} : vector<2x24xf32> to vector<2x8xf32>
    %156 = vector.extract_strided_slice %151 {offsets = [0, 16], sizes = [2, 8], strides = [1, 1]} : vector<2x24xf32> to vector<2x8xf32>
    %157 = arith.mulf %155, %118 : vector<2x8xf32>
    %158 = arith.mulf %154, %153 : vector<2x8xf32>
    %159 = arith.addf %157, %158 : vector<2x8xf32>
    %160 = math.tanh %159 : vector<2x8xf32>
    %161 = arith.mulf %156, %160 : vector<2x8xf32>
    %162 = math.tanh %161 : vector<2x8xf32>
    %cst_35 = arith.constant dense<0.000000e+00> : vector<2x32xf32>
    %163 = tpu.matmul %162, %1, %cst_35 {dimension_numbers = #tpu.dot_dimension_numbers<[1], [0], [0], [1], [0, 0, 1, 1], [], []>} : vector<2x8xf32>, vector<8x32xf32>, vector<2x32xf32> -> vector<2x32xf32>
    %cst_36 = arith.constant dense<0.000000e+00> : vector<2x32xf32>
    %164 = tpu.matmul %141, %2, %cst_36 {dimension_numbers = #tpu.dot_dimension_numbers<[1], [0], [0], [1], [0, 0, 1, 1], [], []>} : vector<2x8xf32>, vector<8x32xf32>, vector<2x32xf32> -> vector<2x32xf32>
    %165 = arith.addf %163, %164 : vector<2x32xf32>
    %166 = arith.addf %165, %5 : vector<2x32xf32>
    %167 = vector.extract_strided_slice %166 {offsets = [0, 0], sizes = [2, 24], strides = [1, 1]} : vector<2x32xf32> to vector<2x24xf32>
    %168 = arith.negf %167 : vector<2x24xf32>
    %169 = math.exp %168 : vector<2x24xf32>
    %cst_37 = arith.constant 1.000000e+00 : f32
    %170 = vector.broadcast %cst_37 : f32 to vector<2x24xf32>
    %171 = arith.addf %170, %169 : vector<2x24xf32>
    %172 = arith.divf %170, %171 : vector<2x24xf32>
    %173 = vector.extract_strided_slice %166 {offsets = [0, 24], sizes = [2, 8], strides = [1, 1]} : vector<2x32xf32> to vector<2x8xf32>
    %174 = math.tanh %173 : vector<2x8xf32>
    %175 = vector.extract_strided_slice %172 {offsets = [0, 0], sizes = [2, 8], strides = [1, 1]} : vector<2x24xf32> to vector<2x8xf32>
    %176 = vector.extract_strided_slice %172 {offsets = [0, 8], sizes = [2, 8], strides = [1, 1]} : vector<2x24xf32> to vector<2x8xf32>
    %177 = vector.extract_strided_slice %172 {offsets = [0, 16], sizes = [2, 8], strides = [1, 1]} : vector<2x24xf32> to vector<2x8xf32>
    %178 = arith.mulf %176, %139 : vector<2x8xf32>
    %179 = arith.mulf %175, %174 : vector<2x8xf32>
    %180 = arith.addf %178, %179 : vector<2x8xf32>
    %181 = math.tanh %180 : vector<2x8xf32>
    %182 = arith.mulf %177, %181 : vector<2x8xf32>
    %183 = vector.extract_strided_slice %14 {offsets = [0, 4, 0], sizes = [2, 1, 32], strides = [1, 1, 1]} : vector<2x8x32xf32> to vector<2x1x32xf32>
    %184 = vector.shape_cast %183 : vector<2x1x32xf32> to vector<2x32xf32>
    %cst_38 = arith.constant dense<0.000000e+00> : vector<2x32xf32>
    %185 = tpu.matmul %161, %0, %cst_38 {dimension_numbers = #tpu.dot_dimension_numbers<[1], [0], [0], [1], [0, 0, 1, 1], [], []>} : vector<2x8xf32>, vector<8x32xf32>, vector<2x32xf32> -> vector<2x32xf32>
    %186 = arith.addf %184, %185 : vector<2x32xf32>
    %187 = vector.extract_strided_slice %186 {offsets = [0, 0], sizes = [2, 24], strides = [1, 1]} : vector<2x32xf32> to vector<2x24xf32>
    %188 = arith.negf %187 : vector<2x24xf32>
    %189 = math.exp %188 : vector<2x24xf32>
    %cst_39 = arith.constant 1.000000e+00 : f32
    %190 = vector.broadcast %cst_39 : f32 to vector<2x24xf32>
    %191 = arith.addf %190, %189 : vector<2x24xf32>
    %192 = arith.divf %190, %191 : vector<2x24xf32>
    %193 = vector.extract_strided_slice %186 {offsets = [0, 24], sizes = [2, 8], strides = [1, 1]} : vector<2x32xf32> to vector<2x8xf32>
    %194 = math.tanh %193 : vector<2x8xf32>
    %195 = vector.extract_strided_slice %192 {offsets = [0, 0], sizes = [2, 8], strides = [1, 1]} : vector<2x24xf32> to vector<2x8xf32>
    %196 = vector.extract_strided_slice %192 {offsets = [0, 8], sizes = [2, 8], strides = [1, 1]} : vector<2x24xf32> to vector<2x8xf32>
    %197 = vector.extract_strided_slice %192 {offsets = [0, 16], sizes = [2, 8], strides = [1, 1]} : vector<2x24xf32> to vector<2x8xf32>
    %198 = arith.mulf %196, %159 : vector<2x8xf32>
    %199 = arith.mulf %195, %194 : vector<2x8xf32>
    %200 = arith.addf %198, %199 : vector<2x8xf32>
    %201 = math.tanh %200 : vector<2x8xf32>
    %202 = arith.mulf %197, %201 : vector<2x8xf32>
    %203 = math.tanh %202 : vector<2x8xf32>
    %cst_40 = arith.constant dense<0.000000e+00> : vector<2x32xf32>
    %204 = tpu.matmul %203, %1, %cst_40 {dimension_numbers = #tpu.dot_dimension_numbers<[1], [0], [0], [1], [0, 0, 1, 1], [], []>} : vector<2x8xf32>, vector<8x32xf32>, vector<2x32xf32> -> vector<2x32xf32>
    %cst_41 = arith.constant dense<0.000000e+00> : vector<2x32xf32>
    %205 = tpu.matmul %182, %2, %cst_41 {dimension_numbers = #tpu.dot_dimension_numbers<[1], [0], [0], [1], [0, 0, 1, 1], [], []>} : vector<2x8xf32>, vector<8x32xf32>, vector<2x32xf32> -> vector<2x32xf32>
    %206 = arith.addf %204, %205 : vector<2x32xf32>
    %207 = arith.addf %206, %5 : vector<2x32xf32>
    %208 = vector.extract_strided_slice %207 {offsets = [0, 0], sizes = [2, 24], strides = [1, 1]} : vector<2x32xf32> to vector<2x24xf32>
    %209 = arith.negf %208 : vector<2x24xf32>
    %210 = math.exp %209 : vector<2x24xf32>
    %cst_42 = arith.constant 1.000000e+00 : f32
    %211 = vector.broadcast %cst_42 : f32 to vector<2x24xf32>
    %212 = arith.addf %211, %210 : vector<2x24xf32>
    %213 = arith.divf %211, %212 : vector<2x24xf32>
    %214 = vector.extract_strided_slice %207 {offsets = [0, 24], sizes = [2, 8], strides = [1, 1]} : vector<2x32xf32> to vector<2x8xf32>
    %215 = math.tanh %214 : vector<2x8xf32>
    %216 = vector.extract_strided_slice %213 {offsets = [0, 0], sizes = [2, 8], strides = [1, 1]} : vector<2x24xf32> to vector<2x8xf32>
    %217 = vector.extract_strided_slice %213 {offsets = [0, 8], sizes = [2, 8], strides = [1, 1]} : vector<2x24xf32> to vector<2x8xf32>
    %218 = vector.extract_strided_slice %213 {offsets = [0, 16], sizes = [2, 8], strides = [1, 1]} : vector<2x24xf32> to vector<2x8xf32>
    %219 = arith.mulf %217, %180 : vector<2x8xf32>
    %220 = arith.mulf %216, %215 : vector<2x8xf32>
    %221 = arith.addf %219, %220 : vector<2x8xf32>
    %222 = math.tanh %221 : vector<2x8xf32>
    %223 = arith.mulf %218, %222 : vector<2x8xf32>
    %224 = vector.extract_strided_slice %14 {offsets = [0, 5, 0], sizes = [2, 1, 32], strides = [1, 1, 1]} : vector<2x8x32xf32> to vector<2x1x32xf32>
    %225 = vector.shape_cast %224 : vector<2x1x32xf32> to vector<2x32xf32>
    %cst_43 = arith.constant dense<0.000000e+00> : vector<2x32xf32>
    %226 = tpu.matmul %202, %0, %cst_43 {dimension_numbers = #tpu.dot_dimension_numbers<[1], [0], [0], [1], [0, 0, 1, 1], [], []>} : vector<2x8xf32>, vector<8x32xf32>, vector<2x32xf32> -> vector<2x32xf32>
    %227 = arith.addf %225, %226 : vector<2x32xf32>
    %228 = vector.extract_strided_slice %227 {offsets = [0, 0], sizes = [2, 24], strides = [1, 1]} : vector<2x32xf32> to vector<2x24xf32>
    %229 = arith.negf %228 : vector<2x24xf32>
    %230 = math.exp %229 : vector<2x24xf32>
    %cst_44 = arith.constant 1.000000e+00 : f32
    %231 = vector.broadcast %cst_44 : f32 to vector<2x24xf32>
    %232 = arith.addf %231, %230 : vector<2x24xf32>
    %233 = arith.divf %231, %232 : vector<2x24xf32>
    %234 = vector.extract_strided_slice %227 {offsets = [0, 24], sizes = [2, 8], strides = [1, 1]} : vector<2x32xf32> to vector<2x8xf32>
    %235 = math.tanh %234 : vector<2x8xf32>
    %236 = vector.extract_strided_slice %233 {offsets = [0, 0], sizes = [2, 8], strides = [1, 1]} : vector<2x24xf32> to vector<2x8xf32>
    %237 = vector.extract_strided_slice %233 {offsets = [0, 8], sizes = [2, 8], strides = [1, 1]} : vector<2x24xf32> to vector<2x8xf32>
    %238 = vector.extract_strided_slice %233 {offsets = [0, 16], sizes = [2, 8], strides = [1, 1]} : vector<2x24xf32> to vector<2x8xf32>
    %239 = arith.mulf %237, %200 : vector<2x8xf32>
    %240 = arith.mulf %236, %235 : vector<2x8xf32>
    %241 = arith.addf %239, %240 : vector<2x8xf32>
    %242 = math.tanh %241 : vector<2x8xf32>
    %243 = arith.mulf %238, %242 : vector<2x8xf32>
    %244 = math.tanh %243 : vector<2x8xf32>
    %cst_45 = arith.constant dense<0.000000e+00> : vector<2x32xf32>
    %245 = tpu.matmul %244, %1, %cst_45 {dimension_numbers = #tpu.dot_dimension_numbers<[1], [0], [0], [1], [0, 0, 1, 1], [], []>} : vector<2x8xf32>, vector<8x32xf32>, vector<2x32xf32> -> vector<2x32xf32>
    %cst_46 = arith.constant dense<0.000000e+00> : vector<2x32xf32>
    %246 = tpu.matmul %223, %2, %cst_46 {dimension_numbers = #tpu.dot_dimension_numbers<[1], [0], [0], [1], [0, 0, 1, 1], [], []>} : vector<2x8xf32>, vector<8x32xf32>, vector<2x32xf32> -> vector<2x32xf32>
    %247 = arith.addf %245, %246 : vector<2x32xf32>
    %248 = arith.addf %247, %5 : vector<2x32xf32>
    %249 = vector.extract_strided_slice %248 {offsets = [0, 0], sizes = [2, 24], strides = [1, 1]} : vector<2x32xf32> to vector<2x24xf32>
    %250 = arith.negf %249 : vector<2x24xf32>
    %251 = math.exp %250 : vector<2x24xf32>
    %cst_47 = arith.constant 1.000000e+00 : f32
    %252 = vector.broadcast %cst_47 : f32 to vector<2x24xf32>
    %253 = arith.addf %252, %251 : vector<2x24xf32>
    %254 = arith.divf %252, %253 : vector<2x24xf32>
    %255 = vector.extract_strided_slice %248 {offsets = [0, 24], sizes = [2, 8], strides = [1, 1]} : vector<2x32xf32> to vector<2x8xf32>
    %256 = math.tanh %255 : vector<2x8xf32>
    %257 = vector.extract_strided_slice %254 {offsets = [0, 0], sizes = [2, 8], strides = [1, 1]} : vector<2x24xf32> to vector<2x8xf32>
    %258 = vector.extract_strided_slice %254 {offsets = [0, 8], sizes = [2, 8], strides = [1, 1]} : vector<2x24xf32> to vector<2x8xf32>
    %259 = vector.extract_strided_slice %254 {offsets = [0, 16], sizes = [2, 8], strides = [1, 1]} : vector<2x24xf32> to vector<2x8xf32>
    %260 = arith.mulf %258, %221 : vector<2x8xf32>
    %261 = arith.mulf %257, %256 : vector<2x8xf32>
    %262 = arith.addf %260, %261 : vector<2x8xf32>
    %263 = math.tanh %262 : vector<2x8xf32>
    %264 = arith.mulf %259, %263 : vector<2x8xf32>
    %265 = vector.extract_strided_slice %14 {offsets = [0, 6, 0], sizes = [2, 1, 32], strides = [1, 1, 1]} : vector<2x8x32xf32> to vector<2x1x32xf32>
    %266 = vector.shape_cast %265 : vector<2x1x32xf32> to vector<2x32xf32>
    %cst_48 = arith.constant dense<0.000000e+00> : vector<2x32xf32>
    %267 = tpu.matmul %243, %0, %cst_48 {dimension_numbers = #tpu.dot_dimension_numbers<[1], [0], [0], [1], [0, 0, 1, 1], [], []>} : vector<2x8xf32>, vector<8x32xf32>, vector<2x32xf32> -> vector<2x32xf32>
    %268 = arith.addf %266, %267 : vector<2x32xf32>
    %269 = vector.extract_strided_slice %268 {offsets = [0, 0], sizes = [2, 24], strides = [1, 1]} : vector<2x32xf32> to vector<2x24xf32>
    %270 = arith.negf %269 : vector<2x24xf32>
    %271 = math.exp %270 : vector<2x24xf32>
    %cst_49 = arith.constant 1.000000e+00 : f32
    %272 = vector.broadcast %cst_49 : f32 to vector<2x24xf32>
    %273 = arith.addf %272, %271 : vector<2x24xf32>
    %274 = arith.divf %272, %273 : vector<2x24xf32>
    %275 = vector.extract_strided_slice %268 {offsets = [0, 24], sizes = [2, 8], strides = [1, 1]} : vector<2x32xf32> to vector<2x8xf32>
    %276 = math.tanh %275 : vector<2x8xf32>
    %277 = vector.extract_strided_slice %274 {offsets = [0, 0], sizes = [2, 8], strides = [1, 1]} : vector<2x24xf32> to vector<2x8xf32>
    %278 = vector.extract_strided_slice %274 {offsets = [0, 8], sizes = [2, 8], strides = [1, 1]} : vector<2x24xf32> to vector<2x8xf32>
    %279 = vector.extract_strided_slice %274 {offsets = [0, 16], sizes = [2, 8], strides = [1, 1]} : vector<2x24xf32> to vector<2x8xf32>
    %280 = arith.mulf %278, %241 : vector<2x8xf32>
    %281 = arith.mulf %277, %276 : vector<2x8xf32>
    %282 = arith.addf %280, %281 : vector<2x8xf32>
    %283 = math.tanh %282 : vector<2x8xf32>
    %284 = arith.mulf %279, %283 : vector<2x8xf32>
    %285 = math.tanh %284 : vector<2x8xf32>
    %cst_50 = arith.constant dense<0.000000e+00> : vector<2x32xf32>
    %286 = tpu.matmul %285, %1, %cst_50 {dimension_numbers = #tpu.dot_dimension_numbers<[1], [0], [0], [1], [0, 0, 1, 1], [], []>} : vector<2x8xf32>, vector<8x32xf32>, vector<2x32xf32> -> vector<2x32xf32>
    %cst_51 = arith.constant dense<0.000000e+00> : vector<2x32xf32>
    %287 = tpu.matmul %264, %2, %cst_51 {dimension_numbers = #tpu.dot_dimension_numbers<[1], [0], [0], [1], [0, 0, 1, 1], [], []>} : vector<2x8xf32>, vector<8x32xf32>, vector<2x32xf32> -> vector<2x32xf32>
    %288 = arith.addf %286, %287 : vector<2x32xf32>
    %289 = arith.addf %288, %5 : vector<2x32xf32>
    %290 = vector.extract_strided_slice %289 {offsets = [0, 0], sizes = [2, 24], strides = [1, 1]} : vector<2x32xf32> to vector<2x24xf32>
    %291 = arith.negf %290 : vector<2x24xf32>
    %292 = math.exp %291 : vector<2x24xf32>
    %cst_52 = arith.constant 1.000000e+00 : f32
    %293 = vector.broadcast %cst_52 : f32 to vector<2x24xf32>
    %294 = arith.addf %293, %292 : vector<2x24xf32>
    %295 = arith.divf %293, %294 : vector<2x24xf32>
    %296 = vector.extract_strided_slice %289 {offsets = [0, 24], sizes = [2, 8], strides = [1, 1]} : vector<2x32xf32> to vector<2x8xf32>
    %297 = math.tanh %296 : vector<2x8xf32>
    %298 = vector.extract_strided_slice %295 {offsets = [0, 0], sizes = [2, 8], strides = [1, 1]} : vector<2x24xf32> to vector<2x8xf32>
    %299 = vector.extract_strided_slice %295 {offsets = [0, 8], sizes = [2, 8], strides = [1, 1]} : vector<2x24xf32> to vector<2x8xf32>
    %300 = vector.extract_strided_slice %295 {offsets = [0, 16], sizes = [2, 8], strides = [1, 1]} : vector<2x24xf32> to vector<2x8xf32>
    %301 = arith.mulf %299, %262 : vector<2x8xf32>
    %302 = arith.mulf %298, %297 : vector<2x8xf32>
    %303 = arith.addf %301, %302 : vector<2x8xf32>
    %304 = math.tanh %303 : vector<2x8xf32>
    %305 = arith.mulf %300, %304 : vector<2x8xf32>
    %306 = vector.extract_strided_slice %14 {offsets = [0, 7, 0], sizes = [2, 1, 32], strides = [1, 1, 1]} : vector<2x8x32xf32> to vector<2x1x32xf32>
    %307 = vector.shape_cast %306 : vector<2x1x32xf32> to vector<2x32xf32>
    %cst_53 = arith.constant dense<0.000000e+00> : vector<2x32xf32>
    %308 = tpu.matmul %284, %0, %cst_53 {dimension_numbers = #tpu.dot_dimension_numbers<[1], [0], [0], [1], [0, 0, 1, 1], [], []>} : vector<2x8xf32>, vector<8x32xf32>, vector<2x32xf32> -> vector<2x32xf32>
    %309 = arith.addf %307, %308 : vector<2x32xf32>
    %310 = vector.extract_strided_slice %309 {offsets = [0, 0], sizes = [2, 24], strides = [1, 1]} : vector<2x32xf32> to vector<2x24xf32>
    %311 = arith.negf %310 : vector<2x24xf32>
    %312 = math.exp %311 : vector<2x24xf32>
    %cst_54 = arith.constant 1.000000e+00 : f32
    %313 = vector.broadcast %cst_54 : f32 to vector<2x24xf32>
    %314 = arith.addf %313, %312 : vector<2x24xf32>
    %315 = arith.divf %313, %314 : vector<2x24xf32>
    %316 = vector.extract_strided_slice %309 {offsets = [0, 24], sizes = [2, 8], strides = [1, 1]} : vector<2x32xf32> to vector<2x8xf32>
    %317 = math.tanh %316 : vector<2x8xf32>
    %318 = vector.extract_strided_slice %315 {offsets = [0, 0], sizes = [2, 8], strides = [1, 1]} : vector<2x24xf32> to vector<2x8xf32>
    %319 = vector.extract_strided_slice %315 {offsets = [0, 8], sizes = [2, 8], strides = [1, 1]} : vector<2x24xf32> to vector<2x8xf32>
    %320 = vector.extract_strided_slice %315 {offsets = [0, 16], sizes = [2, 8], strides = [1, 1]} : vector<2x24xf32> to vector<2x8xf32>
    %321 = arith.mulf %319, %282 : vector<2x8xf32>
    %322 = arith.mulf %318, %317 : vector<2x8xf32>
    %323 = arith.addf %321, %322 : vector<2x8xf32>
    %324 = math.tanh %323 : vector<2x8xf32>
    %325 = arith.mulf %320, %324 : vector<2x8xf32>
    %326 = math.tanh %325 : vector<2x8xf32>
    %cst_55 = arith.constant dense<0.000000e+00> : vector<2x32xf32>
    %327 = tpu.matmul %326, %1, %cst_55 {dimension_numbers = #tpu.dot_dimension_numbers<[1], [0], [0], [1], [0, 0, 1, 1], [], []>} : vector<2x8xf32>, vector<8x32xf32>, vector<2x32xf32> -> vector<2x32xf32>
    %cst_56 = arith.constant dense<0.000000e+00> : vector<2x32xf32>
    %328 = tpu.matmul %305, %2, %cst_56 {dimension_numbers = #tpu.dot_dimension_numbers<[1], [0], [0], [1], [0, 0, 1, 1], [], []>} : vector<2x8xf32>, vector<8x32xf32>, vector<2x32xf32> -> vector<2x32xf32>
    %329 = arith.addf %327, %328 : vector<2x32xf32>
    %330 = arith.addf %329, %5 : vector<2x32xf32>
    %331 = vector.extract_strided_slice %330 {offsets = [0, 0], sizes = [2, 24], strides = [1, 1]} : vector<2x32xf32> to vector<2x24xf32>
    %332 = arith.negf %331 : vector<2x24xf32>
    %333 = math.exp %332 : vector<2x24xf32>
    %cst_57 = arith.constant 1.000000e+00 : f32
    %334 = vector.broadcast %cst_57 : f32 to vector<2x24xf32>
    %335 = arith.addf %334, %333 : vector<2x24xf32>
    %336 = arith.divf %334, %335 : vector<2x24xf32>
    %337 = vector.extract_strided_slice %330 {offsets = [0, 24], sizes = [2, 8], strides = [1, 1]} : vector<2x32xf32> to vector<2x8xf32>
    %338 = math.tanh %337 : vector<2x8xf32>
    %339 = vector.extract_strided_slice %336 {offsets = [0, 0], sizes = [2, 8], strides = [1, 1]} : vector<2x24xf32> to vector<2x8xf32>
    %340 = vector.extract_strided_slice %336 {offsets = [0, 8], sizes = [2, 8], strides = [1, 1]} : vector<2x24xf32> to vector<2x8xf32>
    %341 = vector.extract_strided_slice %336 {offsets = [0, 16], sizes = [2, 8], strides = [1, 1]} : vector<2x24xf32> to vector<2x8xf32>
    %342 = arith.mulf %340, %303 : vector<2x8xf32>
    %343 = arith.mulf %339, %338 : vector<2x8xf32>
    %344 = arith.addf %342, %343 : vector<2x8xf32>
    %345 = math.tanh %344 : vector<2x8xf32>
    %346 = arith.mulf %341, %345 : vector<2x8xf32>
    %347 = math.tanh %346 : vector<2x8xf32>
    %c0_58 = arith.constant 0 : index
    %c0_59 = arith.constant 0 : index
    %348 = vector.load %arg7[%c0_58, %c0_59] : memref<8x1xf32, #tpu.memory_space<vmem>>, vector<8x1xf32>
    %cst_60 = arith.constant dense<0.000000e+00> : vector<2x1xf32>
    %349 = tpu.matmul %347, %348, %cst_60 {dimension_numbers = #tpu.dot_dimension_numbers<[1], [0], [0], [1], [0, 0, 1, 1], [], []>} : vector<2x8xf32>, vector<8x1xf32>, vector<2x1xf32> -> vector<2x1xf32>
    %c0_61 = arith.constant 0 : index
    %c0_62 = arith.constant 0 : index
    %350 = vector.load %arg8[%c0_61, %c0_62] : memref<1x1xf32, #tpu.memory_space<vmem>>, vector<1x1xf32>
    %351 = vector.broadcast %350 : vector<1x1xf32> to vector<2x1xf32>
    %352 = arith.addf %349, %351 : vector<2x1xf32>
    %353 = arith.negf %352 : vector<2x1xf32>
    %354 = math.exp %353 : vector<2x1xf32>
    %cst_63 = arith.constant 1.000000e+00 : f32
    %355 = vector.broadcast %cst_63 : f32 to vector<2x1xf32>
    %356 = arith.addf %355, %354 : vector<2x1xf32>
    %357 = arith.divf %355, %356 : vector<2x1xf32>
    %c0_64 = arith.constant 0 : index
    %c0_65 = arith.constant 0 : index
    %358 = vector.load %arg9[%c0_64, %c0_65] : memref<2x1xf32, #tpu.memory_space<vmem>>, vector<2x1xf32>
    tpu.vector_store %arg9[%c0_64, %c0_65], %357 {strides = array<i32>} : memref<2x1xf32, #tpu.memory_space<vmem>>, vector<2x1xf32>,
    return
  }
}

</mosaic_0001>

<llo_original>
// kernel: tpu_custom_call.1
$region0: #{tpu_custom_call.1}
  #allocation0 [shape = 'u32[]', space=smem, size = 0x4, offset = 0x4, fixed_abs, tag = 'smem constant byte address 0x4 - core index']
  #allocation1 [shape = 'u32[144,128]{1,0:T(1,128)}', space=vmem, size = 0x12000, scoped, tag = 'internal scratch']
  #allocation2 [shape = 'f32[1,1]{1,0:T(1,128)S(1)}', space=vmem, size = 0x200, scoped, tag = 'scoped memory for tpu_custom_call.1']
  %s0 = inlined_call_operand.vmem [shape: f32[2,8,4], index: 0, kind: input, shape index: {}]
  %s1 = inlined_call_operand.vmem [shape: f32[4,32], index: 1, kind: input, shape index: {}]
  %s2 = inlined_call_operand.vmem [shape: f32[1,32], index: 2, kind: input, shape index: {}]
  %s3 = inlined_call_operand.vmem [shape: f32[8,32], index: 3, kind: input, shape index: {}]
  %s4 = inlined_call_operand.vmem [shape: f32[8,32], index: 4, kind: input, shape index: {}]
  %s5 = inlined_call_operand.vmem [shape: f32[8,32], index: 5, kind: input, shape index: {}]
  %s6 = inlined_call_operand.vmem [shape: f32[1,32], index: 6, kind: input, shape index: {}]
  %s7 = inlined_call_operand.vmem [shape: f32[8,1], index: 7, kind: input, shape index: {}]
  %s8 = inlined_call_operand.<no memory space> [shape: f32[1,1], index: 8, kind: input, shape index: {}]
  %s9 = inlined_call_operand.vmem [shape: f32[2,1], index: 9, kind: output, shape index: {}]
  %s10 = sld [smem:[#allocation0]]
  $region46: #{tpu_custom_call.1} parent=0
    _
  %s12 = ssub.s32 1, %s10
  %s13 = scalar_select 0, %s12, %s10
  %v14 = vstv %s8
  %15 = vst [vmem:[#allocation2] sm:$0x1] %v14
  // Predicated region
  $region2: #{tpu_custom_call.1} parent=0 // pred_check
    _
  $region3: #{tpu_custom_call.1} parent=0 // pred_check_branch
    %17 = sbr.rel (0) target = $region5
  $region4: #{tpu_custom_call.1} parent=0 // pred_region
    _
  $region5: #{tpu_custom_call.1} parent=0 // pred_fallthru
    _
  // Predicated region
  $region6: #{tpu_custom_call.1} parent=0 // pred_check
    _
  $region7: #{tpu_custom_call.1} parent=0 // pred_check_branch
    %19 = sbr.rel (0) target = $region9
  $region8: #{tpu_custom_call.1} parent=0 // pred_region
    _
  $region9: #{tpu_custom_call.1} parent=0 // pred_fallthru
    _
  // Predicated region
  $region10: #{tpu_custom_call.1} parent=0 // pred_check
    _
  $region11: #{tpu_custom_call.1} parent=0 // pred_check_branch
    %21 = sbr.rel (0) target = $region13
  $region12: #{tpu_custom_call.1} parent=0 // pred_region
    _
  $region13: #{tpu_custom_call.1} parent=0 // pred_fallthru
    _
  // Predicated region
  $region14: #{tpu_custom_call.1} parent=0 // pred_check
    _
  $region15: #{tpu_custom_call.1} parent=0 // pred_check_branch
    %23 = sbr.rel (0) target = $region17
  $region16: #{tpu_custom_call.1} parent=0 // pred_region
    _
  $region17: #{tpu_custom_call.1} parent=0 // pred_fallthru
    _
  // Predicated region
  $region18: #{tpu_custom_call.1} parent=0 // pred_check
    _
  $region19: #{tpu_custom_call.1} parent=0 // pred_check_branch
    %25 = sbr.rel (0) target = $region21
  $region20: #{tpu_custom_call.1} parent=0 // pred_region
    _
  $region21: #{tpu_custom_call.1} parent=0 // pred_fallthru
    _
  // Predicated region
  $region22: #{tpu_custom_call.1} parent=0 // pred_check
    _
  $region23: #{tpu_custom_call.1} parent=0 // pred_check_branch
    %27 = sbr.rel (0) target = $region25
  $region24: #{tpu_custom_call.1} parent=0 // pred_region
    _
  $region25: #{tpu_custom_call.1} parent=0 // pred_fallthru
    _
  // Predicated region
  $region26: #{tpu_custom_call.1} parent=0 // pred_check
    _
  $region27: #{tpu_custom_call.1} parent=0 // pred_check_branch
    %29 = sbr.rel (0) target = $region29
  $region28: #{tpu_custom_call.1} parent=0 // pred_region
    _
  $region29: #{tpu_custom_call.1} parent=0 // pred_fallthru
    _
  // Predicated region
  $region30: #{tpu_custom_call.1} parent=0 // pred_check
    _
  $region31: #{tpu_custom_call.1} parent=0 // pred_check_branch
    %31 = sbr.rel (0) target = $region33
  $region32: #{tpu_custom_call.1} parent=0 // pred_region
    _
  $region33: #{tpu_custom_call.1} parent=0 // pred_fallthru
    _
  // Predicated region
  $region34: #{tpu_custom_call.1} parent=0 // pred_check
    _
  $region35: #{tpu_custom_call.1} parent=0 // pred_check_branch
    %33 = sbr.rel (0) target = $region37
  $region36: #{tpu_custom_call.1} parent=0 // pred_region
    _
  $region37: #{tpu_custom_call.1} parent=0 // pred_fallthru
    _
  %v34 = vld [vmem:[%s3] sm:$0xff]
  %v35 = vld [vmem:[%s4] sm:$0xff]
  %v36 = vld [vmem:[%s5] sm:$0xff]
  %v37 = vld [vmem:[%s6] sm:$0x1]
  %v39 = vlaneseq
  %v40 = vshrl.u32 %v39, 7
  %v41 = vsub.s32 0, %v40
  %v42 = vrot.slane %v37, %v41
  %v44 = vld [vmem:[%s0] sm:$0xff]
  %v45 = vld [vmem:[%s0 + $0x8] sm:$0xff]
  %v46 = vld [vmem:[%s1] sm:$0xf]
  %v47 = vld [vmem:[%s2] sm:$0x1]
  %v49 = vlaneseq
  %v50 = vshrl.u32 %v49, 7
  %v51 = vsub.s32 0, %v50
  %v52 = vrot.slane %v47, %v51
  %vm54 = vcmask 31744
  %v56 = vsel %vm54, %v44, 0
  %v59 = vsel %vm54, %v45, 0
  %vm61 = vcmask 1043456
  %v63 = vsel %vm61, %v46, 0
  %65 = vmatprep.subr.mxu0 0.0
  %66 = vmatpush1.msra.mxu0 %v63
  %67 = vmatprep.subr.mxu0 0.0
  %68 = vmatpush1.msra.mxu0 0.0
  %69 = vmatprep.subr.mxu0 0.0
  %70 = vmatpush1.msra.mxu0 0.0
  %71 = vmatprep.subr.mxu0 0.0
  %72 = vmatpush1.msra.mxu0 0.0
  %73 = vmatprep.subr.mxu0 0.0
  %74 = vmatpush1.msra.mxu0 0.0
  %75 = vmatprep.subr.mxu0 0.0
  %76 = vmatpush1.msra.mxu0 0.0
  %77 = vmatprep.subr.mxu0 0.0
  %78 = vmatpush1.msra.mxu0 0.0
  %79 = vmatprep.subr.mxu0 0.0
  %80 = vmatpush1.msra.mxu0 0.0
  %81 = vmatprep.subr.mxu0 0.0
  %82 = vmatpush1.msra.mxu0 0.0
  %83 = vmatprep.subr.mxu0 0.0
  %84 = vmatpush1.msra.mxu0 0.0
  %85 = vmatprep.subr.mxu0 0.0
  %86 = vmatpush1.msra.mxu0 0.0
  %87 = vmatprep.subr.mxu0 0.0
  %88 = vmatpush1.msra.mxu0 0.0
  %89 = vmatprep.subr.mxu0 0.0
  %90 = vmatpush1.msra.mxu0 0.0
  %91 = vmatprep.subr.mxu0 0.0
  %92 = vmatpush1.msra.mxu0 0.0
  %93 = vmatprep.subr.mxu0 0.0
  %94 = vmatpush1.msra.mxu0 0.0
  %95 = vmatprep.subr.mxu0 0.0
  %96 = vmatpush1.msra.mxu0 0.0
  %97 = vmatprep.subr.mxu0 0.0
  %98 = vmatpush1.msra.mxu0 0.0
  %99 = vmatprep.subr.mxu0 0.0
  %100 = vmatpush1.msra.mxu0 0.0
  %101 = vmatprep.subr.mxu0 0.0
  %102 = vmatpush1.msra.mxu0 0.0
  %103 = vmatprep.subr.mxu0 0.0
  %104 = vmatpush1.msra.mxu0 0.0
  %105 = vmatprep.subr.mxu0 0.0
  %106 = vmatpush1.msra.mxu0 0.0
  %107 = vmatprep.subr.mxu0 0.0
  %108 = vmatpush1.msra.mxu0 0.0
  %109 = vmatprep.subr.mxu0 0.0
  %110 = vmatpush1.msra.mxu0 0.0
  %111 = vmatprep.subr.mxu0 0.0
  %112 = vmatpush1.msra.mxu0 0.0
  %113 = vmatprep.subr.mxu0 0.0
  %114 = vmatpush1.msra.mxu0 0.0
  %115 = vmatprep.subr.mxu0 0.0
  %116 = vmatpush1.msra.mxu0 0.0
  %117 = vmatprep.subr.mxu0 0.0
  %118 = vmatpush1.msra.mxu0 0.0
  %119 = vmatprep.subr.mxu0 0.0
  %120 = vmatpush1.msra.mxu0 0.0
  %121 = vmatprep.subr.mxu0 0.0
  %122 = vmatpush1.msra.mxu0 0.0
  %123 = vmatprep.subr.mxu0 0.0
  %124 = vmatpush1.msra.mxu0 0.0
  %125 = vmatprep.subr.mxu0 0.0
  %126 = vmatpush1.msra.mxu0 0.0
  %127 = vmatprep.subr.mxu0 0.0
  %128 = vmatpush1.msra.mxu0 0.0
  %129 = vmatprep.mubr.f32.mxu0 0.0
  %130 = vmatmul.mubr.f32.gmra.mrb[0].mxu0 %v56
  %v131 = vpop.f32.mrb[0].mxu0
  %v132 = vadd.f32 %v52, %v131
  %v133 = vpop.f32.mrb[0].mxu0
  %134 = vmatprep.mubr.f32.mxu0 0.0
  %135 = vmatmul.mubr.f32.gmra.mrb[0].mxu0 %v59
  %v136 = vpop.f32.mrb[0].mxu0
  %v137 = vadd.f32 %v52, %v136
  %v138 = vpop.f32.mrb[0].mxu0
  %139 = vdwg.mxu0
  %vm140 = vcmask 64512
  %v142 = vsel %vm140, 0.0, 0
  %144 = vmatprep.subr.mxu0 0.0
  %145 = vmatpush1.msra.mxu0 %v34
  %146 = vmatprep.subr.mxu0 0.0
  %147 = vmatpush1.msra.mxu0 0.0
  %148 = vmatprep.subr.mxu0 0.0
  %149 = vmatpush1.msra.mxu0 0.0
  %150 = vmatprep.subr.mxu0 0.0
  %151 = vmatpush1.msra.mxu0 0.0
  %152 = vmatprep.subr.mxu0 0.0
  %153 = vmatpush1.msra.mxu0 0.0
  %154 = vmatprep.subr.mxu0 0.0
  %155 = vmatpush1.msra.mxu0 0.0
  %156 = vmatprep.subr.mxu0 0.0
  %157 = vmatpush1.msra.mxu0 0.0
  %158 = vmatprep.subr.mxu0 0.0
  %159 = vmatpush1.msra.mxu0 0.0
  %160 = vmatprep.subr.mxu0 0.0
  %161 = vmatpush1.msra.mxu0 0.0
  %162 = vmatprep.subr.mxu0 0.0
  %163 = vmatpush1.msra.mxu0 0.0
  %164 = vmatprep.subr.mxu0 0.0
  %165 = vmatpush1.msra.mxu0 0.0
  %166 = vmatprep.subr.mxu0 0.0
  %167 = vmatpush1.msra.mxu0 0.0
  %168 = vmatprep.subr.mxu0 0.0
  %169 = vmatpush1.msra.mxu0 0.0
  %170 = vmatprep.subr.mxu0 0.0
  %171 = vmatpush1.msra.mxu0 0.0
  %172 = vmatprep.subr.mxu0 0.0
  %173 = vmatpush1.msra.mxu0 0.0
  %174 = vmatprep.subr.mxu0 0.0
  %175 = vmatpush1.msra.mxu0 0.0
  %176 = vmatprep.subr.mxu0 0.0
  %177 = vmatpush1.msra.mxu0 0.0
  %178 = vmatprep.subr.mxu0 0.0
  %179 = vmatpush1.msra.mxu0 0.0
  %180 = vmatprep.subr.mxu0 0.0
  %181 = vmatpush1.msra.mxu0 0.0
  %182 = vmatprep.subr.mxu0 0.0
  %183 = vmatpush1.msra.mxu0 0.0
  %184 = vmatprep.subr.mxu0 0.0
  %185 = vmatpush1.msra.mxu0 0.0
  %186 = vmatprep.subr.mxu0 0.0
  %187 = vmatpush1.msra.mxu0 0.0
  %188 = vmatprep.subr.mxu0 0.0
  %189 = vmatpush1.msra.mxu0 0.0
  %190 = vmatprep.subr.mxu0 0.0
  %191 = vmatpush1.msra.mxu0 0.0
  %192 = vmatprep.subr.mxu0 0.0
  %193 = vmatpush1.msra.mxu0 0.0
  %194 = vmatprep.subr.mxu0 0.0
  %195 = vmatpush1.msra.mxu0 0.0
  %196 = vmatprep.subr.mxu0 0.0
  %197 = vmatpush1.msra.mxu0 0.0
  %198 = vmatprep.subr.mxu0 0.0
  %199 = vmatpush1.msra.mxu0 0.0
  %200 = vmatprep.subr.mxu0 0.0
  %201 = vmatpush1.msra.mxu0 0.0
  %202 = vmatprep.subr.mxu0 0.0
  %203 = vmatpush1.msra.mxu0 0.0
  %204 = vmatprep.subr.mxu0 0.0
  %205 = vmatpush1.msra.mxu0 0.0
  %206 = vmatprep.subr.mxu0 0.0
  %207 = vmatpush1.msra.mxu0 0.0
  %208 = vmatprep.mubr.f32.mxu0 0.0
  %209 = vmatmul.mubr.f32.gmra.mrb[0].mxu0 %v142
  %v210 = vpop.f32.mrb[0].mxu0
  %v211 = vadd.f32 0.0, %v210
  %v212 = vpop.f32.mrb[0].mxu0
  %213 = vdwg.mxu0
  %v215 = vrot.slane %v211, 1
  %v218 = vadd.f32 %v132, %v211
  %v219 = vadd.f32 %v137, %v215
  %v220 = vxor.u32 %v218, 2147483648
  %v221 = vxor.u32 %v219, 2147483648
  %v222 = vmul.f32 %v220, 1.442695
  %v223 = vpow.pop %v222
  %v224 = vmul.f32 %v221, 1.442695
  %v225 = vpow.pop %v224
  %v226 = vadd.f32 %v223, 1.0
  %v227 = vadd.f32 %v225, 1.0
  %v228 = vrcp.pop %v226
  %v229 = vmul.f32 1.0, %v228
  %v230 = vrcp.pop %v227
  %v231 = vmul.f32 1.0, %v230
  %v232 = vtanh.pop %v218
  %v233 = vtanh.pop %v219
  %v234 = vmul.f32 %v229, 0.0
  %v235 = vmul.f32 %v231, 0.0
  %238 = vrot.lane.b32.xlu0 %v232, 104
  %v239 = vpop.permute.xlu0 %238
  %240 = vrot.lane.b32.xlu0 %v233, 104
  %v241 = vpop.permute.xlu0 %240
  %v244 = vmul.f32 %v229, %v239
  %v245 = vmul.f32 %v231, %v241
  %248 = vrot.lane.b32.xlu0 %v244, 8
  %v249 = vpop.permute.xlu0 %248
  %250 = vrot.lane.b32.xlu0 %v245, 8
  %v251 = vpop.permute.xlu0 %250
  %v254 = vadd.f32 %v234, %v249
  %v255 = vadd.f32 %v235, %v251
  %v256 = vtanh.pop %v254
  %v257 = vtanh.pop %v255
  %260 = vrot.lane.b32.xlu0 %v256, 8
  %v261 = vpop.permute.xlu0 %260
  %262 = vrot.lane.b32.xlu0 %v257, 8
  %v263 = vpop.permute.xlu0 %262
  %v266 = vmul.f32 %v229, %v261
  %v267 = vmul.f32 %v231, %v263
  %v268 = vtanh.pop %v266
  %v269 = vtanh.pop %v267
  %270 = vmatprep.subr.mxu0 0.0
  %271 = vmatpush1.msra.mxu0 %v36
  %272 = vmatprep.subr.mxu0 0.0
  %273 = vmatpush1.msra.mxu0 0.0
  %274 = vmatprep.subr.mxu0 0.0
  %275 = vmatpush1.msra.mxu0 0.0
  %276 = vmatprep.subr.mxu0 0.0
  %277 = vmatpush1.msra.mxu0 0.0
  %278 = vmatprep.subr.mxu0 0.0
  %279 = vmatpush1.msra.mxu0 0.0
  %280 = vmatprep.subr.mxu0 0.0
  %281 = vmatpush1.msra.mxu0 0.0
  %282 = vmatprep.subr.mxu0 0.0
  %283 = vmatpush1.msra.mxu0 0.0
  %284 = vmatprep.subr.mxu0 0.0
  %285 = vmatpush1.msra.mxu0 0.0
  %286 = vmatprep.subr.mxu0 0.0
  %287 = vmatpush1.msra.mxu0 0.0
  %288 = vmatprep.subr.mxu0 0.0
  %289 = vmatpush1.msra.mxu0 0.0
  %290 = vmatprep.subr.mxu0 0.0
  %291 = vmatpush1.msra.mxu0 0.0
  %292 = vmatprep.subr.mxu0 0.0
  %293 = vmatpush1.msra.mxu0 0.0
  %294 = vmatprep.subr.mxu0 0.0
  %295 = vmatpush1.msra.mxu0 0.0
  %296 = vmatprep.subr.mxu0 0.0
  %297 = vmatpush1.msra.mxu0 0.0
  %298 = vmatprep.subr.mxu0 0.0
  %299 = vmatpush1.msra.mxu0 0.0
  %300 = vmatprep.subr.mxu0 0.0
  %301 = vmatpush1.msra.mxu0 0.0
  %302 = vmatprep.subr.mxu0 0.0
  %303 = vmatpush1.msra.mxu0 0.0
  %304 = vmatprep.subr.mxu0 0.0
  %305 = vmatpush1.msra.mxu0 0.0
  %306 = vmatprep.subr.mxu0 0.0
  %307 = vmatpush1.msra.mxu0 0.0
  %308 = vmatprep.subr.mxu0 0.0
  %309 = vmatpush1.msra.mxu0 0.0
  %310 = vmatprep.subr.mxu0 0.0
  %311 = vmatpush1.msra.mxu0 0.0
  %312 = vmatprep.subr.mxu0 0.0
  %313 = vmatpush1.msra.mxu0 0.0
  %314 = vmatprep.subr.mxu0 0.0
  %315 = vmatpush1.msra.mxu0 0.0
  %316 = vmatprep.subr.mxu0 0.0
  %317 = vmatpush1.msra.mxu0 0.0
  %318 = vmatprep.subr.mxu0 0.0
  %319 = vmatpush1.msra.mxu0 0.0
  %320 = vmatprep.subr.mxu0 0.0
  %321 = vmatpush1.msra.mxu0 0.0
  %322 = vmatprep.subr.mxu0 0.0
  %323 = vmatpush1.msra.mxu0 0.0
  %324 = vmatprep.subr.mxu0 0.0
  %325 = vmatpush1.msra.mxu0 0.0
  %326 = vmatprep.subr.mxu0 0.0
  %327 = vmatpush1.msra.mxu0 0.0
  %328 = vmatprep.subr.mxu0 0.0
  %329 = vmatpush1.msra.mxu0 0.0
  %330 = vmatprep.subr.mxu0 0.0
  %331 = vmatpush1.msra.mxu0 0.0
  %332 = vmatprep.subr.mxu0 0.0
  %333 = vmatpush1.msra.mxu0 0.0
  %334 = vmatprep.mubr.f32.mxu0 0.0
  %335 = vmatmul.mubr.f32.gmra.mrb[0].mxu0 %v142
  %v336 = vpop.f32.mrb[0].mxu0
  %v337 = vadd.f32 0.0, %v336
  %v338 = vpop.f32.mrb[0].mxu0
  %339 = vdwg.mxu0
  %v342 = vrot.slane %v269, 7
  %vm343 = vcmask 1041409
  %v344 = vsel %vm343, %v342, %v268
  %345 = vrot.lane.b32.xlu0 %v344, 112
  %v346 = vpop.permute.xlu0 %345
  %v347 = vsel %vm140, %v346, 0
  %349 = vmatprep.subr.mxu0 0.0
  %350 = vmatpush1.msra.mxu0 %v35
  %351 = vmatprep.subr.mxu0 0.0
  %352 = vmatpush1.msra.mxu0 0.0
  %353 = vmatprep.subr.mxu0 0.0
  %354 = vmatpush1.msra.mxu0 0.0
  %355 = vmatprep.subr.mxu0 0.0
  %356 = vmatpush1.msra.mxu0 0.0
  %357 = vmatprep.subr.mxu0 0.0
  %358 = vmatpush1.msra.mxu0 0.0
  %359 = vmatprep.subr.mxu0 0.0
  %360 = vmatpush1.msra.mxu0 0.0
  %361 = vmatprep.subr.mxu0 0.0
  %362 = vmatpush1.msra.mxu0 0.0
  %363 = vmatprep.subr.mxu0 0.0
  %364 = vmatpush1.msra.mxu0 0.0
  %365 = vmatprep.subr.mxu0 0.0
  %366 = vmatpush1.msra.mxu0 0.0
  %367 = vmatprep.subr.mxu0 0.0
  %368 = vmatpush1.msra.mxu0 0.0
  %369 = vmatprep.subr.mxu0 0.0
  %370 = vmatpush1.msra.mxu0 0.0
  %371 = vmatprep.subr.mxu0 0.0
  %372 = vmatpush1.msra.mxu0 0.0
  %373 = vmatprep.subr.mxu0 0.0
  %374 = vmatpush1.msra.mxu0 0.0
  %375 = vmatprep.subr.mxu0 0.0
  %376 = vmatpush1.msra.mxu0 0.0
  %377 = vmatprep.subr.mxu0 0.0
  %378 = vmatpush1.msra.mxu0 0.0
  %379 = vmatprep.subr.mxu0 0.0
  %380 = vmatpush1.msra.mxu0 0.0
  %381 = vmatprep.subr.mxu0 0.0
  %382 = vmatpush1.msra.mxu0 0.0
  %383 = vmatprep.subr.mxu0 0.0
  %384 = vmatpush1.msra.mxu0 0.0
  %385 = vmatprep.subr.mxu0 0.0
  %386 = vmatpush1.msra.mxu0 0.0
  %387 = vmatprep.subr.mxu0 0.0
  %388 = vmatpush1.msra.mxu0 0.0
  %389 = vmatprep.subr.mxu0 0.0
  %390 = vmatpush1.msra.mxu0 0.0
  %391 = vmatprep.subr.mxu0 0.0
  %392 = vmatpush1.msra.mxu0 0.0
  %393 = vmatprep.subr.mxu0 0.0
  %394 = vmatpush1.msra.mxu0 0.0
  %395 = vmatprep.subr.mxu0 0.0
  %396 = vmatpush1.msra.mxu0 0.0
  %397 = vmatprep.subr.mxu0 0.0
  %398 = vmatpush1.msra.mxu0 0.0
  %399 = vmatprep.subr.mxu0 0.0
  %400 = vmatpush1.msra.mxu0 0.0
  %401 = vmatprep.subr.mxu0 0.0
  %402 = vmatpush1.msra.mxu0 0.0
  %403 = vmatprep.subr.mxu0 0.0
  %404 = vmatpush1.msra.mxu0 0.0
  %405 = vmatprep.subr.mxu0 0.0
  %406 = vmatpush1.msra.mxu0 0.0
  %407 = vmatprep.subr.mxu0 0.0
  %408 = vmatpush1.msra.mxu0 0.0
  %409 = vmatprep.subr.mxu0 0.0
  %410 = vmatpush1.msra.mxu0 0.0
  %411 = vmatprep.subr.mxu0 0.0
  %412 = vmatpush1.msra.mxu0 0.0
  %413 = vmatprep.mubr.f32.mxu0 0.0
  %414 = vmatmul.mubr.f32.gmra.mrb[0].mxu0 %v347
  %v415 = vpop.f32.mrb[0].mxu0
  %v416 = vadd.f32 %v337, %v415
  %v417 = vpop.f32.mrb[0].mxu0
  %418 = vdwg.mxu0
  %v419 = vadd.f32 %v416, %v42
  %v420 = vxor.u32 %v419, 2147483648
  %v421 = vmul.f32 %v420, 1.442695
  %v422 = vpow.pop %v421
  %v423 = vadd.f32 %v422, 1.0
  %v424 = vrcp.pop %v423
  %v425 = vmul.f32 1.0, %v424
  %v426 = vtanh.pop %v419
  %v427 = vmul.f32 %v425, 0.0
  %429 = vrot.lane.b32.xlu0 %v426, 104
  %v430 = vpop.permute.xlu0 %429
  %v432 = vmul.f32 %v425, %v430
  %434 = vrot.lane.b32.xlu0 %v432, 8
  %v435 = vpop.permute.xlu0 %434
  %v437 = vadd.f32 %v427, %v435
  %v438 = vtanh.pop %v437
  %440 = vrot.lane.b32.xlu0 %v438, 8
  %v441 = vpop.permute.xlu0 %440
  %v443 = vmul.f32 %v425, %v441
  %v446 = vrot.slane %v267, 7
  %v447 = vsel %vm343, %v446, %v266
  %448 = vrot.lane.b32.xlu0 %v447, 112
  %v449 = vpop.permute.xlu0 %448
  %v450 = vsel %vm140, %v449, 0
  %452 = vmatprep.subr.mxu0 0.0
  %453 = vmatpush1.msra.mxu0 %v34
  %454 = vmatprep.subr.mxu0 0.0
  %455 = vmatpush1.msra.mxu0 0.0
  %456 = vmatprep.subr.mxu0 0.0
  %457 = vmatpush1.msra.mxu0 0.0
  %458 = vmatprep.subr.mxu0 0.0
  %459 = vmatpush1.msra.mxu0 0.0
  %460 = vmatprep.subr.mxu0 0.0
  %461 = vmatpush1.msra.mxu0 0.0
  %462 = vmatprep.subr.mxu0 0.0
  %463 = vmatpush1.msra.mxu0 0.0
  %464 = vmatprep.subr.mxu0 0.0
  %465 = vmatpush1.msra.mxu0 0.0
  %466 = vmatprep.subr.mxu0 0.0
  %467 = vmatpush1.msra.mxu0 0.0
  %468 = vmatprep.subr.mxu0 0.0
  %469 = vmatpush1.msra.mxu0 0.0
  %470 = vmatprep.subr.mxu0 0.0
  %471 = vmatpush1.msra.mxu0 0.0
  %472 = vmatprep.subr.mxu0 0.0
  %473 = vmatpush1.msra.mxu0 0.0
  %474 = vmatprep.subr.mxu0 0.0
  %475 = vmatpush1.msra.mxu0 0.0
  %476 = vmatprep.subr.mxu0 0.0
  %477 = vmatpush1.msra.mxu0 0.0
  %478 = vmatprep.subr.mxu0 0.0
  %479 = vmatpush1.msra.mxu0 0.0
  %480 = vmatprep.subr.mxu0 0.0
  %481 = vmatpush1.msra.mxu0 0.0
  %482 = vmatprep.subr.mxu0 0.0
  %483 = vmatpush1.msra.mxu0 0.0
  %484 = vmatprep.subr.mxu0 0.0
  %485 = vmatpush1.msra.mxu0 0.0
  %486 = vmatprep.subr.mxu0 0.0
  %487 = vmatpush1.msra.mxu0 0.0
  %488 = vmatprep.subr.mxu0 0.0
  %489 = vmatpush1.msra.mxu0 0.0
  %490 = vmatprep.subr.mxu0 0.0
  %491 = vmatpush1.msra.mxu0 0.0
  %492 = vmatprep.subr.mxu0 0.0
  %493 = vmatpush1.msra.mxu0 0.0
  %494 = vmatprep.subr.mxu0 0.0
  %495 = vmatpush1.msra.mxu0 0.0
  %496 = vmatprep.subr.mxu0 0.0
  %497 = vmatpush1.msra.mxu0 0.0
  %498 = vmatprep.subr.mxu0 0.0
  %499 = vmatpush1.msra.mxu0 0.0
  %500 = vmatprep.subr.mxu0 0.0
  %501 = vmatpush1.msra.mxu0 0.0
  %502 = vmatprep.subr.mxu0 0.0
  %503 = vmatpush1.msra.mxu0 0.0
  %504 = vmatprep.subr.mxu0 0.0
  %505 = vmatpush1.msra.mxu0 0.0
  %506 = vmatprep.subr.mxu0 0.0
  %507 = vmatpush1.msra.mxu0 0.0
  %508 = vmatprep.subr.mxu0 0.0
  %509 = vmatpush1.msra.mxu0 0.0
  %510 = vmatprep.subr.mxu0 0.0
  %511 = vmatpush1.msra.mxu0 0.0
  %512 = vmatprep.subr.mxu0 0.0
  %513 = vmatpush1.msra.mxu0 0.0
  %514 = vmatprep.subr.mxu0 0.0
  %515 = vmatpush1.msra.mxu0 0.0
  %516 = vmatprep.mubr.f32.mxu0 0.0
  %517 = vmatmul.mubr.f32.gmra.mrb[0].mxu0 %v450
  %v518 = vpop.f32.mrb[0].mxu0
  %v519 = vadd.f32 0.0, %v518
  %v520 = vpop.f32.mrb[0].mxu0
  %521 = vdwg.mxu0
  %v523 = vrot.slane %v519, 7
  %v526 = vadd.f32 %v132, %v523
  %v527 = vadd.f32 %v137, %v519
  %v528 = vxor.u32 %v526, 2147483648
  %v529 = vxor.u32 %v527, 2147483648
  %v530 = vmul.f32 %v528, 1.442695
  %v531 = vpow.pop %v530
  %v532 = vmul.f32 %v529, 1.442695
  %v533 = vpow.pop %v532
  %v534 = vadd.f32 %v531, 1.0
  %v535 = vadd.f32 %v533, 1.0
  %v536 = vrcp.pop %v534
  %v537 = vmul.f32 1.0, %v536
  %v538 = vrcp.pop %v535
  %v539 = vmul.f32 1.0, %v538
  %v540 = vtanh.pop %v526
  %v541 = vtanh.pop %v527
  %v544 = vrot.slane %v254, 7
  %v545 = vrot.slane %v255, 7
  %v548 = vmul.f32 %v537, %v544
  %v549 = vmul.f32 %v539, %v545
  %552 = vrot.lane.b32.xlu0 %v540, 104
  %v553 = vpop.permute.xlu0 %552
  %554 = vrot.lane.b32.xlu0 %v541, 104
  %v555 = vpop.permute.xlu0 %554
  %v558 = vmul.f32 %v537, %v553
  %v559 = vmul.f32 %v539, %v555
  %562 = vrot.lane.b32.xlu0 %v558, 8
  %v563 = vpop.permute.xlu0 %562
  %564 = vrot.lane.b32.xlu0 %v559, 8
  %v565 = vpop.permute.xlu0 %564
  %v568 = vadd.f32 %v548, %v563
  %v569 = vadd.f32 %v549, %v565
  %v570 = vtanh.pop %v568
  %v571 = vtanh.pop %v569
  %574 = vrot.lane.b32.xlu0 %v570, 8
  %v575 = vpop.permute.xlu0 %574
  %576 = vrot.lane.b32.xlu0 %v571, 8
  %v577 = vpop.permute.xlu0 %576
  %v580 = vmul.f32 %v537, %v575
  %v581 = vmul.f32 %v539, %v577
  %v582 = vtanh.pop %v580
  %v583 = vtanh.pop %v581
  %585 = vrot.lane.b32.xlu0 %v443, 112
  %v586 = vpop.permute.xlu0 %585
  %v587 = vsel %vm140, %v586, 0
  %589 = vmatprep.subr.mxu0 0.0
  %590 = vmatpush1.msra.mxu0 %v36
  %591 = vmatprep.subr.mxu0 0.0
  %592 = vmatpush1.msra.mxu0 0.0
  %593 = vmatprep.subr.mxu0 0.0
  %594 = vmatpush1.msra.mxu0 0.0
  %595 = vmatprep.subr.mxu0 0.0
  %596 = vmatpush1.msra.mxu0 0.0
  %597 = vmatprep.subr.mxu0 0.0
  %598 = vmatpush1.msra.mxu0 0.0
  %599 = vmatprep.subr.mxu0 0.0
  %600 = vmatpush1.msra.mxu0 0.0
  %601 = vmatprep.subr.mxu0 0.0
  %602 = vmatpush1.msra.mxu0 0.0
  %603 = vmatprep.subr.mxu0 0.0
  %604 = vmatpush1.msra.mxu0 0.0
  %605 = vmatprep.subr.mxu0 0.0
  %606 = vmatpush1.msra.mxu0 0.0
  %607 = vmatprep.subr.mxu0 0.0
  %608 = vmatpush1.msra.mxu0 0.0
  %609 = vmatprep.subr.mxu0 0.0
  %610 = vmatpush1.msra.mxu0 0.0
  %611 = vmatprep.subr.mxu0 0.0
  %612 = vmatpush1.msra.mxu0 0.0
  %613 = vmatprep.subr.mxu0 0.0
  %614 = vmatpush1.msra.mxu0 0.0
  %615 = vmatprep.subr.mxu0 0.0
  %616 = vmatpush1.msra.mxu0 0.0
  %617 = vmatprep.subr.mxu0 0.0
  %618 = vmatpush1.msra.mxu0 0.0
  %619 = vmatprep.subr.mxu0 0.0
  %620 = vmatpush1.msra.mxu0 0.0
  %621 = vmatprep.subr.mxu0 0.0
  %622 = vmatpush1.msra.mxu0 0.0
  %623 = vmatprep.subr.mxu0 0.0
  %624 = vmatpush1.msra.mxu0 0.0
  %625 = vmatprep.subr.mxu0 0.0
  %626 = vmatpush1.msra.mxu0 0.0
  %627 = vmatprep.subr.mxu0 0.0
  %628 = vmatpush1.msra.mxu0 0.0
  %629 = vmatprep.subr.mxu0 0.0
  %630 = vmatpush1.msra.mxu0 0.0
  %631 = vmatprep.subr.mxu0 0.0
  %632 = vmatpush1.msra.mxu0 0.0
  %633 = vmatprep.subr.mxu0 0.0
  %634 = vmatpush1.msra.mxu0 0.0
  %635 = vmatprep.subr.mxu0 0.0
  %636 = vmatpush1.msra.mxu0 0.0
  %637 = vmatprep.subr.mxu0 0.0
  %638 = vmatpush1.msra.mxu0 0.0
  %639 = vmatprep.subr.mxu0 0.0
  %640 = vmatpush1.msra.mxu0 0.0
  %641 = vmatprep.subr.mxu0 0.0
  %642 = vmatpush1.msra.mxu0 0.0
  %643 = vmatprep.subr.mxu0 0.0
  %644 = vmatpush1.msra.mxu0 0.0
  %645 = vmatprep.subr.mxu0 0.0
  %646 = vmatpush1.msra.mxu0 0.0
  %647 = vmatprep.subr.mxu0 0.0
  %648 = vmatpush1.msra.mxu0 0.0
  %649 = vmatprep.subr.mxu0 0.0
  %650 = vmatpush1.msra.mxu0 0.0
  %651 = vmatprep.subr.mxu0 0.0
  %652 = vmatpush1.msra.mxu0 0.0
  %653 = vmatprep.mubr.f32.mxu0 0.0
  %654 = vmatmul.mubr.f32.gmra.mrb[0].mxu0 %v587
  %v655 = vpop.f32.mrb[0].mxu0
  %v656 = vadd.f32 0.0, %v655
  %v657 = vpop.f32.mrb[0].mxu0
  %658 = vdwg.mxu0
  %v661 = vrot.slane %v582, 1
  %v662 = vsel %vm343, %v583, %v661
  %663 = vrot.lane.b32.xlu0 %v662, 112
  %v664 = vpop.permute.xlu0 %663
  %v665 = vsel %vm140, %v664, 0
  %667 = vmatprep.subr.mxu0 0.0
  %668 = vmatpush1.msra.mxu0 %v35
  %669 = vmatprep.subr.mxu0 0.0
  %670 = vmatpush1.msra.mxu0 0.0
  %671 = vmatprep.subr.mxu0 0.0
  %672 = vmatpush1.msra.mxu0 0.0
  %673 = vmatprep.subr.mxu0 0.0
  %674 = vmatpush1.msra.mxu0 0.0
  %675 = vmatprep.subr.mxu0 0.0
  %676 = vmatpush1.msra.mxu0 0.0
  %677 = vmatprep.subr.mxu0 0.0
  %678 = vmatpush1.msra.mxu0 0.0
  %679 = vmatprep.subr.mxu0 0.0
  %680 = vmatpush1.msra.mxu0 0.0
  %681 = vmatprep.subr.mxu0 0.0
  %682 = vmatpush1.msra.mxu0 0.0
  %683 = vmatprep.subr.mxu0 0.0
  %684 = vmatpush1.msra.mxu0 0.0
  %685 = vmatprep.subr.mxu0 0.0
  %686 = vmatpush1.msra.mxu0 0.0
  %687 = vmatprep.subr.mxu0 0.0
  %688 = vmatpush1.msra.mxu0 0.0
  %689 = vmatprep.subr.mxu0 0.0
  %690 = vmatpush1.msra.mxu0 0.0
  %691 = vmatprep.subr.mxu0 0.0
  %692 = vmatpush1.msra.mxu0 0.0
  %693 = vmatprep.subr.mxu0 0.0
  %694 = vmatpush1.msra.mxu0 0.0
  %695 = vmatprep.subr.mxu0 0.0
  %696 = vmatpush1.msra.mxu0 0.0
  %697 = vmatprep.subr.mxu0 0.0
  %698 = vmatpush1.msra.mxu0 0.0
  %699 = vmatprep.subr.mxu0 0.0
  %700 = vmatpush1.msra.mxu0 0.0
  %701 = vmatprep.subr.mxu0 0.0
  %702 = vmatpush1.msra.mxu0 0.0
  %703 = vmatprep.subr.mxu0 0.0
  %704 = vmatpush1.msra.mxu0 0.0
  %705 = vmatprep.subr.mxu0 0.0
  %706 = vmatpush1.msra.mxu0 0.0
  %707 = vmatprep.subr.mxu0 0.0
  %708 = vmatpush1.msra.mxu0 0.0
  %709 = vmatprep.subr.mxu0 0.0
  %710 = vmatpush1.msra.mxu0 0.0
  %711 = vmatprep.subr.mxu0 0.0
  %712 = vmatpush1.msra.mxu0 0.0
  %713 = vmatprep.subr.mxu0 0.0
  %714 = vmatpush1.msra.mxu0 0.0
  %715 = vmatprep.subr.mxu0 0.0
  %716 = vmatpush1.msra.mxu0 0.0
  %717 = vmatprep.subr.mxu0 0.0
  %718 = vmatpush1.msra.mxu0 0.0
  %719 = vmatprep.subr.mxu0 0.0
  %720 = vmatpush1.msra.mxu0 0.0
  %721 = vmatprep.subr.mxu0 0.0
  %722 = vmatpush1.msra.mxu0 0.0
  %723 = vmatprep.subr.mxu0 0.0
  %724 = vmatpush1.msra.mxu0 0.0
  %725 = vmatprep.subr.mxu0 0.0
  %726 = vmatpush1.msra.mxu0 0.0
  %727 = vmatprep.subr.mxu0 0.0
  %728 = vmatpush1.msra.mxu0 0.0
  %729 = vmatprep.subr.mxu0 0.0
  %730 = vmatpush1.msra.mxu0 0.0
  %731 = vmatprep.mubr.f32.mxu0 0.0
  %732 = vmatmul.mubr.f32.gmra.mrb[0].mxu0 %v665
  %v733 = vpop.f32.mrb[0].mxu0
  %v734 = vadd.f32 %v656, %v733
  %v735 = vpop.f32.mrb[0].mxu0
  %736 = vdwg.mxu0
  %v737 = vadd.f32 %v734, %v42
  %v738 = vxor.u32 %v737, 2147483648
  %v739 = vmul.f32 %v738, 1.442695
  %v740 = vpow.pop %v739
  %v741 = vadd.f32 %v740, 1.0
  %v742 = vrcp.pop %v741
  %v743 = vmul.f32 1.0, %v742
  %v744 = vtanh.pop %v737
  %v745 = vmul.f32 %v743, %v437
  %747 = vrot.lane.b32.xlu0 %v744, 104
  %v748 = vpop.permute.xlu0 %747
  %v750 = vmul.f32 %v743, %v748
  %752 = vrot.lane.b32.xlu0 %v750, 8
  %v753 = vpop.permute.xlu0 %752
  %v755 = vadd.f32 %v745, %v753
  %v756 = vtanh.pop %v755
  %758 = vrot.lane.b32.xlu0 %v756, 8
  %v759 = vpop.permute.xlu0 %758
  %v761 = vmul.f32 %v743, %v759
  %v764 = vrot.slane %v580, 1
  %v765 = vsel %vm343, %v581, %v764
  %766 = vrot.lane.b32.xlu0 %v765, 112
  %v767 = vpop.permute.xlu0 %766
  %v768 = vsel %vm140, %v767, 0
  %770 = vmatprep.subr.mxu0 0.0
  %771 = vmatpush1.msra.mxu0 %v34
  %772 = vmatprep.subr.mxu0 0.0
  %773 = vmatpush1.msra.mxu0 0.0
  %774 = vmatprep.subr.mxu0 0.0
  %775 = vmatpush1.msra.mxu0 0.0
  %776 = vmatprep.subr.mxu0 0.0
  %777 = vmatpush1.msra.mxu0 0.0
  %778 = vmatprep.subr.mxu0 0.0
  %779 = vmatpush1.msra.mxu0 0.0
  %780 = vmatprep.subr.mxu0 0.0
  %781 = vmatpush1.msra.mxu0 0.0
  %782 = vmatprep.subr.mxu0 0.0
  %783 = vmatpush1.msra.mxu0 0.0
  %784 = vmatprep.subr.mxu0 0.0
  %785 = vmatpush1.msra.mxu0 0.0
  %786 = vmatprep.subr.mxu0 0.0
  %787 = vmatpush1.msra.mxu0 0.0
  %788 = vmatprep.subr.mxu0 0.0
  %789 = vmatpush1.msra.mxu0 0.0
  %790 = vmatprep.subr.mxu0 0.0
  %791 = vmatpush1.msra.mxu0 0.0
  %792 = vmatprep.subr.mxu0 0.0
  %793 = vmatpush1.msra.mxu0 0.0
  %794 = vmatprep.subr.mxu0 0.0
  %795 = vmatpush1.msra.mxu0 0.0
  %796 = vmatprep.subr.mxu0 0.0
  %797 = vmatpush1.msra.mxu0 0.0
  %798 = vmatprep.subr.mxu0 0.0
  %799 = vmatpush1.msra.mxu0 0.0
  %800 = vmatprep.subr.mxu0 0.0
  %801 = vmatpush1.msra.mxu0 0.0
  %802 = vmatprep.subr.mxu0 0.0
  %803 = vmatpush1.msra.mxu0 0.0
  %804 = vmatprep.subr.mxu0 0.0
  %805 = vmatpush1.msra.mxu0 0.0
  %806 = vmatprep.subr.mxu0 0.0
  %807 = vmatpush1.msra.mxu0 0.0
  %808 = vmatprep.subr.mxu0 0.0
  %809 = vmatpush1.msra.mxu0 0.0
  %810 = vmatprep.subr.mxu0 0.0
  %811 = vmatpush1.msra.mxu0 0.0
  %812 = vmatprep.subr.mxu0 0.0
  %813 = vmatpush1.msra.mxu0 0.0
  %814 = vmatprep.subr.mxu0 0.0
  %815 = vmatpush1.msra.mxu0 0.0
  %816 = vmatprep.subr.mxu0 0.0
  %817 = vmatpush1.msra.mxu0 0.0
  %818 = vmatprep.subr.mxu0 0.0
  %819 = vmatpush1.msra.mxu0 0.0
  %820 = vmatprep.subr.mxu0 0.0
  %821 = vmatpush1.msra.mxu0 0.0
  %822 = vmatprep.subr.mxu0 0.0
  %823 = vmatpush1.msra.mxu0 0.0
  %824 = vmatprep.subr.mxu0 0.0
  %825 = vmatpush1.msra.mxu0 0.0
  %826 = vmatprep.subr.mxu0 0.0
  %827 = vmatpush1.msra.mxu0 0.0
  %828 = vmatprep.subr.mxu0 0.0
  %829 = vmatpush1.msra.mxu0 0.0
  %830 = vmatprep.subr.mxu0 0.0
  %831 = vmatpush1.msra.mxu0 0.0
  %832 = vmatprep.subr.mxu0 0.0
  %833 = vmatpush1.msra.mxu0 0.0
  %834 = vmatprep.mubr.f32.mxu0 0.0
  %835 = vmatmul.mubr.f32.gmra.mrb[0].mxu0 %v768
  %v836 = vpop.f32.mrb[0].mxu0
  %v837 = vadd.f32 0.0, %v836
  %v838 = vpop.f32.mrb[0].mxu0
  %839 = vdwg.mxu0
  %v841 = vrot.slane %v837, 6
  %v842 = vrot.slane %v837, 7
  %v845 = vadd.f32 %v132, %v841
  %v846 = vadd.f32 %v137, %v842
  %v847 = vxor.u32 %v845, 2147483648
  %v848 = vxor.u32 %v846, 2147483648
  %v849 = vmul.f32 %v847, 1.442695
  %v850 = vpow.pop %v849
  %v851 = vmul.f32 %v848, 1.442695
  %v852 = vpow.pop %v851
  %v853 = vadd.f32 %v850, 1.0
  %v854 = vadd.f32 %v852, 1.0
  %v855 = vrcp.pop %v853
  %v856 = vmul.f32 1.0, %v855
  %v857 = vrcp.pop %v854
  %v858 = vmul.f32 1.0, %v857
  %v859 = vtanh.pop %v845
  %v860 = vtanh.pop %v846
  %v863 = vrot.slane %v568, 7
  %v864 = vrot.slane %v569, 7
  %v867 = vmul.f32 %v856, %v863
  %v868 = vmul.f32 %v858, %v864
  %871 = vrot.lane.b32.xlu0 %v859, 104
  %v872 = vpop.permute.xlu0 %871
  %873 = vrot.lane.b32.xlu0 %v860, 104
  %v874 = vpop.permute.xlu0 %873
  %v877 = vmul.f32 %v856, %v872
  %v878 = vmul.f32 %v858, %v874
  %881 = vrot.lane.b32.xlu0 %v877, 8
  %v882 = vpop.permute.xlu0 %881
  %883 = vrot.lane.b32.xlu0 %v878, 8
  %v884 = vpop.permute.xlu0 %883
  %v887 = vadd.f32 %v867, %v882
  %v888 = vadd.f32 %v868, %v884
  %v889 = vtanh.pop %v887
  %v890 = vtanh.pop %v888
  %893 = vrot.lane.b32.xlu0 %v889, 8
  %v894 = vpop.permute.xlu0 %893
  %895 = vrot.lane.b32.xlu0 %v890, 8
  %v896 = vpop.permute.xlu0 %895
  %v899 = vmul.f32 %v856, %v894
  %v900 = vmul.f32 %v858, %v896
  %v901 = vtanh.pop %v899
  %v902 = vtanh.pop %v900
  %904 = vrot.lane.b32.xlu0 %v761, 112
  %v905 = vpop.permute.xlu0 %904
  %v906 = vsel %vm140, %v905, 0
  %908 = vmatprep.subr.mxu0 0.0
  %909 = vmatpush1.msra.mxu0 %v36
  %910 = vmatprep.subr.mxu0 0.0
  %911 = vmatpush1.msra.mxu0 0.0
  %912 = vmatprep.subr.mxu0 0.0
  %913 = vmatpush1.msra.mxu0 0.0
  %914 = vmatprep.subr.mxu0 0.0
  %915 = vmatpush1.msra.mxu0 0.0
  %916 = vmatprep.subr.mxu0 0.0
  %917 = vmatpush1.msra.mxu0 0.0
  %918 = vmatprep.subr.mxu0 0.0
  %919 = vmatpush1.msra.mxu0 0.0
  %920 = vmatprep.subr.mxu0 0.0
  %921 = vmatpush1.msra.mxu0 0.0
  %922 = vmatprep.subr.mxu0 0.0
  %923 = vmatpush1.msra.mxu0 0.0
  %924 = vmatprep.subr.mxu0 0.0
  %925 = vmatpush1.msra.mxu0 0.0
  %926 = vmatprep.subr.mxu0 0.0
  %927 = vmatpush1.msra.mxu0 0.0
  %928 = vmatprep.subr.mxu0 0.0
  %929 = vmatpush1.msra.mxu0 0.0
  %930 = vmatprep.subr.mxu0 0.0
  %931 = vmatpush1.msra.mxu0 0.0
  %932 = vmatprep.subr.mxu0 0.0
  %933 = vmatpush1.msra.mxu0 0.0
  %934 = vmatprep.subr.mxu0 0.0
  %935 = vmatpush1.msra.mxu0 0.0
  %936 = vmatprep.subr.mxu0 0.0
  %937 = vmatpush1.msra.mxu0 0.0
  %938 = vmatprep.subr.mxu0 0.0
  %939 = vmatpush1.msra.mxu0 0.0
  %940 = vmatprep.subr.mxu0 0.0
  %941 = vmatpush1.msra.mxu0 0.0
  %942 = vmatprep.subr.mxu0 0.0
  %943 = vmatpush1.msra.mxu0 0.0
  %944 = vmatprep.subr.mxu0 0.0
  %945 = vmatpush1.msra.mxu0 0.0
  %946 = vmatprep.subr.mxu0 0.0
  %947 = vmatpush1.msra.mxu0 0.0
  %948 = vmatprep.subr.mxu0 0.0
  %949 = vmatpush1.msra.mxu0 0.0
  %950 = vmatprep.subr.mxu0 0.0
  %951 = vmatpush1.msra.mxu0 0.0
  %952 = vmatprep.subr.mxu0 0.0
  %953 = vmatpush1.msra.mxu0 0.0
  %954 = vmatprep.subr.mxu0 0.0
  %955 = vmatpush1.msra.mxu0 0.0
  %956 = vmatprep.subr.mxu0 0.0
  %957 = vmatpush1.msra.mxu0 0.0
  %958 = vmatprep.subr.mxu0 0.0
  %959 = vmatpush1.msra.mxu0 0.0
  %960 = vmatprep.subr.mxu0 0.0
  %961 = vmatpush1.msra.mxu0 0.0
  %962 = vmatprep.subr.mxu0 0.0
  %963 = vmatpush1.msra.mxu0 0.0
  %964 = vmatprep.subr.mxu0 0.0
  %965 = vmatpush1.msra.mxu0 0.0
  %966 = vmatprep.subr.mxu0 0.0
  %967 = vmatpush1.msra.mxu0 0.0
  %968 = vmatprep.subr.mxu0 0.0
  %969 = vmatpush1.msra.mxu0 0.0
  %970 = vmatprep.subr.mxu0 0.0
  %971 = vmatpush1.msra.mxu0 0.0
  %972 = vmatprep.mubr.f32.mxu0 0.0
  %973 = vmatmul.mubr.f32.gmra.mrb[0].mxu0 %v906
  %v974 = vpop.f32.mrb[0].mxu0
  %v975 = vadd.f32 0.0, %v974
  %v976 = vpop.f32.mrb[0].mxu0
  %977 = vdwg.mxu0
  %v980 = vrot.slane %v901, 2
  %v981 = vrot.slane %v902, 1
  %v982 = vsel %vm343, %v981, %v980
  %983 = vrot.lane.b32.xlu0 %v982, 112
  %v984 = vpop.permute.xlu0 %983
  %v985 = vsel %vm140, %v984, 0
  %987 = vmatprep.subr.mxu0 0.0
  %988 = vmatpush1.msra.mxu0 %v35
  %989 = vmatprep.subr.mxu0 0.0
  %990 = vmatpush1.msra.mxu0 0.0
  %991 = vmatprep.subr.mxu0 0.0
  %992 = vmatpush1.msra.mxu0 0.0
  %993 = vmatprep.subr.mxu0 0.0
  %994 = vmatpush1.msra.mxu0 0.0
  %995 = vmatprep.subr.mxu0 0.0
  %996 = vmatpush1.msra.mxu0 0.0
  %997 = vmatprep.subr.mxu0 0.0
  %998 = vmatpush1.msra.mxu0 0.0
  %999 = vmatprep.subr.mxu0 0.0
  %1000 = vmatpush1.msra.mxu0 0.0
  %1001 = vmatprep.subr.mxu0 0.0
  %1002 = vmatpush1.msra.mxu0 0.0
  %1003 = vmatprep.subr.mxu0 0.0
  %1004 = vmatpush1.msra.mxu0 0.0
  %1005 = vmatprep.subr.mxu0 0.0
  %1006 = vmatpush1.msra.mxu0 0.0
  %1007 = vmatprep.subr.mxu0 0.0
  %1008 = vmatpush1.msra.mxu0 0.0
  %1009 = vmatprep.subr.mxu0 0.0
  %1010 = vmatpush1.msra.mxu0 0.0
  %1011 = vmatprep.subr.mxu0 0.0
  %1012 = vmatpush1.msra.mxu0 0.0
  %1013 = vmatprep.subr.mxu0 0.0
  %1014 = vmatpush1.msra.mxu0 0.0
  %1015 = vmatprep.subr.mxu0 0.0
  %1016 = vmatpush1.msra.mxu0 0.0
  %1017 = vmatprep.subr.mxu0 0.0
  %1018 = vmatpush1.msra.mxu0 0.0
  %1019 = vmatprep.subr.mxu0 0.0
  %1020 = vmatpush1.msra.mxu0 0.0
  %1021 = vmatprep.subr.mxu0 0.0
  %1022 = vmatpush1.msra.mxu0 0.0
  %1023 = vmatprep.subr.mxu0 0.0
  %1024 = vmatpush1.msra.mxu0 0.0
  %1025 = vmatprep.subr.mxu0 0.0
  %1026 = vmatpush1.msra.mxu0 0.0
  %1027 = vmatprep.subr.mxu0 0.0
  %1028 = vmatpush1.msra.mxu0 0.0
  %1029 = vmatprep.subr.mxu0 0.0
  %1030 = vmatpush1.msra.mxu0 0.0
  %1031 = vmatprep.subr.mxu0 0.0
  %1032 = vmatpush1.msra.mxu0 0.0
  %1033 = vmatprep.subr.mxu0 0.0
  %1034 = vmatpush1.msra.mxu0 0.0
  %1035 = vmatprep.subr.mxu0 0.0
  %1036 = vmatpush1.msra.mxu0 0.0
  %1037 = vmatprep.subr.mxu0 0.0
  %1038 = vmatpush1.msra.mxu0 0.0
  %1039 = vmatprep.subr.mxu0 0.0
  %1040 = vmatpush1.msra.mxu0 0.0
  %1041 = vmatprep.subr.mxu0 0.0
  %1042 = vmatpush1.msra.mxu0 0.0
  %1043 = vmatprep.subr.mxu0 0.0
  %1044 = vmatpush1.msra.mxu0 0.0
  %1045 = vmatprep.subr.mxu0 0.0
  %1046 = vmatpush1.msra.mxu0 0.0
  %1047 = vmatprep.subr.mxu0 0.0
  %1048 = vmatpush1.msra.mxu0 0.0
  %1049 = vmatprep.subr.mxu0 0.0
  %1050 = vmatpush1.msra.mxu0 0.0
  %1051 = vmatprep.mubr.f32.mxu0 0.0
  %1052 = vmatmul.mubr.f32.gmra.mrb[0].mxu0 %v985
  %v1053 = vpop.f32.mrb[0].mxu0
  %v1054 = vadd.f32 %v975, %v1053
  %v1055 = vpop.f32.mrb[0].mxu0
  %1056 = vdwg.mxu0
  %v1057 = vadd.f32 %v1054, %v42
  %v1058 = vxor.u32 %v1057, 2147483648
  %v1059 = vmul.f32 %v1058, 1.442695
  %v1060 = vpow.pop %v1059
  %v1061 = vadd.f32 %v1060, 1.0
  %v1062 = vrcp.pop %v1061
  %v1063 = vmul.f32 1.0, %v1062
  %v1064 = vtanh.pop %v1057
  %v1065 = vmul.f32 %v1063, %v755
  %1067 = vrot.lane.b32.xlu0 %v1064, 104
  %v1068 = vpop.permute.xlu0 %1067
  %v1070 = vmul.f32 %v1063, %v1068
  %1072 = vrot.lane.b32.xlu0 %v1070, 8
  %v1073 = vpop.permute.xlu0 %1072
  %v1075 = vadd.f32 %v1065, %v1073
  %v1076 = vtanh.pop %v1075
  %1078 = vrot.lane.b32.xlu0 %v1076, 8
  %v1079 = vpop.permute.xlu0 %1078
  %v1081 = vmul.f32 %v1063, %v1079
  %v1084 = vrot.slane %v899, 2
  %v1085 = vrot.slane %v900, 1
  %v1086 = vsel %vm343, %v1085, %v1084
  %1087 = vrot.lane.b32.xlu0 %v1086, 112
  %v1088 = vpop.permute.xlu0 %1087
  %v1089 = vsel %vm140, %v1088, 0
  %1091 = vmatprep.subr.mxu0 0.0
  %1092 = vmatpush1.msra.mxu0 %v34
  %1093 = vmatprep.subr.mxu0 0.0
  %1094 = vmatpush1.msra.mxu0 0.0
  %1095 = vmatprep.subr.mxu0 0.0
  %1096 = vmatpush1.msra.mxu0 0.0
  %1097 = vmatprep.subr.mxu0 0.0
  %1098 = vmatpush1.msra.mxu0 0.0
  %1099 = vmatprep.subr.mxu0 0.0
  %1100 = vmatpush1.msra.mxu0 0.0
  %1101 = vmatprep.subr.mxu0 0.0
  %1102 = vmatpush1.msra.mxu0 0.0
  %1103 = vmatprep.subr.mxu0 0.0
  %1104 = vmatpush1.msra.mxu0 0.0
  %1105 = vmatprep.subr.mxu0 0.0
  %1106 = vmatpush1.msra.mxu0 0.0
  %1107 = vmatprep.subr.mxu0 0.0
  %1108 = vmatpush1.msra.mxu0 0.0
  %1109 = vmatprep.subr.mxu0 0.0
  %1110 = vmatpush1.msra.mxu0 0.0
  %1111 = vmatprep.subr.mxu0 0.0
  %1112 = vmatpush1.msra.mxu0 0.0
  %1113 = vmatprep.subr.mxu0 0.0
  %1114 = vmatpush1.msra.mxu0 0.0
  %1115 = vmatprep.subr.mxu0 0.0
  %1116 = vmatpush1.msra.mxu0 0.0
  %1117 = vmatprep.subr.mxu0 0.0
  %1118 = vmatpush1.msra.mxu0 0.0
  %1119 = vmatprep.subr.mxu0 0.0
  %1120 = vmatpush1.msra.mxu0 0.0
  %1121 = vmatprep.subr.mxu0 0.0
  %1122 = vmatpush1.msra.mxu0 0.0
  %1123 = vmatprep.subr.mxu0 0.0
  %1124 = vmatpush1.msra.mxu0 0.0
  %1125 = vmatprep.subr.mxu0 0.0
  %1126 = vmatpush1.msra.mxu0 0.0
  %1127 = vmatprep.subr.mxu0 0.0
  %1128 = vmatpush1.msra.mxu0 0.0
  %1129 = vmatprep.subr.mxu0 0.0
  %1130 = vmatpush1.msra.mxu0 0.0
  %1131 = vmatprep.subr.mxu0 0.0
  %1132 = vmatpush1.msra.mxu0 0.0
  %1133 = vmatprep.subr.mxu0 0.0
  %1134 = vmatpush1.msra.mxu0 0.0
  %1135 = vmatprep.subr.mxu0 0.0
  %1136 = vmatpush1.msra.mxu0 0.0
  %1137 = vmatprep.subr.mxu0 0.0
  %1138 = vmatpush1.msra.mxu0 0.0
  %1139 = vmatprep.subr.mxu0 0.0
  %1140 = vmatpush1.msra.mxu0 0.0
  %1141 = vmatprep.subr.mxu0 0.0
  %1142 = vmatpush1.msra.mxu0 0.0
  %1143 = vmatprep.subr.mxu0 0.0
  %1144 = vmatpush1.msra.mxu0 0.0
  %1145 = vmatprep.subr.mxu0 0.0
  %1146 = vmatpush1.msra.mxu0 0.0
  %1147 = vmatprep.subr.mxu0 0.0
  %1148 = vmatpush1.msra.mxu0 0.0
  %1149 = vmatprep.subr.mxu0 0.0
  %1150 = vmatpush1.msra.mxu0 0.0
  %1151 = vmatprep.subr.mxu0 0.0
  %1152 = vmatpush1.msra.mxu0 0.0
  %1153 = vmatprep.subr.mxu0 0.0
  %1154 = vmatpush1.msra.mxu0 0.0
  %1155 = vmatprep.mubr.f32.mxu0 0.0
  %1156 = vmatmul.mubr.f32.gmra.mrb[0].mxu0 %v1089
  %v1157 = vpop.f32.mrb[0].mxu0
  %v1158 = vadd.f32 0.0, %v1157
  %v1159 = vpop.f32.mrb[0].mxu0
  %1160 = vdwg.mxu0
  %v1162 = vrot.slane %v1158, 5
  %v1163 = vrot.slane %v1158, 6
  %v1166 = vadd.f32 %v132, %v1162
  %v1167 = vadd.f32 %v137, %v1163
  %v1168 = vxor.u32 %v1166, 2147483648
  %v1169 = vxor.u32 %v1167, 2147483648
  %v1170 = vmul.f32 %v1168, 1.442695
  %v1171 = vpow.pop %v1170
  %v1172 = vmul.f32 %v1169, 1.442695
  %v1173 = vpow.pop %v1172
  %v1174 = vadd.f32 %v1171, 1.0
  %v1175 = vadd.f32 %v1173, 1.0
  %v1176 = vrcp.pop %v1174
  %v1177 = vmul.f32 1.0, %v1176
  %v1178 = vrcp.pop %v1175
  %v1179 = vmul.f32 1.0, %v1178
  %v1180 = vtanh.pop %v1166
  %v1181 = vtanh.pop %v1167
  %v1184 = vrot.slane %v887, 7
  %v1185 = vrot.slane %v888, 7
  %v1188 = vmul.f32 %v1177, %v1184
  %v1189 = vmul.f32 %v1179, %v1185
  %1192 = vrot.lane.b32.xlu0 %v1180, 104
  %v1193 = vpop.permute.xlu0 %1192
  %1194 = vrot.lane.b32.xlu0 %v1181, 104
  %v1195 = vpop.permute.xlu0 %1194
  %v1198 = vmul.f32 %v1177, %v1193
  %v1199 = vmul.f32 %v1179, %v1195
  %1202 = vrot.lane.b32.xlu0 %v1198, 8
  %v1203 = vpop.permute.xlu0 %1202
  %1204 = vrot.lane.b32.xlu0 %v1199, 8
  %v1205 = vpop.permute.xlu0 %1204
  %v1208 = vadd.f32 %v1188, %v1203
  %v1209 = vadd.f32 %v1189, %v1205
  %v1210 = vtanh.pop %v1208
  %v1211 = vtanh.pop %v1209
  %1214 = vrot.lane.b32.xlu0 %v1210, 8
  %v1215 = vpop.permute.xlu0 %1214
  %1216 = vrot.lane.b32.xlu0 %v1211, 8
  %v1217 = vpop.permute.xlu0 %1216
  %v1220 = vmul.f32 %v1177, %v1215
  %v1221 = vmul.f32 %v1179, %v1217
  %v1222 = vtanh.pop %v1220
  %v1223 = vtanh.pop %v1221
  %1225 = vrot.lane.b32.xlu0 %v1081, 112
  %v1226 = vpop.permute.xlu0 %1225
  %v1227 = vsel %vm140, %v1226, 0
  %1229 = vmatprep.subr.mxu0 0.0
  %1230 = vmatpush1.msra.mxu0 %v36
  %1231 = vmatprep.subr.mxu0 0.0
  %1232 = vmatpush1.msra.mxu0 0.0
  %1233 = vmatprep.subr.mxu0 0.0
  %1234 = vmatpush1.msra.mxu0 0.0
  %1235 = vmatprep.subr.mxu0 0.0
  %1236 = vmatpush1.msra.mxu0 0.0
  %1237 = vmatprep.subr.mxu0 0.0
  %1238 = vmatpush1.msra.mxu0 0.0
  %1239 = vmatprep.subr.mxu0 0.0
  %1240 = vmatpush1.msra.mxu0 0.0
  %1241 = vmatprep.subr.mxu0 0.0
  %1242 = vmatpush1.msra.mxu0 0.0
  %1243 = vmatprep.subr.mxu0 0.0
  %1244 = vmatpush1.msra.mxu0 0.0
  %1245 = vmatprep.subr.mxu0 0.0
  %1246 = vmatpush1.msra.mxu0 0.0
  %1247 = vmatprep.subr.mxu0 0.0
  %1248 = vmatpush1.msra.mxu0 0.0
  %1249 = vmatprep.subr.mxu0 0.0
  %1250 = vmatpush1.msra.mxu0 0.0
  %1251 = vmatprep.subr.mxu0 0.0
  %1252 = vmatpush1.msra.mxu0 0.0
  %1253 = vmatprep.subr.mxu0 0.0
  %1254 = vmatpush1.msra.mxu0 0.0
  %1255 = vmatprep.subr.mxu0 0.0
  %1256 = vmatpush1.msra.mxu0 0.0
  %1257 = vmatprep.subr.mxu0 0.0
  %1258 = vmatpush1.msra.mxu0 0.0
  %1259 = vmatprep.subr.mxu0 0.0
  %1260 = vmatpush1.msra.mxu0 0.0
  %1261 = vmatprep.subr.mxu0 0.0
  %1262 = vmatpush1.msra.mxu0 0.0
  %1263 = vmatprep.subr.mxu0 0.0
  %1264 = vmatpush1.msra.mxu0 0.0
  %1265 = vmatprep.subr.mxu0 0.0
  %1266 = vmatpush1.msra.mxu0 0.0
  %1267 = vmatprep.subr.mxu0 0.0
  %1268 = vmatpush1.msra.mxu0 0.0
  %1269 = vmatprep.subr.mxu0 0.0
  %1270 = vmatpush1.msra.mxu0 0.0
  %1271 = vmatprep.subr.mxu0 0.0
  %1272 = vmatpush1.msra.mxu0 0.0
  %1273 = vmatprep.subr.mxu0 0.0
  %1274 = vmatpush1.msra.mxu0 0.0
  %1275 = vmatprep.subr.mxu0 0.0
  %1276 = vmatpush1.msra.mxu0 0.0
  %1277 = vmatprep.subr.mxu0 0.0
  %1278 = vmatpush1.msra.mxu0 0.0
  %1279 = vmatprep.subr.mxu0 0.0
  %1280 = vmatpush1.msra.mxu0 0.0
  %1281 = vmatprep.subr.mxu0 0.0
  %1282 = vmatpush1.msra.mxu0 0.0
  %1283 = vmatprep.subr.mxu0 0.0
  %1284 = vmatpush1.msra.mxu0 0.0
  %1285 = vmatprep.subr.mxu0 0.0
  %1286 = vmatpush1.msra.mxu0 0.0
  %1287 = vmatprep.subr.mxu0 0.0
  %1288 = vmatpush1.msra.mxu0 0.0
  %1289 = vmatprep.subr.mxu0 0.0
  %1290 = vmatpush1.msra.mxu0 0.0
  %1291 = vmatprep.subr.mxu0 0.0
  %1292 = vmatpush1.msra.mxu0 0.0
  %1293 = vmatprep.mubr.f32.mxu0 0.0
  %1294 = vmatmul.mubr.f32.gmra.mrb[0].mxu0 %v1227
  %v1295 = vpop.f32.mrb[0].mxu0
  %v1296 = vadd.f32 0.0, %v1295
  %v1297 = vpop.f32.mrb[0].mxu0
  %1298 = vdwg.mxu0
  %v1301 = vrot.slane %v1222, 3
  %v1302 = vrot.slane %v1223, 2
  %v1303 = vsel %vm343, %v1302, %v1301
  %1304 = vrot.lane.b32.xlu0 %v1303, 112
  %v1305 = vpop.permute.xlu0 %1304
  %v1306 = vsel %vm140, %v1305, 0
  %1308 = vmatprep.subr.mxu0 0.0
  %1309 = vmatpush1.msra.mxu0 %v35
  %1310 = vmatprep.subr.mxu0 0.0
  %1311 = vmatpush1.msra.mxu0 0.0
  %1312 = vmatprep.subr.mxu0 0.0
  %1313 = vmatpush1.msra.mxu0 0.0
  %1314 = vmatprep.subr.mxu0 0.0
  %1315 = vmatpush1.msra.mxu0 0.0
  %1316 = vmatprep.subr.mxu0 0.0
  %1317 = vmatpush1.msra.mxu0 0.0
  %1318 = vmatprep.subr.mxu0 0.0
  %1319 = vmatpush1.msra.mxu0 0.0
  %1320 = vmatprep.subr.mxu0 0.0
  %1321 = vmatpush1.msra.mxu0 0.0
  %1322 = vmatprep.subr.mxu0 0.0
  %1323 = vmatpush1.msra.mxu0 0.0
  %1324 = vmatprep.subr.mxu0 0.0
  %1325 = vmatpush1.msra.mxu0 0.0
  %1326 = vmatprep.subr.mxu0 0.0
  %1327 = vmatpush1.msra.mxu0 0.0
  %1328 = vmatprep.subr.mxu0 0.0
  %1329 = vmatpush1.msra.mxu0 0.0
  %1330 = vmatprep.subr.mxu0 0.0
  %1331 = vmatpush1.msra.mxu0 0.0
  %1332 = vmatprep.subr.mxu0 0.0
  %1333 = vmatpush1.msra.mxu0 0.0
  %1334 = vmatprep.subr.mxu0 0.0
  %1335 = vmatpush1.msra.mxu0 0.0
  %1336 = vmatprep.subr.mxu0 0.0
  %1337 = vmatpush1.msra.mxu0 0.0
  %1338 = vmatprep.subr.mxu0 0.0
  %1339 = vmatpush1.msra.mxu0 0.0
  %1340 = vmatprep.subr.mxu0 0.0
  %1341 = vmatpush1.msra.mxu0 0.0
  %1342 = vmatprep.subr.mxu0 0.0
  %1343 = vmatpush1.msra.mxu0 0.0
  %1344 = vmatprep.subr.mxu0 0.0
  %1345 = vmatpush1.msra.mxu0 0.0
  %1346 = vmatprep.subr.mxu0 0.0
  %1347 = vmatpush1.msra.mxu0 0.0
  %1348 = vmatprep.subr.mxu0 0.0
  %1349 = vmatpush1.msra.mxu0 0.0
  %1350 = vmatprep.subr.mxu0 0.0
  %1351 = vmatpush1.msra.mxu0 0.0
  %1352 = vmatprep.subr.mxu0 0.0
  %1353 = vmatpush1.msra.mxu0 0.0
  %1354 = vmatprep.subr.mxu0 0.0
  %1355 = vmatpush1.msra.mxu0 0.0
  %1356 = vmatprep.subr.mxu0 0.0
  %1357 = vmatpush1.msra.mxu0 0.0
  %1358 = vmatprep.subr.mxu0 0.0
  %1359 = vmatpush1.msra.mxu0 0.0
  %1360 = vmatprep.subr.mxu0 0.0
  %1361 = vmatpush1.msra.mxu0 0.0
  %1362 = vmatprep.subr.mxu0 0.0
  %1363 = vmatpush1.msra.mxu0 0.0
  %1364 = vmatprep.subr.mxu0 0.0
  %1365 = vmatpush1.msra.mxu0 0.0
  %1366 = vmatprep.subr.mxu0 0.0
  %1367 = vmatpush1.msra.mxu0 0.0
  %1368 = vmatprep.subr.mxu0 0.0
  %1369 = vmatpush1.msra.mxu0 0.0
  %1370 = vmatprep.subr.mxu0 0.0
  %1371 = vmatpush1.msra.mxu0 0.0
  %1372 = vmatprep.mubr.f32.mxu0 0.0
  %1373 = vmatmul.mubr.f32.gmra.mrb[0].mxu0 %v1306
  %v1374 = vpop.f32.mrb[0].mxu0
  %v1375 = vadd.f32 %v1296, %v1374
  %v1376 = vpop.f32.mrb[0].mxu0
  %1377 = vdwg.mxu0
  %v1378 = vadd.f32 %v1375, %v42
  %v1379 = vxor.u32 %v1378, 2147483648
  %v1380 = vmul.f32 %v1379, 1.442695
  %v1381 = vpow.pop %v1380
  %v1382 = vadd.f32 %v1381, 1.0
  %v1383 = vrcp.pop %v1382
  %v1384 = vmul.f32 1.0, %v1383
  %v1385 = vtanh.pop %v1378
  %v1386 = vmul.f32 %v1384, %v1075
  %1388 = vrot.lane.b32.xlu0 %v1385, 104
  %v1389 = vpop.permute.xlu0 %1388
  %v1391 = vmul.f32 %v1384, %v1389
  %1393 = vrot.lane.b32.xlu0 %v1391, 8
  %v1394 = vpop.permute.xlu0 %1393
  %v1396 = vadd.f32 %v1386, %v1394
  %v1397 = vtanh.pop %v1396
  %1399 = vrot.lane.b32.xlu0 %v1397, 8
  %v1400 = vpop.permute.xlu0 %1399
  %v1402 = vmul.f32 %v1384, %v1400
  %v1405 = vrot.slane %v1220, 3
  %v1406 = vrot.slane %v1221, 2
  %v1407 = vsel %vm343, %v1406, %v1405
  %1408 = vrot.lane.b32.xlu0 %v1407, 112
  %v1409 = vpop.permute.xlu0 %1408
  %v1410 = vsel %vm140, %v1409, 0
  %1412 = vmatprep.subr.mxu0 0.0
  %1413 = vmatpush1.msra.mxu0 %v34
  %1414 = vmatprep.subr.mxu0 0.0
  %1415 = vmatpush1.msra.mxu0 0.0
  %1416 = vmatprep.subr.mxu0 0.0
  %1417 = vmatpush1.msra.mxu0 0.0
  %1418 = vmatprep.subr.mxu0 0.0
  %1419 = vmatpush1.msra.mxu0 0.0
  %1420 = vmatprep.subr.mxu0 0.0
  %1421 = vmatpush1.msra.mxu0 0.0
  %1422 = vmatprep.subr.mxu0 0.0
  %1423 = vmatpush1.msra.mxu0 0.0
  %1424 = vmatprep.subr.mxu0 0.0
  %1425 = vmatpush1.msra.mxu0 0.0
  %1426 = vmatprep.subr.mxu0 0.0
  %1427 = vmatpush1.msra.mxu0 0.0
  %1428 = vmatprep.subr.mxu0 0.0
  %1429 = vmatpush1.msra.mxu0 0.0
  %1430 = vmatprep.subr.mxu0 0.0
  %1431 = vmatpush1.msra.mxu0 0.0
  %1432 = vmatprep.subr.mxu0 0.0
  %1433 = vmatpush1.msra.mxu0 0.0
  %1434 = vmatprep.subr.mxu0 0.0
  %1435 = vmatpush1.msra.mxu0 0.0
  %1436 = vmatprep.subr.mxu0 0.0
  %1437 = vmatpush1.msra.mxu0 0.0
  %1438 = vmatprep.subr.mxu0 0.0
  %1439 = vmatpush1.msra.mxu0 0.0
  %1440 = vmatprep.subr.mxu0 0.0
  %1441 = vmatpush1.msra.mxu0 0.0
  %1442 = vmatprep.subr.mxu0 0.0
  %1443 = vmatpush1.msra.mxu0 0.0
  %1444 = vmatprep.subr.mxu0 0.0
  %1445 = vmatpush1.msra.mxu0 0.0
  %1446 = vmatprep.subr.mxu0 0.0
  %1447 = vmatpush1.msra.mxu0 0.0
  %1448 = vmatprep.subr.mxu0 0.0
  %1449 = vmatpush1.msra.mxu0 0.0
  %1450 = vmatprep.subr.mxu0 0.0
  %1451 = vmatpush1.msra.mxu0 0.0
  %1452 = vmatprep.subr.mxu0 0.0
  %1453 = vmatpush1.msra.mxu0 0.0
  %1454 = vmatprep.subr.mxu0 0.0
  %1455 = vmatpush1.msra.mxu0 0.0
  %1456 = vmatprep.subr.mxu0 0.0
  %1457 = vmatpush1.msra.mxu0 0.0
  %1458 = vmatprep.subr.mxu0 0.0
  %1459 = vmatpush1.msra.mxu0 0.0
  %1460 = vmatprep.subr.mxu0 0.0
  %1461 = vmatpush1.msra.mxu0 0.0
  %1462 = vmatprep.subr.mxu0 0.0
  %1463 = vmatpush1.msra.mxu0 0.0
  %1464 = vmatprep.subr.mxu0 0.0
  %1465 = vmatpush1.msra.mxu0 0.0
  %1466 = vmatprep.subr.mxu0 0.0
  %1467 = vmatpush1.msra.mxu0 0.0
  %1468 = vmatprep.subr.mxu0 0.0
  %1469 = vmatpush1.msra.mxu0 0.0
  %1470 = vmatprep.subr.mxu0 0.0
  %1471 = vmatpush1.msra.mxu0 0.0
  %1472 = vmatprep.subr.mxu0 0.0
  %1473 = vmatpush1.msra.mxu0 0.0
  %1474 = vmatprep.subr.mxu0 0.0
  %1475 = vmatpush1.msra.mxu0 0.0
  %1476 = vmatprep.mubr.f32.mxu0 0.0
  %1477 = vmatmul.mubr.f32.gmra.mrb[0].mxu0 %v1410
  %v1478 = vpop.f32.mrb[0].mxu0
  %v1479 = vadd.f32 0.0, %v1478
  %v1480 = vpop.f32.mrb[0].mxu0
  %1481 = vdwg.mxu0
  %v1483 = vrot.slane %v1479, 4
  %v1484 = vrot.slane %v1479, 5
  %v1487 = vadd.f32 %v132, %v1483
  %v1488 = vadd.f32 %v137, %v1484
  %v1489 = vxor.u32 %v1487, 2147483648
  %v1490 = vxor.u32 %v1488, 2147483648
  %v1491 = vmul.f32 %v1489, 1.442695
  %v1492 = vpow.pop %v1491
  %v1493 = vmul.f32 %v1490, 1.442695
  %v1494 = vpow.pop %v1493
  %v1495 = vadd.f32 %v1492, 1.0
  %v1496 = vadd.f32 %v1494, 1.0
  %v1497 = vrcp.pop %v1495
  %v1498 = vmul.f32 1.0, %v1497
  %v1499 = vrcp.pop %v1496
  %v1500 = vmul.f32 1.0, %v1499
  %v1501 = vtanh.pop %v1487
  %v1502 = vtanh.pop %v1488
  %v1505 = vrot.slane %v1208, 7
  %v1506 = vrot.slane %v1209, 7
  %v1509 = vmul.f32 %v1498, %v1505
  %v1510 = vmul.f32 %v1500, %v1506
  %1513 = vrot.lane.b32.xlu0 %v1501, 104
  %v1514 = vpop.permute.xlu0 %1513
  %1515 = vrot.lane.b32.xlu0 %v1502, 104
  %v1516 = vpop.permute.xlu0 %1515
  %v1519 = vmul.f32 %v1498, %v1514
  %v1520 = vmul.f32 %v1500, %v1516
  %1523 = vrot.lane.b32.xlu0 %v1519, 8
  %v1524 = vpop.permute.xlu0 %1523
  %1525 = vrot.lane.b32.xlu0 %v1520, 8
  %v1526 = vpop.permute.xlu0 %1525
  %v1529 = vadd.f32 %v1509, %v1524
  %v1530 = vadd.f32 %v1510, %v1526
  %v1531 = vtanh.pop %v1529
  %v1532 = vtanh.pop %v1530
  %1535 = vrot.lane.b32.xlu0 %v1531, 8
  %v1536 = vpop.permute.xlu0 %1535
  %1537 = vrot.lane.b32.xlu0 %v1532, 8
  %v1538 = vpop.permute.xlu0 %1537
  %v1541 = vmul.f32 %v1498, %v1536
  %v1542 = vmul.f32 %v1500, %v1538
  %v1543 = vtanh.pop %v1541
  %v1544 = vtanh.pop %v1542
  %1546 = vrot.lane.b32.xlu0 %v1402, 112
  %v1547 = vpop.permute.xlu0 %1546
  %v1548 = vsel %vm140, %v1547, 0
  %1550 = vmatprep.subr.mxu0 0.0
  %1551 = vmatpush1.msra.mxu0 %v36
  %1552 = vmatprep.subr.mxu0 0.0
  %1553 = vmatpush1.msra.mxu0 0.0
  %1554 = vmatprep.subr.mxu0 0.0
  %1555 = vmatpush1.msra.mxu0 0.0
  %1556 = vmatprep.subr.mxu0 0.0
  %1557 = vmatpush1.msra.mxu0 0.0
  %1558 = vmatprep.subr.mxu0 0.0
  %1559 = vmatpush1.msra.mxu0 0.0
  %1560 = vmatprep.subr.mxu0 0.0
  %1561 = vmatpush1.msra.mxu0 0.0
  %1562 = vmatprep.subr.mxu0 0.0
  %1563 = vmatpush1.msra.mxu0 0.0
  %1564 = vmatprep.subr.mxu0 0.0
  %1565 = vmatpush1.msra.mxu0 0.0
  %1566 = vmatprep.subr.mxu0 0.0
  %1567 = vmatpush1.msra.mxu0 0.0
  %1568 = vmatprep.subr.mxu0 0.0
  %1569 = vmatpush1.msra.mxu0 0.0
  %1570 = vmatprep.subr.mxu0 0.0
  %1571 = vmatpush1.msra.mxu0 0.0
  %1572 = vmatprep.subr.mxu0 0.0
  %1573 = vmatpush1.msra.mxu0 0.0
  %1574 = vmatprep.subr.mxu0 0.0
  %1575 = vmatpush1.msra.mxu0 0.0
  %1576 = vmatprep.subr.mxu0 0.0
  %1577 = vmatpush1.msra.mxu0 0.0
  %1578 = vmatprep.subr.mxu0 0.0
  %1579 = vmatpush1.msra.mxu0 0.0
  %1580 = vmatprep.subr.mxu0 0.0
  %1581 = vmatpush1.msra.mxu0 0.0
  %1582 = vmatprep.subr.mxu0 0.0
  %1583 = vmatpush1.msra.mxu0 0.0
  %1584 = vmatprep.subr.mxu0 0.0
  %1585 = vmatpush1.msra.mxu0 0.0
  %1586 = vmatprep.subr.mxu0 0.0
  %1587 = vmatpush1.msra.mxu0 0.0
  %1588 = vmatprep.subr.mxu0 0.0
  %1589 = vmatpush1.msra.mxu0 0.0
  %1590 = vmatprep.subr.mxu0 0.0
  %1591 = vmatpush1.msra.mxu0 0.0
  %1592 = vmatprep.subr.mxu0 0.0
  %1593 = vmatpush1.msra.mxu0 0.0
  %1594 = vmatprep.subr.mxu0 0.0
  %1595 = vmatpush1.msra.mxu0 0.0
  %1596 = vmatprep.subr.mxu0 0.0
  %1597 = vmatpush1.msra.mxu0 0.0
  %1598 = vmatprep.subr.mxu0 0.0
  %1599 = vmatpush1.msra.mxu0 0.0
  %1600 = vmatprep.subr.mxu0 0.0
  %1601 = vmatpush1.msra.mxu0 0.0
  %1602 = vmatprep.subr.mxu0 0.0
  %1603 = vmatpush1.msra.mxu0 0.0
  %1604 = vmatprep.subr.mxu0 0.0
  %1605 = vmatpush1.msra.mxu0 0.0
  %1606 = vmatprep.subr.mxu0 0.0
  %1607 = vmatpush1.msra.mxu0 0.0
  %1608 = vmatprep.subr.mxu0 0.0
  %1609 = vmatpush1.msra.mxu0 0.0
  %1610 = vmatprep.subr.mxu0 0.0
  %1611 = vmatpush1.msra.mxu0 0.0
  %1612 = vmatprep.subr.mxu0 0.0
  %1613 = vmatpush1.msra.mxu0 0.0
  %1614 = vmatprep.mubr.f32.mxu0 0.0
  %1615 = vmatmul.mubr.f32.gmra.mrb[0].mxu0 %v1548
  %v1616 = vpop.f32.mrb[0].mxu0
  %v1617 = vadd.f32 0.0, %v1616
  %v1618 = vpop.f32.mrb[0].mxu0
  %1619 = vdwg.mxu0
  %v1622 = vrot.slane %v1543, 4
  %v1623 = vrot.slane %v1544, 3
  %v1624 = vsel %vm343, %v1623, %v1622
  %1625 = vrot.lane.b32.xlu0 %v1624, 112
  %v1626 = vpop.permute.xlu0 %1625
  %v1627 = vsel %vm140, %v1626, 0
  %1629 = vmatprep.subr.mxu0 0.0
  %1630 = vmatpush1.msra.mxu0 %v35
  %1631 = vmatprep.subr.mxu0 0.0
  %1632 = vmatpush1.msra.mxu0 0.0
  %1633 = vmatprep.subr.mxu0 0.0
  %1634 = vmatpush1.msra.mxu0 0.0
  %1635 = vmatprep.subr.mxu0 0.0
  %1636 = vmatpush1.msra.mxu0 0.0
  %1637 = vmatprep.subr.mxu0 0.0
  %1638 = vmatpush1.msra.mxu0 0.0
  %1639 = vmatprep.subr.mxu0 0.0
  %1640 = vmatpush1.msra.mxu0 0.0
  %1641 = vmatprep.subr.mxu0 0.0
  %1642 = vmatpush1.msra.mxu0 0.0
  %1643 = vmatprep.subr.mxu0 0.0
  %1644 = vmatpush1.msra.mxu0 0.0
  %1645 = vmatprep.subr.mxu0 0.0
  %1646 = vmatpush1.msra.mxu0 0.0
  %1647 = vmatprep.subr.mxu0 0.0
  %1648 = vmatpush1.msra.mxu0 0.0
  %1649 = vmatprep.subr.mxu0 0.0
  %1650 = vmatpush1.msra.mxu0 0.0
  %1651 = vmatprep.subr.mxu0 0.0
  %1652 = vmatpush1.msra.mxu0 0.0
  %1653 = vmatprep.subr.mxu0 0.0
  %1654 = vmatpush1.msra.mxu0 0.0
  %1655 = vmatprep.subr.mxu0 0.0
  %1656 = vmatpush1.msra.mxu0 0.0
  %1657 = vmatprep.subr.mxu0 0.0
  %1658 = vmatpush1.msra.mxu0 0.0
  %1659 = vmatprep.subr.mxu0 0.0
  %1660 = vmatpush1.msra.mxu0 0.0
  %1661 = vmatprep.subr.mxu0 0.0
  %1662 = vmatpush1.msra.mxu0 0.0
  %1663 = vmatprep.subr.mxu0 0.0
  %1664 = vmatpush1.msra.mxu0 0.0
  %1665 = vmatprep.subr.mxu0 0.0
  %1666 = vmatpush1.msra.mxu0 0.0
  %1667 = vmatprep.subr.mxu0 0.0
  %1668 = vmatpush1.msra.mxu0 0.0
  %1669 = vmatprep.subr.mxu0 0.0
  %1670 = vmatpush1.msra.mxu0 0.0
  %1671 = vmatprep.subr.mxu0 0.0
  %1672 = vmatpush1.msra.mxu0 0.0
  %1673 = vmatprep.subr.mxu0 0.0
  %1674 = vmatpush1.msra.mxu0 0.0
  %1675 = vmatprep.subr.mxu0 0.0
  %1676 = vmatpush1.msra.mxu0 0.0
  %1677 = vmatprep.subr.mxu0 0.0
  %1678 = vmatpush1.msra.mxu0 0.0
  %1679 = vmatprep.subr.mxu0 0.0
  %1680 = vmatpush1.msra.mxu0 0.0
  %1681 = vmatprep.subr.mxu0 0.0
  %1682 = vmatpush1.msra.mxu0 0.0
  %1683 = vmatprep.subr.mxu0 0.0
  %1684 = vmatpush1.msra.mxu0 0.0
  %1685 = vmatprep.subr.mxu0 0.0
  %1686 = vmatpush1.msra.mxu0 0.0
  %1687 = vmatprep.subr.mxu0 0.0
  %1688 = vmatpush1.msra.mxu0 0.0
  %1689 = vmatprep.subr.mxu0 0.0
  %1690 = vmatpush1.msra.mxu0 0.0
  %1691 = vmatprep.subr.mxu0 0.0
  %1692 = vmatpush1.msra.mxu0 0.0
  %1693 = vmatprep.mubr.f32.mxu0 0.0
  %1694 = vmatmul.mubr.f32.gmra.mrb[0].mxu0 %v1627
  %v1695 = vpop.f32.mrb[0].mxu0
  %v1696 = vadd.f32 %v1617, %v1695
  %v1697 = vpop.f32.mrb[0].mxu0
  %1698 = vdwg.mxu0
  %v1699 = vadd.f32 %v1696, %v42
  %v1700 = vxor.u32 %v1699, 2147483648
  %v1701 = vmul.f32 %v1700, 1.442695
  %v1702 = vpow.pop %v1701
  %v1703 = vadd.f32 %v1702, 1.0
  %v1704 = vrcp.pop %v1703
  %v1705 = vmul.f32 1.0, %v1704
  %v1706 = vtanh.pop %v1699
  %v1707 = vmul.f32 %v1705, %v1396
  %1709 = vrot.lane.b32.xlu0 %v1706, 104
  %v1710 = vpop.permute.xlu0 %1709
  %v1712 = vmul.f32 %v1705, %v1710
  %1714 = vrot.lane.b32.xlu0 %v1712, 8
  %v1715 = vpop.permute.xlu0 %1714
  %v1717 = vadd.f32 %v1707, %v1715
  %v1718 = vtanh.pop %v1717
  %1720 = vrot.lane.b32.xlu0 %v1718, 8
  %v1721 = vpop.permute.xlu0 %1720
  %v1723 = vmul.f32 %v1705, %v1721
  %v1726 = vrot.slane %v1541, 4
  %v1727 = vrot.slane %v1542, 3
  %v1728 = vsel %vm343, %v1727, %v1726
  %1729 = vrot.lane.b32.xlu0 %v1728, 112
  %v1730 = vpop.permute.xlu0 %1729
  %v1731 = vsel %vm140, %v1730, 0
  %1733 = vmatprep.subr.mxu0 0.0
  %1734 = vmatpush1.msra.mxu0 %v34
  %1735 = vmatprep.subr.mxu0 0.0
  %1736 = vmatpush1.msra.mxu0 0.0
  %1737 = vmatprep.subr.mxu0 0.0
  %1738 = vmatpush1.msra.mxu0 0.0
  %1739 = vmatprep.subr.mxu0 0.0
  %1740 = vmatpush1.msra.mxu0 0.0
  %1741 = vmatprep.subr.mxu0 0.0
  %1742 = vmatpush1.msra.mxu0 0.0
  %1743 = vmatprep.subr.mxu0 0.0
  %1744 = vmatpush1.msra.mxu0 0.0
  %1745 = vmatprep.subr.mxu0 0.0
  %1746 = vmatpush1.msra.mxu0 0.0
  %1747 = vmatprep.subr.mxu0 0.0
  %1748 = vmatpush1.msra.mxu0 0.0
  %1749 = vmatprep.subr.mxu0 0.0
  %1750 = vmatpush1.msra.mxu0 0.0
  %1751 = vmatprep.subr.mxu0 0.0
  %1752 = vmatpush1.msra.mxu0 0.0
  %1753 = vmatprep.subr.mxu0 0.0
  %1754 = vmatpush1.msra.mxu0 0.0
  %1755 = vmatprep.subr.mxu0 0.0
  %1756 = vmatpush1.msra.mxu0 0.0
  %1757 = vmatprep.subr.mxu0 0.0
  %1758 = vmatpush1.msra.mxu0 0.0
  %1759 = vmatprep.subr.mxu0 0.0
  %1760 = vmatpush1.msra.mxu0 0.0
  %1761 = vmatprep.subr.mxu0 0.0
  %1762 = vmatpush1.msra.mxu0 0.0
  %1763 = vmatprep.subr.mxu0 0.0
  %1764 = vmatpush1.msra.mxu0 0.0
  %1765 = vmatprep.subr.mxu0 0.0
  %1766 = vmatpush1.msra.mxu0 0.0
  %1767 = vmatprep.subr.mxu0 0.0
  %1768 = vmatpush1.msra.mxu0 0.0
  %1769 = vmatprep.subr.mxu0 0.0
  %1770 = vmatpush1.msra.mxu0 0.0
  %1771 = vmatprep.subr.mxu0 0.0
  %1772 = vmatpush1.msra.mxu0 0.0
  %1773 = vmatprep.subr.mxu0 0.0
  %1774 = vmatpush1.msra.mxu0 0.0
  %1775 = vmatprep.subr.mxu0 0.0
  %1776 = vmatpush1.msra.mxu0 0.0
  %1777 = vmatprep.subr.mxu0 0.0
  %1778 = vmatpush1.msra.mxu0 0.0
  %1779 = vmatprep.subr.mxu0 0.0
  %1780 = vmatpush1.msra.mxu0 0.0
  %1781 = vmatprep.subr.mxu0 0.0
  %1782 = vmatpush1.msra.mxu0 0.0
  %1783 = vmatprep.subr.mxu0 0.0
  %1784 = vmatpush1.msra.mxu0 0.0
  %1785 = vmatprep.subr.mxu0 0.0
  %1786 = vmatpush1.msra.mxu0 0.0
  %1787 = vmatprep.subr.mxu0 0.0
  %1788 = vmatpush1.msra.mxu0 0.0
  %1789 = vmatprep.subr.mxu0 0.0
  %1790 = vmatpush1.msra.mxu0 0.0
  %1791 = vmatprep.subr.mxu0 0.0
  %1792 = vmatpush1.msra.mxu0 0.0
  %1793 = vmatprep.subr.mxu0 0.0
  %1794 = vmatpush1.msra.mxu0 0.0
  %1795 = vmatprep.subr.mxu0 0.0
  %1796 = vmatpush1.msra.mxu0 0.0
  %1797 = vmatprep.mubr.f32.mxu0 0.0
  %1798 = vmatmul.mubr.f32.gmra.mrb[0].mxu0 %v1731
  %v1799 = vpop.f32.mrb[0].mxu0
  %v1800 = vadd.f32 0.0, %v1799
  %v1801 = vpop.f32.mrb[0].mxu0
  %1802 = vdwg.mxu0
  %v1804 = vrot.slane %v1800, 3
  %v1805 = vrot.slane %v1800, 4
  %v1808 = vadd.f32 %v132, %v1804
  %v1809 = vadd.f32 %v137, %v1805
  %v1810 = vxor.u32 %v1808, 2147483648
  %v1811 = vxor.u32 %v1809, 2147483648
  %v1812 = vmul.f32 %v1810, 1.442695
  %v1813 = vpow.pop %v1812
  %v1814 = vmul.f32 %v1811, 1.442695
  %v1815 = vpow.pop %v1814
  %v1816 = vadd.f32 %v1813, 1.0
  %v1817 = vadd.f32 %v1815, 1.0
  %v1818 = vrcp.pop %v1816
  %v1819 = vmul.f32 1.0, %v1818
  %v1820 = vrcp.pop %v1817
  %v1821 = vmul.f32 1.0, %v1820
  %v1822 = vtanh.pop %v1808
  %v1823 = vtanh.pop %v1809
  %v1826 = vrot.slane %v1529, 7
  %v1827 = vrot.slane %v1530, 7
  %v1830 = vmul.f32 %v1819, %v1826
  %v1831 = vmul.f32 %v1821, %v1827
  %1834 = vrot.lane.b32.xlu0 %v1822, 104
  %v1835 = vpop.permute.xlu0 %1834
  %1836 = vrot.lane.b32.xlu0 %v1823, 104
  %v1837 = vpop.permute.xlu0 %1836
  %v1840 = vmul.f32 %v1819, %v1835
  %v1841 = vmul.f32 %v1821, %v1837
  %1844 = vrot.lane.b32.xlu0 %v1840, 8
  %v1845 = vpop.permute.xlu0 %1844
  %1846 = vrot.lane.b32.xlu0 %v1841, 8
  %v1847 = vpop.permute.xlu0 %1846
  %v1850 = vadd.f32 %v1830, %v1845
  %v1851 = vadd.f32 %v1831, %v1847
  %v1852 = vtanh.pop %v1850
  %v1853 = vtanh.pop %v1851
  %1856 = vrot.lane.b32.xlu0 %v1852, 8
  %v1857 = vpop.permute.xlu0 %1856
  %1858 = vrot.lane.b32.xlu0 %v1853, 8
  %v1859 = vpop.permute.xlu0 %1858
  %v1862 = vmul.f32 %v1819, %v1857
  %v1863 = vmul.f32 %v1821, %v1859
  %v1864 = vtanh.pop %v1862
  %v1865 = vtanh.pop %v1863
  %1867 = vrot.lane.b32.xlu0 %v1723, 112
  %v1868 = vpop.permute.xlu0 %1867
  %v1869 = vsel %vm140, %v1868, 0
  %1871 = vmatprep.subr.mxu0 0.0
  %1872 = vmatpush1.msra.mxu0 %v36
  %1873 = vmatprep.subr.mxu0 0.0
  %1874 = vmatpush1.msra.mxu0 0.0
  %1875 = vmatprep.subr.mxu0 0.0
  %1876 = vmatpush1.msra.mxu0 0.0
  %1877 = vmatprep.subr.mxu0 0.0
  %1878 = vmatpush1.msra.mxu0 0.0
  %1879 = vmatprep.subr.mxu0 0.0
  %1880 = vmatpush1.msra.mxu0 0.0
  %1881 = vmatprep.subr.mxu0 0.0
  %1882 = vmatpush1.msra.mxu0 0.0
  %1883 = vmatprep.subr.mxu0 0.0
  %1884 = vmatpush1.msra.mxu0 0.0
  %1885 = vmatprep.subr.mxu0 0.0
  %1886 = vmatpush1.msra.mxu0 0.0
  %1887 = vmatprep.subr.mxu0 0.0
  %1888 = vmatpush1.msra.mxu0 0.0
  %1889 = vmatprep.subr.mxu0 0.0
  %1890 = vmatpush1.msra.mxu0 0.0
  %1891 = vmatprep.subr.mxu0 0.0
  %1892 = vmatpush1.msra.mxu0 0.0
  %1893 = vmatprep.subr.mxu0 0.0
  %1894 = vmatpush1.msra.mxu0 0.0
  %1895 = vmatprep.subr.mxu0 0.0
  %1896 = vmatpush1.msra.mxu0 0.0
  %1897 = vmatprep.subr.mxu0 0.0
  %1898 = vmatpush1.msra.mxu0 0.0
  %1899 = vmatprep.subr.mxu0 0.0
  %1900 = vmatpush1.msra.mxu0 0.0
  %1901 = vmatprep.subr.mxu0 0.0
  %1902 = vmatpush1.msra.mxu0 0.0
  %1903 = vmatprep.subr.mxu0 0.0
  %1904 = vmatpush1.msra.mxu0 0.0
  %1905 = vmatprep.subr.mxu0 0.0
  %1906 = vmatpush1.msra.mxu0 0.0
  %1907 = vmatprep.subr.mxu0 0.0
  %1908 = vmatpush1.msra.mxu0 0.0
  %1909 = vmatprep.subr.mxu0 0.0
  %1910 = vmatpush1.msra.mxu0 0.0
  %1911 = vmatprep.subr.mxu0 0.0
  %1912 = vmatpush1.msra.mxu0 0.0
  %1913 = vmatprep.subr.mxu0 0.0
  %1914 = vmatpush1.msra.mxu0 0.0
  %1915 = vmatprep.subr.mxu0 0.0
  %1916 = vmatpush1.msra.mxu0 0.0
  %1917 = vmatprep.subr.mxu0 0.0
  %1918 = vmatpush1.msra.mxu0 0.0
  %1919 = vmatprep.subr.mxu0 0.0
  %1920 = vmatpush1.msra.mxu0 0.0
  %1921 = vmatprep.subr.mxu0 0.0
  %1922 = vmatpush1.msra.mxu0 0.0
  %1923 = vmatprep.subr.mxu0 0.0
  %1924 = vmatpush1.msra.mxu0 0.0
  %1925 = vmatprep.subr.mxu0 0.0
  %1926 = vmatpush1.msra.mxu0 0.0
  %1927 = vmatprep.subr.mxu0 0.0
  %1928 = vmatpush1.msra.mxu0 0.0
  %1929 = vmatprep.subr.mxu0 0.0
  %1930 = vmatpush1.msra.mxu0 0.0
  %1931 = vmatprep.subr.mxu0 0.0
  %1932 = vmatpush1.msra.mxu0 0.0
  %1933 = vmatprep.subr.mxu0 0.0
  %1934 = vmatpush1.msra.mxu0 0.0
  %1935 = vmatprep.mubr.f32.mxu0 0.0
  %1936 = vmatmul.mubr.f32.gmra.mrb[0].mxu0 %v1869
  %v1937 = vpop.f32.mrb[0].mxu0
  %v1938 = vadd.f32 0.0, %v1937
  %v1939 = vpop.f32.mrb[0].mxu0
  %1940 = vdwg.mxu0
  %v1943 = vrot.slane %v1864, 5
  %v1944 = vrot.slane %v1865, 4
  %v1945 = vsel %vm343, %v1944, %v1943
  %1946 = vrot.lane.b32.xlu0 %v1945, 112
  %v1947 = vpop.permute.xlu0 %1946
  %v1948 = vsel %vm140, %v1947, 0
  %1950 = vmatprep.subr.mxu0 0.0
  %1951 = vmatpush1.msra.mxu0 %v35
  %1952 = vmatprep.subr.mxu0 0.0
  %1953 = vmatpush1.msra.mxu0 0.0
  %1954 = vmatprep.subr.mxu0 0.0
  %1955 = vmatpush1.msra.mxu0 0.0
  %1956 = vmatprep.subr.mxu0 0.0
  %1957 = vmatpush1.msra.mxu0 0.0
  %1958 = vmatprep.subr.mxu0 0.0
  %1959 = vmatpush1.msra.mxu0 0.0
  %1960 = vmatprep.subr.mxu0 0.0
  %1961 = vmatpush1.msra.mxu0 0.0
  %1962 = vmatprep.subr.mxu0 0.0
  %1963 = vmatpush1.msra.mxu0 0.0
  %1964 = vmatprep.subr.mxu0 0.0
  %1965 = vmatpush1.msra.mxu0 0.0
  %1966 = vmatprep.subr.mxu0 0.0
  %1967 = vmatpush1.msra.mxu0 0.0
  %1968 = vmatprep.subr.mxu0 0.0
  %1969 = vmatpush1.msra.mxu0 0.0
  %1970 = vmatprep.subr.mxu0 0.0
  %1971 = vmatpush1.msra.mxu0 0.0
  %1972 = vmatprep.subr.mxu0 0.0
  %1973 = vmatpush1.msra.mxu0 0.0
  %1974 = vmatprep.subr.mxu0 0.0
  %1975 = vmatpush1.msra.mxu0 0.0
  %1976 = vmatprep.subr.mxu0 0.0
  %1977 = vmatpush1.msra.mxu0 0.0
  %1978 = vmatprep.subr.mxu0 0.0
  %1979 = vmatpush1.msra.mxu0 0.0
  %1980 = vmatprep.subr.mxu0 0.0
  %1981 = vmatpush1.msra.mxu0 0.0
  %1982 = vmatprep.subr.mxu0 0.0
  %1983 = vmatpush1.msra.mxu0 0.0
  %1984 = vmatprep.subr.mxu0 0.0
  %1985 = vmatpush1.msra.mxu0 0.0
  %1986 = vmatprep.subr.mxu0 0.0
  %1987 = vmatpush1.msra.mxu0 0.0
  %1988 = vmatprep.subr.mxu0 0.0
  %1989 = vmatpush1.msra.mxu0 0.0
  %1990 = vmatprep.subr.mxu0 0.0
  %1991 = vmatpush1.msra.mxu0 0.0
  %1992 = vmatprep.subr.mxu0 0.0
  %1993 = vmatpush1.msra.mxu0 0.0
  %1994 = vmatprep.subr.mxu0 0.0
  %1995 = vmatpush1.msra.mxu0 0.0
  %1996 = vmatprep.subr.mxu0 0.0
  %1997 = vmatpush1.msra.mxu0 0.0
  %1998 = vmatprep.subr.mxu0 0.0
  %1999 = vmatpush1.msra.mxu0 0.0
  %2000 = vmatprep.subr.mxu0 0.0
  %2001 = vmatpush1.msra.mxu0 0.0
  %2002 = vmatprep.subr.mxu0 0.0
  %2003 = vmatpush1.msra.mxu0 0.0
  %2004 = vmatprep.subr.mxu0 0.0
  %2005 = vmatpush1.msra.mxu0 0.0
  %2006 = vmatprep.subr.mxu0 0.0
  %2007 = vmatpush1.msra.mxu0 0.0
  %2008 = vmatprep.subr.mxu0 0.0
  %2009 = vmatpush1.msra.mxu0 0.0
  %2010 = vmatprep.subr.mxu0 0.0
  %2011 = vmatpush1.msra.mxu0 0.0
  %2012 = vmatprep.subr.mxu0 0.0
  %2013 = vmatpush1.msra.mxu0 0.0
  %2014 = vmatprep.mubr.f32.mxu0 0.0
  %2015 = vmatmul.mubr.f32.gmra.mrb[0].mxu0 %v1948
  %v2016 = vpop.f32.mrb[0].mxu0
  %v2017 = vadd.f32 %v1938, %v2016
  %v2018 = vpop.f32.mrb[0].mxu0
  %2019 = vdwg.mxu0
  %v2020 = vadd.f32 %v2017, %v42
  %v2021 = vxor.u32 %v2020, 2147483648
  %v2022 = vmul.f32 %v2021, 1.442695
  %v2023 = vpow.pop %v2022
  %v2024 = vadd.f32 %v2023, 1.0
  %v2025 = vrcp.pop %v2024
  %v2026 = vmul.f32 1.0, %v2025
  %v2027 = vtanh.pop %v2020
  %v2028 = vmul.f32 %v2026, %v1717
  %2030 = vrot.lane.b32.xlu0 %v2027, 104
  %v2031 = vpop.permute.xlu0 %2030
  %v2033 = vmul.f32 %v2026, %v2031
  %2035 = vrot.lane.b32.xlu0 %v2033, 8
  %v2036 = vpop.permute.xlu0 %2035
  %v2038 = vadd.f32 %v2028, %v2036
  %v2039 = vtanh.pop %v2038
  %2041 = vrot.lane.b32.xlu0 %v2039, 8
  %v2042 = vpop.permute.xlu0 %2041
  %v2044 = vmul.f32 %v2026, %v2042
  %v2047 = vrot.slane %v1862, 5
  %v2048 = vrot.slane %v1863, 4
  %v2049 = vsel %vm343, %v2048, %v2047
  %2050 = vrot.lane.b32.xlu0 %v2049, 112
  %v2051 = vpop.permute.xlu0 %2050
  %v2052 = vsel %vm140, %v2051, 0
  %2054 = vmatprep.subr.mxu0 0.0
  %2055 = vmatpush1.msra.mxu0 %v34
  %2056 = vmatprep.subr.mxu0 0.0
  %2057 = vmatpush1.msra.mxu0 0.0
  %2058 = vmatprep.subr.mxu0 0.0
  %2059 = vmatpush1.msra.mxu0 0.0
  %2060 = vmatprep.subr.mxu0 0.0
  %2061 = vmatpush1.msra.mxu0 0.0
  %2062 = vmatprep.subr.mxu0 0.0
  %2063 = vmatpush1.msra.mxu0 0.0
  %2064 = vmatprep.subr.mxu0 0.0
  %2065 = vmatpush1.msra.mxu0 0.0
  %2066 = vmatprep.subr.mxu0 0.0
  %2067 = vmatpush1.msra.mxu0 0.0
  %2068 = vmatprep.subr.mxu0 0.0
  %2069 = vmatpush1.msra.mxu0 0.0
  %2070 = vmatprep.subr.mxu0 0.0
  %2071 = vmatpush1.msra.mxu0 0.0
  %2072 = vmatprep.subr.mxu0 0.0
  %2073 = vmatpush1.msra.mxu0 0.0
  %2074 = vmatprep.subr.mxu0 0.0
  %2075 = vmatpush1.msra.mxu0 0.0
  %2076 = vmatprep.subr.mxu0 0.0
  %2077 = vmatpush1.msra.mxu0 0.0
  %2078 = vmatprep.subr.mxu0 0.0
  %2079 = vmatpush1.msra.mxu0 0.0
  %2080 = vmatprep.subr.mxu0 0.0
  %2081 = vmatpush1.msra.mxu0 0.0
  %2082 = vmatprep.subr.mxu0 0.0
  %2083 = vmatpush1.msra.mxu0 0.0
  %2084 = vmatprep.subr.mxu0 0.0
  %2085 = vmatpush1.msra.mxu0 0.0
  %2086 = vmatprep.subr.mxu0 0.0
  %2087 = vmatpush1.msra.mxu0 0.0
  %2088 = vmatprep.subr.mxu0 0.0
  %2089 = vmatpush1.msra.mxu0 0.0
  %2090 = vmatprep.subr.mxu0 0.0
  %2091 = vmatpush1.msra.mxu0 0.0
  %2092 = vmatprep.subr.mxu0 0.0
  %2093 = vmatpush1.msra.mxu0 0.0
  %2094 = vmatprep.subr.mxu0 0.0
  %2095 = vmatpush1.msra.mxu0 0.0
  %2096 = vmatprep.subr.mxu0 0.0
  %2097 = vmatpush1.msra.mxu0 0.0
  %2098 = vmatprep.subr.mxu0 0.0
  %2099 = vmatpush1.msra.mxu0 0.0
  %2100 = vmatprep.subr.mxu0 0.0
  %2101 = vmatpush1.msra.mxu0 0.0
  %2102 = vmatprep.subr.mxu0 0.0
  %2103 = vmatpush1.msra.mxu0 0.0
  %2104 = vmatprep.subr.mxu0 0.0
  %2105 = vmatpush1.msra.mxu0 0.0
  %2106 = vmatprep.subr.mxu0 0.0
  %2107 = vmatpush1.msra.mxu0 0.0
  %2108 = vmatprep.subr.mxu0 0.0
  %2109 = vmatpush1.msra.mxu0 0.0
  %2110 = vmatprep.subr.mxu0 0.0
  %2111 = vmatpush1.msra.mxu0 0.0
  %2112 = vmatprep.subr.mxu0 0.0
  %2113 = vmatpush1.msra.mxu0 0.0
  %2114 = vmatprep.subr.mxu0 0.0
  %2115 = vmatpush1.msra.mxu0 0.0
  %2116 = vmatprep.subr.mxu0 0.0
  %2117 = vmatpush1.msra.mxu0 0.0
  %2118 = vmatprep.mubr.f32.mxu0 0.0
  %2119 = vmatmul.mubr.f32.gmra.mrb[0].mxu0 %v2052
  %v2120 = vpop.f32.mrb[0].mxu0
  %v2121 = vadd.f32 0.0, %v2120
  %v2122 = vpop.f32.mrb[0].mxu0
  %2123 = vdwg.mxu0
  %v2125 = vrot.slane %v2121, 2
  %v2126 = vrot.slane %v2121, 3
  %v2129 = vadd.f32 %v132, %v2125
  %v2130 = vadd.f32 %v137, %v2126
  %v2131 = vxor.u32 %v2129, 2147483648
  %v2132 = vxor.u32 %v2130, 2147483648
  %v2133 = vmul.f32 %v2131, 1.442695
  %v2134 = vpow.pop %v2133
  %v2135 = vmul.f32 %v2132, 1.442695
  %v2136 = vpow.pop %v2135
  %v2137 = vadd.f32 %v2134, 1.0
  %v2138 = vadd.f32 %v2136, 1.0
  %v2139 = vrcp.pop %v2137
  %v2140 = vmul.f32 1.0, %v2139
  %v2141 = vrcp.pop %v2138
  %v2142 = vmul.f32 1.0, %v2141
  %v2143 = vtanh.pop %v2129
  %v2144 = vtanh.pop %v2130
  %v2147 = vrot.slane %v1850, 7
  %v2148 = vrot.slane %v1851, 7
  %v2151 = vmul.f32 %v2140, %v2147
  %v2152 = vmul.f32 %v2142, %v2148
  %2155 = vrot.lane.b32.xlu0 %v2143, 104
  %v2156 = vpop.permute.xlu0 %2155
  %2157 = vrot.lane.b32.xlu0 %v2144, 104
  %v2158 = vpop.permute.xlu0 %2157
  %v2161 = vmul.f32 %v2140, %v2156
  %v2162 = vmul.f32 %v2142, %v2158
  %2165 = vrot.lane.b32.xlu0 %v2161, 8
  %v2166 = vpop.permute.xlu0 %2165
  %2167 = vrot.lane.b32.xlu0 %v2162, 8
  %v2168 = vpop.permute.xlu0 %2167
  %v2171 = vadd.f32 %v2151, %v2166
  %v2172 = vadd.f32 %v2152, %v2168
  %v2173 = vtanh.pop %v2171
  %v2174 = vtanh.pop %v2172
  %2177 = vrot.lane.b32.xlu0 %v2173, 8
  %v2178 = vpop.permute.xlu0 %2177
  %2179 = vrot.lane.b32.xlu0 %v2174, 8
  %v2180 = vpop.permute.xlu0 %2179
  %v2183 = vmul.f32 %v2140, %v2178
  %v2184 = vmul.f32 %v2142, %v2180
  %v2185 = vtanh.pop %v2183
  %v2186 = vtanh.pop %v2184
  %2188 = vrot.lane.b32.xlu0 %v2044, 112
  %v2189 = vpop.permute.xlu0 %2188
  %v2190 = vsel %vm140, %v2189, 0
  %2192 = vmatprep.subr.mxu0 0.0
  %2193 = vmatpush1.msra.mxu0 %v36
  %2194 = vmatprep.subr.mxu0 0.0
  %2195 = vmatpush1.msra.mxu0 0.0
  %2196 = vmatprep.subr.mxu0 0.0
  %2197 = vmatpush1.msra.mxu0 0.0
  %2198 = vmatprep.subr.mxu0 0.0
  %2199 = vmatpush1.msra.mxu0 0.0
  %2200 = vmatprep.subr.mxu0 0.0
  %2201 = vmatpush1.msra.mxu0 0.0
  %2202 = vmatprep.subr.mxu0 0.0
  %2203 = vmatpush1.msra.mxu0 0.0
  %2204 = vmatprep.subr.mxu0 0.0
  %2205 = vmatpush1.msra.mxu0 0.0
  %2206 = vmatprep.subr.mxu0 0.0
  %2207 = vmatpush1.msra.mxu0 0.0
  %2208 = vmatprep.subr.mxu0 0.0
  %2209 = vmatpush1.msra.mxu0 0.0
  %2210 = vmatprep.subr.mxu0 0.0
  %2211 = vmatpush1.msra.mxu0 0.0
  %2212 = vmatprep.subr.mxu0 0.0
  %2213 = vmatpush1.msra.mxu0 0.0
  %2214 = vmatprep.subr.mxu0 0.0
  %2215 = vmatpush1.msra.mxu0 0.0
  %2216 = vmatprep.subr.mxu0 0.0
  %2217 = vmatpush1.msra.mxu0 0.0
  %2218 = vmatprep.subr.mxu0 0.0
  %2219 = vmatpush1.msra.mxu0 0.0
  %2220 = vmatprep.subr.mxu0 0.0
  %2221 = vmatpush1.msra.mxu0 0.0
  %2222 = vmatprep.subr.mxu0 0.0
  %2223 = vmatpush1.msra.mxu0 0.0
  %2224 = vmatprep.subr.mxu0 0.0
  %2225 = vmatpush1.msra.mxu0 0.0
  %2226 = vmatprep.subr.mxu0 0.0
  %2227 = vmatpush1.msra.mxu0 0.0
  %2228 = vmatprep.subr.mxu0 0.0
  %2229 = vmatpush1.msra.mxu0 0.0
  %2230 = vmatprep.subr.mxu0 0.0
  %2231 = vmatpush1.msra.mxu0 0.0
  %2232 = vmatprep.subr.mxu0 0.0
  %2233 = vmatpush1.msra.mxu0 0.0
  %2234 = vmatprep.subr.mxu0 0.0
  %2235 = vmatpush1.msra.mxu0 0.0
  %2236 = vmatprep.subr.mxu0 0.0
  %2237 = vmatpush1.msra.mxu0 0.0
  %2238 = vmatprep.subr.mxu0 0.0
  %2239 = vmatpush1.msra.mxu0 0.0
  %2240 = vmatprep.subr.mxu0 0.0
  %2241 = vmatpush1.msra.mxu0 0.0
  %2242 = vmatprep.subr.mxu0 0.0
  %2243 = vmatpush1.msra.mxu0 0.0
  %2244 = vmatprep.subr.mxu0 0.0
  %2245 = vmatpush1.msra.mxu0 0.0
  %2246 = vmatprep.subr.mxu0 0.0
  %2247 = vmatpush1.msra.mxu0 0.0
  %2248 = vmatprep.subr.mxu0 0.0
  %2249 = vmatpush1.msra.mxu0 0.0
  %2250 = vmatprep.subr.mxu0 0.0
  %2251 = vmatpush1.msra.mxu0 0.0
  %2252 = vmatprep.subr.mxu0 0.0
  %2253 = vmatpush1.msra.mxu0 0.0
  %2254 = vmatprep.subr.mxu0 0.0
  %2255 = vmatpush1.msra.mxu0 0.0
  %2256 = vmatprep.mubr.f32.mxu0 0.0
  %2257 = vmatmul.mubr.f32.gmra.mrb[0].mxu0 %v2190
  %v2258 = vpop.f32.mrb[0].mxu0
  %v2259 = vadd.f32 0.0, %v2258
  %v2260 = vpop.f32.mrb[0].mxu0
  %2261 = vdwg.mxu0
  %v2264 = vrot.slane %v2185, 6
  %v2265 = vrot.slane %v2186, 5
  %v2266 = vsel %vm343, %v2265, %v2264
  %2267 = vrot.lane.b32.xlu0 %v2266, 112
  %v2268 = vpop.permute.xlu0 %2267
  %v2269 = vsel %vm140, %v2268, 0
  %2271 = vmatprep.subr.mxu0 0.0
  %2272 = vmatpush1.msra.mxu0 %v35
  %2273 = vmatprep.subr.mxu0 0.0
  %2274 = vmatpush1.msra.mxu0 0.0
  %2275 = vmatprep.subr.mxu0 0.0
  %2276 = vmatpush1.msra.mxu0 0.0
  %2277 = vmatprep.subr.mxu0 0.0
  %2278 = vmatpush1.msra.mxu0 0.0
  %2279 = vmatprep.subr.mxu0 0.0
  %2280 = vmatpush1.msra.mxu0 0.0
  %2281 = vmatprep.subr.mxu0 0.0
  %2282 = vmatpush1.msra.mxu0 0.0
  %2283 = vmatprep.subr.mxu0 0.0
  %2284 = vmatpush1.msra.mxu0 0.0
  %2285 = vmatprep.subr.mxu0 0.0
  %2286 = vmatpush1.msra.mxu0 0.0
  %2287 = vmatprep.subr.mxu0 0.0
  %2288 = vmatpush1.msra.mxu0 0.0
  %2289 = vmatprep.subr.mxu0 0.0
  %2290 = vmatpush1.msra.mxu0 0.0
  %2291 = vmatprep.subr.mxu0 0.0
  %2292 = vmatpush1.msra.mxu0 0.0
  %2293 = vmatprep.subr.mxu0 0.0
  %2294 = vmatpush1.msra.mxu0 0.0
  %2295 = vmatprep.subr.mxu0 0.0
  %2296 = vmatpush1.msra.mxu0 0.0
  %2297 = vmatprep.subr.mxu0 0.0
  %2298 = vmatpush1.msra.mxu0 0.0
  %2299 = vmatprep.subr.mxu0 0.0
  %2300 = vmatpush1.msra.mxu0 0.0
  %2301 = vmatprep.subr.mxu0 0.0
  %2302 = vmatpush1.msra.mxu0 0.0
  %2303 = vmatprep.subr.mxu0 0.0
  %2304 = vmatpush1.msra.mxu0 0.0
  %2305 = vmatprep.subr.mxu0 0.0
  %2306 = vmatpush1.msra.mxu0 0.0
  %2307 = vmatprep.subr.mxu0 0.0
  %2308 = vmatpush1.msra.mxu0 0.0
  %2309 = vmatprep.subr.mxu0 0.0
  %2310 = vmatpush1.msra.mxu0 0.0
  %2311 = vmatprep.subr.mxu0 0.0
  %2312 = vmatpush1.msra.mxu0 0.0
  %2313 = vmatprep.subr.mxu0 0.0
  %2314 = vmatpush1.msra.mxu0 0.0
  %2315 = vmatprep.subr.mxu0 0.0
  %2316 = vmatpush1.msra.mxu0 0.0
  %2317 = vmatprep.subr.mxu0 0.0
  %2318 = vmatpush1.msra.mxu0 0.0
  %2319 = vmatprep.subr.mxu0 0.0
  %2320 = vmatpush1.msra.mxu0 0.0
  %2321 = vmatprep.subr.mxu0 0.0
  %2322 = vmatpush1.msra.mxu0 0.0
  %2323 = vmatprep.subr.mxu0 0.0
  %2324 = vmatpush1.msra.mxu0 0.0
  %2325 = vmatprep.subr.mxu0 0.0
  %2326 = vmatpush1.msra.mxu0 0.0
  %2327 = vmatprep.subr.mxu0 0.0
  %2328 = vmatpush1.msra.mxu0 0.0
  %2329 = vmatprep.subr.mxu0 0.0
  %2330 = vmatpush1.msra.mxu0 0.0
  %2331 = vmatprep.subr.mxu0 0.0
  %2332 = vmatpush1.msra.mxu0 0.0
  %2333 = vmatprep.subr.mxu0 0.0
  %2334 = vmatpush1.msra.mxu0 0.0
  %2335 = vmatprep.mubr.f32.mxu0 0.0
  %2336 = vmatmul.mubr.f32.gmra.mrb[0].mxu0 %v2269
  %v2337 = vpop.f32.mrb[0].mxu0
  %v2338 = vadd.f32 %v2259, %v2337
  %v2339 = vpop.f32.mrb[0].mxu0
  %2340 = vdwg.mxu0
  %v2341 = vadd.f32 %v2338, %v42
  %v2342 = vxor.u32 %v2341, 2147483648
  %v2343 = vmul.f32 %v2342, 1.442695
  %v2344 = vpow.pop %v2343
  %v2345 = vadd.f32 %v2344, 1.0
  %v2346 = vrcp.pop %v2345
  %v2347 = vmul.f32 1.0, %v2346
  %v2348 = vtanh.pop %v2341
  %v2349 = vmul.f32 %v2347, %v2038
  %2351 = vrot.lane.b32.xlu0 %v2348, 104
  %v2352 = vpop.permute.xlu0 %2351
  %v2354 = vmul.f32 %v2347, %v2352
  %2356 = vrot.lane.b32.xlu0 %v2354, 8
  %v2357 = vpop.permute.xlu0 %2356
  %v2359 = vadd.f32 %v2349, %v2357
  %v2360 = vtanh.pop %v2359
  %2362 = vrot.lane.b32.xlu0 %v2360, 8
  %v2363 = vpop.permute.xlu0 %2362
  %v2365 = vmul.f32 %v2347, %v2363
  %v2368 = vrot.slane %v2183, 6
  %v2369 = vrot.slane %v2184, 5
  %v2370 = vsel %vm343, %v2369, %v2368
  %2371 = vrot.lane.b32.xlu0 %v2370, 112
  %v2372 = vpop.permute.xlu0 %2371
  %v2373 = vsel %vm140, %v2372, 0
  %2375 = vmatprep.subr.mxu0 0.0
  %2376 = vmatpush1.msra.mxu0 %v34
  %2377 = vmatprep.subr.mxu0 0.0
  %2378 = vmatpush1.msra.mxu0 0.0
  %2379 = vmatprep.subr.mxu0 0.0
  %2380 = vmatpush1.msra.mxu0 0.0
  %2381 = vmatprep.subr.mxu0 0.0
  %2382 = vmatpush1.msra.mxu0 0.0
  %2383 = vmatprep.subr.mxu0 0.0
  %2384 = vmatpush1.msra.mxu0 0.0
  %2385 = vmatprep.subr.mxu0 0.0
  %2386 = vmatpush1.msra.mxu0 0.0
  %2387 = vmatprep.subr.mxu0 0.0
  %2388 = vmatpush1.msra.mxu0 0.0
  %2389 = vmatprep.subr.mxu0 0.0
  %2390 = vmatpush1.msra.mxu0 0.0
  %2391 = vmatprep.subr.mxu0 0.0
  %2392 = vmatpush1.msra.mxu0 0.0
  %2393 = vmatprep.subr.mxu0 0.0
  %2394 = vmatpush1.msra.mxu0 0.0
  %2395 = vmatprep.subr.mxu0 0.0
  %2396 = vmatpush1.msra.mxu0 0.0
  %2397 = vmatprep.subr.mxu0 0.0
  %2398 = vmatpush1.msra.mxu0 0.0
  %2399 = vmatprep.subr.mxu0 0.0
  %2400 = vmatpush1.msra.mxu0 0.0
  %2401 = vmatprep.subr.mxu0 0.0
  %2402 = vmatpush1.msra.mxu0 0.0
  %2403 = vmatprep.subr.mxu0 0.0
  %2404 = vmatpush1.msra.mxu0 0.0
  %2405 = vmatprep.subr.mxu0 0.0
  %2406 = vmatpush1.msra.mxu0 0.0
  %2407 = vmatprep.subr.mxu0 0.0
  %2408 = vmatpush1.msra.mxu0 0.0
  %2409 = vmatprep.subr.mxu0 0.0
  %2410 = vmatpush1.msra.mxu0 0.0
  %2411 = vmatprep.subr.mxu0 0.0
  %2412 = vmatpush1.msra.mxu0 0.0
  %2413 = vmatprep.subr.mxu0 0.0
  %2414 = vmatpush1.msra.mxu0 0.0
  %2415 = vmatprep.subr.mxu0 0.0
  %2416 = vmatpush1.msra.mxu0 0.0
  %2417 = vmatprep.subr.mxu0 0.0
  %2418 = vmatpush1.msra.mxu0 0.0
  %2419 = vmatprep.subr.mxu0 0.0
  %2420 = vmatpush1.msra.mxu0 0.0
  %2421 = vmatprep.subr.mxu0 0.0
  %2422 = vmatpush1.msra.mxu0 0.0
  %2423 = vmatprep.subr.mxu0 0.0
  %2424 = vmatpush1.msra.mxu0 0.0
  %2425 = vmatprep.subr.mxu0 0.0
  %2426 = vmatpush1.msra.mxu0 0.0
  %2427 = vmatprep.subr.mxu0 0.0
  %2428 = vmatpush1.msra.mxu0 0.0
  %2429 = vmatprep.subr.mxu0 0.0
  %2430 = vmatpush1.msra.mxu0 0.0
  %2431 = vmatprep.subr.mxu0 0.0
  %2432 = vmatpush1.msra.mxu0 0.0
  %2433 = vmatprep.subr.mxu0 0.0
  %2434 = vmatpush1.msra.mxu0 0.0
  %2435 = vmatprep.subr.mxu0 0.0
  %2436 = vmatpush1.msra.mxu0 0.0
  %2437 = vmatprep.subr.mxu0 0.0
  %2438 = vmatpush1.msra.mxu0 0.0
  %2439 = vmatprep.mubr.f32.mxu0 0.0
  %2440 = vmatmul.mubr.f32.gmra.mrb[0].mxu0 %v2373
  %v2441 = vpop.f32.mrb[0].mxu0
  %v2442 = vadd.f32 0.0, %v2441
  %v2443 = vpop.f32.mrb[0].mxu0
  %2444 = vdwg.mxu0
  %v2446 = vrot.slane %v2442, 1
  %v2447 = vrot.slane %v2442, 2
  %v2450 = vadd.f32 %v132, %v2446
  %v2451 = vadd.f32 %v137, %v2447
  %v2452 = vxor.u32 %v2450, 2147483648
  %v2453 = vxor.u32 %v2451, 2147483648
  %v2454 = vmul.f32 %v2452, 1.442695
  %v2455 = vpow.pop %v2454
  %v2456 = vmul.f32 %v2453, 1.442695
  %v2457 = vpow.pop %v2456
  %v2458 = vadd.f32 %v2455, 1.0
  %v2459 = vadd.f32 %v2457, 1.0
  %v2460 = vrcp.pop %v2458
  %v2461 = vmul.f32 1.0, %v2460
  %v2462 = vrcp.pop %v2459
  %v2463 = vmul.f32 1.0, %v2462
  %v2464 = vtanh.pop %v2450
  %v2465 = vtanh.pop %v2451
  %v2468 = vrot.slane %v2171, 7
  %v2469 = vrot.slane %v2172, 7
  %v2472 = vmul.f32 %v2461, %v2468
  %v2473 = vmul.f32 %v2463, %v2469
  %2476 = vrot.lane.b32.xlu0 %v2464, 104
  %v2477 = vpop.permute.xlu0 %2476
  %2478 = vrot.lane.b32.xlu0 %v2465, 104
  %v2479 = vpop.permute.xlu0 %2478
  %v2482 = vmul.f32 %v2461, %v2477
  %v2483 = vmul.f32 %v2463, %v2479
  %2486 = vrot.lane.b32.xlu0 %v2482, 8
  %v2487 = vpop.permute.xlu0 %2486
  %2488 = vrot.lane.b32.xlu0 %v2483, 8
  %v2489 = vpop.permute.xlu0 %2488
  %v2492 = vadd.f32 %v2472, %v2487
  %v2493 = vadd.f32 %v2473, %v2489
  %v2494 = vtanh.pop %v2492
  %v2495 = vtanh.pop %v2493
  %2498 = vrot.lane.b32.xlu0 %v2494, 8
  %v2499 = vpop.permute.xlu0 %2498
  %2500 = vrot.lane.b32.xlu0 %v2495, 8
  %v2501 = vpop.permute.xlu0 %2500
  %v2504 = vmul.f32 %v2461, %v2499
  %v2505 = vmul.f32 %v2463, %v2501
  %v2506 = vtanh.pop %v2504
  %v2507 = vtanh.pop %v2505
  %2509 = vrot.lane.b32.xlu0 %v2365, 112
  %v2510 = vpop.permute.xlu0 %2509
  %v2511 = vsel %vm140, %v2510, 0
  %2513 = vmatprep.subr.mxu0 0.0
  %2514 = vmatpush1.msra.mxu0 %v36
  %2515 = vmatprep.subr.mxu0 0.0
  %2516 = vmatpush1.msra.mxu0 0.0
  %2517 = vmatprep.subr.mxu0 0.0
  %2518 = vmatpush1.msra.mxu0 0.0
  %2519 = vmatprep.subr.mxu0 0.0
  %2520 = vmatpush1.msra.mxu0 0.0
  %2521 = vmatprep.subr.mxu0 0.0
  %2522 = vmatpush1.msra.mxu0 0.0
  %2523 = vmatprep.subr.mxu0 0.0
  %2524 = vmatpush1.msra.mxu0 0.0
  %2525 = vmatprep.subr.mxu0 0.0
  %2526 = vmatpush1.msra.mxu0 0.0
  %2527 = vmatprep.subr.mxu0 0.0
  %2528 = vmatpush1.msra.mxu0 0.0
  %2529 = vmatprep.subr.mxu0 0.0
  %2530 = vmatpush1.msra.mxu0 0.0
  %2531 = vmatprep.subr.mxu0 0.0
  %2532 = vmatpush1.msra.mxu0 0.0
  %2533 = vmatprep.subr.mxu0 0.0
  %2534 = vmatpush1.msra.mxu0 0.0
  %2535 = vmatprep.subr.mxu0 0.0
  %2536 = vmatpush1.msra.mxu0 0.0
  %2537 = vmatprep.subr.mxu0 0.0
  %2538 = vmatpush1.msra.mxu0 0.0
  %2539 = vmatprep.subr.mxu0 0.0
  %2540 = vmatpush1.msra.mxu0 0.0
  %2541 = vmatprep.subr.mxu0 0.0
  %2542 = vmatpush1.msra.mxu0 0.0
  %2543 = vmatprep.subr.mxu0 0.0
  %2544 = vmatpush1.msra.mxu0 0.0
  %2545 = vmatprep.subr.mxu0 0.0
  %2546 = vmatpush1.msra.mxu0 0.0
  %2547 = vmatprep.subr.mxu0 0.0
  %2548 = vmatpush1.msra.mxu0 0.0
  %2549 = vmatprep.subr.mxu0 0.0
  %2550 = vmatpush1.msra.mxu0 0.0
  %2551 = vmatprep.subr.mxu0 0.0
  %2552 = vmatpush1.msra.mxu0 0.0
  %2553 = vmatprep.subr.mxu0 0.0
  %2554 = vmatpush1.msra.mxu0 0.0
  %2555 = vmatprep.subr.mxu0 0.0
  %2556 = vmatpush1.msra.mxu0 0.0
  %2557 = vmatprep.subr.mxu0 0.0
  %2558 = vmatpush1.msra.mxu0 0.0
  %2559 = vmatprep.subr.mxu0 0.0
  %2560 = vmatpush1.msra.mxu0 0.0
  %2561 = vmatprep.subr.mxu0 0.0
  %2562 = vmatpush1.msra.mxu0 0.0
  %2563 = vmatprep.subr.mxu0 0.0
  %2564 = vmatpush1.msra.mxu0 0.0
  %2565 = vmatprep.subr.mxu0 0.0
  %2566 = vmatpush1.msra.mxu0 0.0
  %2567 = vmatprep.subr.mxu0 0.0
  %2568 = vmatpush1.msra.mxu0 0.0
  %2569 = vmatprep.subr.mxu0 0.0
  %2570 = vmatpush1.msra.mxu0 0.0
  %2571 = vmatprep.subr.mxu0 0.0
  %2572 = vmatpush1.msra.mxu0 0.0
  %2573 = vmatprep.subr.mxu0 0.0
  %2574 = vmatpush1.msra.mxu0 0.0
  %2575 = vmatprep.subr.mxu0 0.0
  %2576 = vmatpush1.msra.mxu0 0.0
  %2577 = vmatprep.mubr.f32.mxu0 0.0
  %2578 = vmatmul.mubr.f32.gmra.mrb[0].mxu0 %v2511
  %v2579 = vpop.f32.mrb[0].mxu0
  %v2580 = vadd.f32 0.0, %v2579
  %v2581 = vpop.f32.mrb[0].mxu0
  %2582 = vdwg.mxu0
  %v2585 = vrot.slane %v2506, 7
  %v2586 = vrot.slane %v2507, 6
  %v2587 = vsel %vm343, %v2586, %v2585
  %2588 = vrot.lane.b32.xlu0 %v2587, 112
  %v2589 = vpop.permute.xlu0 %2588
  %v2590 = vsel %vm140, %v2589, 0
  %2592 = vmatprep.subr.mxu0 0.0
  %2593 = vmatpush1.msra.mxu0 %v35
  %2594 = vmatprep.subr.mxu0 0.0
  %2595 = vmatpush1.msra.mxu0 0.0
  %2596 = vmatprep.subr.mxu0 0.0
  %2597 = vmatpush1.msra.mxu0 0.0
  %2598 = vmatprep.subr.mxu0 0.0
  %2599 = vmatpush1.msra.mxu0 0.0
  %2600 = vmatprep.subr.mxu0 0.0
  %2601 = vmatpush1.msra.mxu0 0.0
  %2602 = vmatprep.subr.mxu0 0.0
  %2603 = vmatpush1.msra.mxu0 0.0
  %2604 = vmatprep.subr.mxu0 0.0
  %2605 = vmatpush1.msra.mxu0 0.0
  %2606 = vmatprep.subr.mxu0 0.0
  %2607 = vmatpush1.msra.mxu0 0.0
  %2608 = vmatprep.subr.mxu0 0.0
  %2609 = vmatpush1.msra.mxu0 0.0
  %2610 = vmatprep.subr.mxu0 0.0
  %2611 = vmatpush1.msra.mxu0 0.0
  %2612 = vmatprep.subr.mxu0 0.0
  %2613 = vmatpush1.msra.mxu0 0.0
  %2614 = vmatprep.subr.mxu0 0.0
  %2615 = vmatpush1.msra.mxu0 0.0
  %2616 = vmatprep.subr.mxu0 0.0
  %2617 = vmatpush1.msra.mxu0 0.0
  %2618 = vmatprep.subr.mxu0 0.0
  %2619 = vmatpush1.msra.mxu0 0.0
  %2620 = vmatprep.subr.mxu0 0.0
  %2621 = vmatpush1.msra.mxu0 0.0
  %2622 = vmatprep.subr.mxu0 0.0
  %2623 = vmatpush1.msra.mxu0 0.0
  %2624 = vmatprep.subr.mxu0 0.0
  %2625 = vmatpush1.msra.mxu0 0.0
  %2626 = vmatprep.subr.mxu0 0.0
  %2627 = vmatpush1.msra.mxu0 0.0
  %2628 = vmatprep.subr.mxu0 0.0
  %2629 = vmatpush1.msra.mxu0 0.0
  %2630 = vmatprep.subr.mxu0 0.0
  %2631 = vmatpush1.msra.mxu0 0.0
  %2632 = vmatprep.subr.mxu0 0.0
  %2633 = vmatpush1.msra.mxu0 0.0
  %2634 = vmatprep.subr.mxu0 0.0
  %2635 = vmatpush1.msra.mxu0 0.0
  %2636 = vmatprep.subr.mxu0 0.0
  %2637 = vmatpush1.msra.mxu0 0.0
  %2638 = vmatprep.subr.mxu0 0.0
  %2639 = vmatpush1.msra.mxu0 0.0
  %2640 = vmatprep.subr.mxu0 0.0
  %2641 = vmatpush1.msra.mxu0 0.0
  %2642 = vmatprep.subr.mxu0 0.0
  %2643 = vmatpush1.msra.mxu0 0.0
  %2644 = vmatprep.subr.mxu0 0.0
  %2645 = vmatpush1.msra.mxu0 0.0
  %2646 = vmatprep.subr.mxu0 0.0
  %2647 = vmatpush1.msra.mxu0 0.0
  %2648 = vmatprep.subr.mxu0 0.0
  %2649 = vmatpush1.msra.mxu0 0.0
  %2650 = vmatprep.subr.mxu0 0.0
  %2651 = vmatpush1.msra.mxu0 0.0
  %2652 = vmatprep.subr.mxu0 0.0
  %2653 = vmatpush1.msra.mxu0 0.0
  %2654 = vmatprep.subr.mxu0 0.0
  %2655 = vmatpush1.msra.mxu0 0.0
  %2656 = vmatprep.mubr.f32.mxu0 0.0
  %2657 = vmatmul.mubr.f32.gmra.mrb[0].mxu0 %v2590
  %v2658 = vpop.f32.mrb[0].mxu0
  %v2659 = vadd.f32 %v2580, %v2658
  %v2660 = vpop.f32.mrb[0].mxu0
  %2661 = vdwg.mxu0
  %v2662 = vadd.f32 %v2659, %v42
  %v2663 = vxor.u32 %v2662, 2147483648
  %v2664 = vmul.f32 %v2663, 1.442695
  %v2665 = vpow.pop %v2664
  %v2666 = vadd.f32 %v2665, 1.0
  %v2667 = vrcp.pop %v2666
  %v2668 = vmul.f32 1.0, %v2667
  %v2669 = vtanh.pop %v2662
  %v2670 = vmul.f32 %v2668, %v2359
  %2672 = vrot.lane.b32.xlu0 %v2669, 104
  %v2673 = vpop.permute.xlu0 %2672
  %v2675 = vmul.f32 %v2668, %v2673
  %2677 = vrot.lane.b32.xlu0 %v2675, 8
  %v2678 = vpop.permute.xlu0 %2677
  %v2680 = vadd.f32 %v2670, %v2678
  %v2681 = vtanh.pop %v2680
  %2683 = vrot.lane.b32.xlu0 %v2681, 8
  %v2684 = vpop.permute.xlu0 %2683
  %v2686 = vmul.f32 %v2668, %v2684
  %v2687 = vtanh.pop %v2686
  %v2688 = vld [vmem:[%s7] sm:$0xff]
  %v2689 = vld [vmem:[#allocation2] sm:$0x1]
  %v2691 = vlaneseq
  %v2692 = vshrl.u32 %v2691, 7
  %v2693 = vsub.s32 0, %v2692
  %v2694 = vrot.slane %v2689, %v2693
  %2697 = vrot.lane.b32.xlu0 %v2687, 112
  %v2698 = vpop.permute.xlu0 %2697
  %v2699 = vsel %vm140, %v2698, 0
  %2701 = vmatprep.subr.mxu0 0.0
  %2702 = vmatpush1.msra.mxu0 %v2688
  %2703 = vmatprep.subr.mxu0 0.0
  %2704 = vmatpush1.msra.mxu0 0.0
  %2705 = vmatprep.subr.mxu0 0.0
  %2706 = vmatpush1.msra.mxu0 0.0
  %2707 = vmatprep.subr.mxu0 0.0
  %2708 = vmatpush1.msra.mxu0 0.0
  %2709 = vmatprep.subr.mxu0 0.0
  %2710 = vmatpush1.msra.mxu0 0.0
  %2711 = vmatprep.subr.mxu0 0.0
  %2712 = vmatpush1.msra.mxu0 0.0
  %2713 = vmatprep.subr.mxu0 0.0
  %2714 = vmatpush1.msra.mxu0 0.0
  %2715 = vmatprep.subr.mxu0 0.0
  %2716 = vmatpush1.msra.mxu0 0.0
  %2717 = vmatprep.subr.mxu0 0.0
  %2718 = vmatpush1.msra.mxu0 0.0
  %2719 = vmatprep.subr.mxu0 0.0
  %2720 = vmatpush1.msra.mxu0 0.0
  %2721 = vmatprep.subr.mxu0 0.0
  %2722 = vmatpush1.msra.mxu0 0.0
  %2723 = vmatprep.subr.mxu0 0.0
  %2724 = vmatpush1.msra.mxu0 0.0
  %2725 = vmatprep.subr.mxu0 0.0
  %2726 = vmatpush1.msra.mxu0 0.0
  %2727 = vmatprep.subr.mxu0 0.0
  %2728 = vmatpush1.msra.mxu0 0.0
  %2729 = vmatprep.subr.mxu0 0.0
  %2730 = vmatpush1.msra.mxu0 0.0
  %2731 = vmatprep.subr.mxu0 0.0
  %2732 = vmatpush1.msra.mxu0 0.0
  %2733 = vmatprep.subr.mxu0 0.0
  %2734 = vmatpush1.msra.mxu0 0.0
  %2735 = vmatprep.subr.mxu0 0.0
  %2736 = vmatpush1.msra.mxu0 0.0
  %2737 = vmatprep.subr.mxu0 0.0
  %2738 = vmatpush1.msra.mxu0 0.0
  %2739 = vmatprep.subr.mxu0 0.0
  %2740 = vmatpush1.msra.mxu0 0.0
  %2741 = vmatprep.subr.mxu0 0.0
  %2742 = vmatpush1.msra.mxu0 0.0
  %2743 = vmatprep.subr.mxu0 0.0
  %2744 = vmatpush1.msra.mxu0 0.0
  %2745 = vmatprep.subr.mxu0 0.0
  %2746 = vmatpush1.msra.mxu0 0.0
  %2747 = vmatprep.subr.mxu0 0.0
  %2748 = vmatpush1.msra.mxu0 0.0
  %2749 = vmatprep.subr.mxu0 0.0
  %2750 = vmatpush1.msra.mxu0 0.0
  %2751 = vmatprep.subr.mxu0 0.0
  %2752 = vmatpush1.msra.mxu0 0.0
  %2753 = vmatprep.subr.mxu0 0.0
  %2754 = vmatpush1.msra.mxu0 0.0
  %2755 = vmatprep.subr.mxu0 0.0
  %2756 = vmatpush1.msra.mxu0 0.0
  %2757 = vmatprep.subr.mxu0 0.0
  %2758 = vmatpush1.msra.mxu0 0.0
  %2759 = vmatprep.subr.mxu0 0.0
  %2760 = vmatpush1.msra.mxu0 0.0
  %2761 = vmatprep.subr.mxu0 0.0
  %2762 = vmatpush1.msra.mxu0 0.0
  %2763 = vmatprep.subr.mxu0 0.0
  %2764 = vmatpush1.msra.mxu0 0.0
  %2765 = vmatprep.mubr.f32.mxu0 0.0
  %2766 = vmatmul.mubr.f32.gmra.mrb[0].mxu0 %v2699
  %v2767 = vpop.f32.mrb[0].mxu0
  %v2768 = vadd.f32 %v2694, %v2767
  %v2769 = vpop.f32.mrb[0].mxu0
  %2770 = vdwg.mxu0
  %v2771 = vxor.u32 %v2768, 2147483648
  %v2772 = vmul.f32 %v2771, 1.442695
  %v2773 = vpow.pop %v2772
  %v2774 = vadd.f32 %v2773, 1.0
  %v2775 = vrcp.pop %v2774
  %v2776 = vmul.f32 1.0, %v2775
  %vm2777 = vcmask 1024
  %2778 = vst.msk [vmem:[%s9] sm:$0x3] %vm2777, %v2776
  // Predicated region
  $region38: #{tpu_custom_call.1} parent=0 // pred_check
    _
  $region39: #{tpu_custom_call.1} parent=0 // pred_check_branch
    %2780 = sbr.rel (0) target = $region41
  $region40: #{tpu_custom_call.1} parent=0 // pred_region
    _
  $region41: #{tpu_custom_call.1} parent=0 // pred_fallthru
    _
  // Predicated region
  $region42: #{tpu_custom_call.1} parent=0 // pred_check
    _
  $region43: #{tpu_custom_call.1} parent=0 // pred_check_branch
    %2782 = sbr.rel (0) target = $region45
  $region44: #{tpu_custom_call.1} parent=0 // pred_region
    _
  $region45: #{tpu_custom_call.1} parent=0 // pred_fallthru
    _

</llo_original>
